<compile_context>
chip_gen: v7x
topology: tpu7x:2x2x1
jax: 0.10.0
libtpu: 0.0.40
codegen_flags: <defaults>
</compile_context>

<pallas_src>
import functools

import numpy as np
import jax
import jax.numpy as jnp
from jax.experimental import pallas as pl
from jax.experimental.pallas import tpu as pltpu

# ----------------------------------------------------------------------------
# Small-shape stand-ins for the original module's constants
# (original: n_samples = 2**16, J = 6, Q = 16).
# ----------------------------------------------------------------------------
N_SAMPLES = 2048          # signal length (kept a multiple of TILE_T)
J = 4                     # log2 of subsampling factor
Q = 4                     # wavelets per octave (1st order)
T_FILT = 64               # filter support (taps)
K1 = J * Q                # number of 1st-order wavelets
K2 = J                    # number of 2nd-order wavelets (Q2 = 1)
SUB = 1 << J              # subsampling factor
M_OUT = N_SAMPLES >> J    # output time resolution (= 128, lane-dense)
TILE_T = 128              # output-time tile (lane width)
WIN_PAD = 2 * TILE_T      # input window rows (zero-padded past TILE_T+T_FILT)
HALF = T_FILT // 2
MOD_EPS = 1e-12           # keeps sqrt differentiable where the modulus vanishes
VMEM_LIMIT = 32 * 1024 * 1024   # explicit budget; safe on v5e/v6e/v7x

assert N_SAMPLES % TILE_T == 0 and M_OUT == 128


# ----------------------------------------------------------------------------
# Deterministic filterbank + banded weight construction (glue, numpy)
# ----------------------------------------------------------------------------
def _gabor(taps, xi, sigma):
    t = np.arange(taps, dtype=np.float64) - taps // 2
    g = np.exp(-0.5 * (t / sigma) ** 2)
    g = g / np.abs(g).sum()
    return (g * np.cos(xi * t)), (g * np.sin(xi * t))


def _wavelet_bands(psi_re, psi_im, tile_t, win_pad):
    """Per-wavelet banded weights, band[k, w, p*tile_t + j] = psi_p[k, w - j].

    A (c_blk, win_pad) @ (win_pad, 2*tile_t) matmul then evaluates the circular
    correlation for tile_t consecutive output times (time on lanes) with the
    real/imag parts fused in one MXU pass.  Rows past tile_t + taps are zero.
    """
    k, taps = psi_re.shape
    tap = np.arange(win_pad)[:, None] - np.arange(tile_t)[None, :]   # (win_pad, tile_t)
    valid = (tap >= 0) & (tap < taps)
    tap_c = np.clip(tap, 0, taps - 1)
    re = np.where(valid[None], psi_re[:, tap_c], 0.0)                # (k, win_pad, tile_t)
    im = np.where(valid[None], psi_im[:, tap_c], 0.0)
    return np.concatenate([re, im], axis=-1)                         # (k, win_pad, 2*tile_t)


def _phi_band(phi, w_rows, m, sub):
    """band[w, m] = phi[w - sub*m]: (C, W) @ (W, M) low-pass + subsample, M on lanes.

    TODO(synk): at full scale (M >> 128) the output time axis should be tiled
    (M_tile = 128) instead of emitting one (N + TILE_T, M) band.
    """
    taps = phi.shape[0]
    tap = np.arange(w_rows)[:, None] - sub * np.arange(m)[None, :]
    valid = (tap >= 0) & (tap < taps)
    return np.where(valid, phi[np.clip(tap, 0, taps - 1)], 0.0)


def build_filterbank():
    xi1 = np.pi / 2.0 * 2.0 ** (-np.arange(K1, dtype=np.float64) / Q)
    sig1 = np.minimum(0.8 * Q / xi1, T_FILT / 4.0)
    xi2 = np.pi / 2.0 * 2.0 ** (-np.arange(K2, dtype=np.float64))
    sig2 = np.minimum(0.8 / xi2, T_FILT / 4.0)

    psi1_re = np.zeros((K1, T_FILT), np.float64)
    psi1_im = np.zeros((K1, T_FILT), np.float64)
    for k in range(K1):
        psi1_re[k], psi1_im[k] = _gabor(T_FILT, xi1[k], sig1[k])

    psi2_re = np.zeros((K2, T_FILT), np.float64)
    psi2_im = np.zeros((K2, T_FILT), np.float64)
    for k in range(K2):
        psi2_re[k], psi2_im[k] = _gabor(T_FILT, xi2[k], sig2[k])

    t = np.arange(T_FILT, dtype=np.float64) - T_FILT // 2
    phi = np.exp(-0.5 * (t / (0.8 * 2.0 ** J)) ** 2)
    phi = phi / phi.sum()

    # Admissible 2nd-order pairs: xi2 < xi1 (static, analogous to kymatio j2 > j1).
    # Flat index into the (K2, K1) leading axes of U2.
    pair_mask = xi2[:, None] < xi1[None, :]                          # (K2, K1)
    pair_flat_idx = np.where(pair_mask.reshape(-1))[0].astype(np.int32)

    filt = {
        # bf16 MXU weights; accumulation stays f32 inside the kernels.
        "psi1_band": jnp.asarray(_wavelet_bands(psi1_re, psi1_im, TILE_T, WIN_PAD),
                                 jnp.bfloat16),
        "psi2_band": jnp.asarray(_wavelet_bands(psi2_re, psi2_im, TILE_T, WIN_PAD),
                                 jnp.bfloat16),
        "phi_band": jnp.asarray(_phi_band(phi, N_SAMPLES + TILE_T, M_OUT, SUB),
                                jnp.bfloat16),
    }
    return filt, pair_flat_idx


# ----------------------------------------------------------------------------
# Pallas kernels
# ----------------------------------------------------------------------------
def _wavelet_modulus_kernel(xa_ref, xb_ref, w_ref, o_ref, *, win_pad, tile_t):
    # Assemble the (c_blk, WIN_PAD) window for this output tile from the current
    # and next 128-wide input blocks (no HBM im2col; halo handled in VMEM).
    x = jnp.concatenate([xa_ref[...], xb_ref[...]], axis=-1)          # (c_blk, 256)
    w = w_ref[...].reshape(win_pad, 2 * tile_t)                       # leading-dim squeeze
    # Fused [re | im] banded matmul; output time tile is lane-dense (128).
    y = jnp.dot(x, w, preferred_element_type=jnp.float32)             # (c_blk, 2*tile_t)
    re = y[:, :tile_t]
    im = y[:, tile_t:]
    mod = jnp.sqrt(re * re + im * im + MOD_EPS)
    o_ref[...] = mod[None].astype(o_ref.dtype)                        # (1, c_blk, tile_t)


def _phi_kernel(x_ref, w_ref, o_ref):
    # Low-pass + subsample as a banded matmul; subsampled time (M=128) on lanes.
    o_ref[...] = jnp.dot(x_ref[...], w_ref[...], preferred_element_type=jnp.float32)


def _l1_kernel(a_ref, b_ref, o_ref, acc_ref):
    @pl.when(pl.program_id(0) == 0)
    def _():
        acc_ref[...] = jnp.zeros_like(acc_ref)

    d = jnp.abs(a_ref[...] - b_ref[...])
    acc_ref[...] += jnp.sum(d.reshape(-1, 8, 128), axis=0)

    @pl.when(pl.program_id(0) == pl.num_programs(0) - 1)
    def _():
        o_ref[...] = acc_ref[...]


# ----------------------------------------------------------------------------
# Pallas wrappers
# ----------------------------------------------------------------------------
def _pick_cblk(c):
    for cand in (32, 16, 8):
        if c % cand == 0:
            return cand
    return c   # small channel counts: block = full dim (allowed)


def conv_wavelet_modulus(x_ext, band):
    """x_ext: (C, N+TILE_T) bf16 (circularly extended), band: (K, WIN_PAD, 2*TILE_T) bf16.
    Returns |x * psi| as (K, C, N) bf16, time lane-dense (no transposes anywhere)."""
    c, total = x_ext.shape
    n = total - TILE_T
    k = band.shape[0]
    c_blk = _pick_cblk(c)
    kern = functools.partial(_wavelet_modulus_kernel, win_pad=WIN_PAD, tile_t=TILE_T)
    return pl.pallas_call(
        kern,
        out_shape=jax.ShapeDtypeStruct((k, c, n), jnp.bfloat16),
        grid_spec=pltpu.PrefetchScalarGridSpec(
            num_scalar_prefetch=0,
            grid=(k, c // c_blk, n // TILE_T),
            in_specs=[
                pl.BlockSpec((c_blk, TILE_T), lambda ki, ci, ti: (ci, ti)),      # current
                pl.BlockSpec((c_blk, TILE_T), lambda ki, ci, ti: (ci, ti + 1)),  # halo
                pl.BlockSpec((1, WIN_PAD, 2 * TILE_T), lambda ki, ci, ti: (ki, 0, 0)),
            ],
            out_specs=pl.BlockSpec((1, c_blk, TILE_T),
                                   lambda ki, ci, ti: (ki, ci, ti))),
        compiler_params=pltpu.CompilerParams(
            dimension_semantics=("parallel", "parallel", "parallel"),
            vmem_limit_bytes=VMEM_LIMIT),
    )(x_ext, x_ext, band)


def conv_phi(x_ext, phi_band):
    """x_ext: (C, N+TILE_T) bf16, phi_band: (N+TILE_T, M) bf16 -> (C, M) f32."""
    c, w_len = x_ext.shape
    m = phi_band.shape[1]
    c_blk = _pick_cblk(c)
    return pl.pallas_call(
        _phi_kernel,
        out_shape=jax.ShapeDtypeStruct((c, m), jnp.float32),
        grid_spec=pltpu.PrefetchScalarGridSpec(
            num_scalar_prefetch=0,
            grid=(c // c_blk,),
            in_specs=[pl.BlockSpec((c_blk, w_len), lambda ci: (ci, 0)),
                      pl.BlockSpec((w_len, m), lambda ci: (0, 0))],   # resident weights
            out_specs=pl.BlockSpec((c_blk, m), lambda ci: (ci, 0))),
        compiler_params=pltpu.CompilerParams(
            dimension_semantics=("parallel",),
            vmem_limit_bytes=VMEM_LIMIT),
    )(x_ext, phi_band)


def l1_sum(a, b):
    """sum(|a - b|) via a lane-dense (8,128) partial-sum accumulator."""
    a = a.reshape(-1).astype(jnp.float32)
    b = b.reshape(-1).astype(jnp.float32)
    n = a.shape[0]
    rows = pl.cdiv(n, 128)
    blk_r = min(512, ((rows + 7) // 8) * 8)      # rows per grid step (multiple of 8)
    n_tiles = pl.cdiv(rows, blk_r)
    rows_pad = n_tiles * blk_r
    pad = rows_pad * 128 - n
    a = jnp.pad(a, (0, pad)).reshape(rows_pad, 128)
    b = jnp.pad(b, (0, pad)).reshape(rows_pad, 128)
    partial = pl.pallas_call(
        _l1_kernel,
        out_shape=jax.ShapeDtypeStruct((8, 128), jnp.float32),
        grid_spec=pltpu.PrefetchScalarGridSpec(
            num_scalar_prefetch=0,
            grid=(n_tiles,),
            in_specs=[pl.BlockSpec((blk_r, 128), lambda i: (i, 0)),
                      pl.BlockSpec((blk_r, 128), lambda i: (i, 0))],
            out_specs=pl.BlockSpec((8, 128), lambda i: (0, 0)),
            scratch_shapes=[pltpu.VMEM((8, 128), jnp.float32)]),
        compiler_params=pltpu.CompilerParams(
            dimension_semantics=("arbitrary",),
            vmem_limit_bytes=VMEM_LIMIT),
    )(a, b)
    return jnp.sum(partial)


# ----------------------------------------------------------------------------
# Scattering transform + loss (glue = cheap circular halo / leading-dim reshapes)
# ----------------------------------------------------------------------------
def _extend_circular(x, pad=TILE_T, half=HALF):
    # x_ext[..., i] = x[..., (i - half) mod N] for i in [0, N + pad)
    return jnp.concatenate([x[..., -half:], x, x[..., : pad - half]], axis=-1)


def scattering1d(x, filt, pair_flat_idx):
    """x: (C0, N) f32 -> (1 + K1 + P, C0, M) f32 scattering coefficients."""
    c0, n = x.shape
    x_ext = _extend_circular(x.astype(jnp.bfloat16))                    # (C0, N+TILE_T)

    # --- order 0: S0 = x * phi, subsampled ---
    s0 = conv_phi(x_ext, filt["phi_band"])[None]                        # (1, C0, M)

    # --- order 1: U1 = |x * psi1|, S1 = U1 * phi subsampled ---
    u1 = conv_wavelet_modulus(x_ext, filt["psi1_band"])                  # (K1, C0, N) bf16
    u1_ext = _extend_circular(u1.reshape(K1 * c0, n))                    # (K1*C0, N+TILE_T)
    s1 = conv_phi(u1_ext, filt["phi_band"]).reshape(K1, c0, M_OUT)       # (K1, C0, M)

    # --- order 2: U2 = ||x*psi1| * psi2|; admissible pairs pruned *before*
    # the phi low-pass so only P channels pay for that stage ---
    # TODO(synk): restrict the psi2 convolution itself to admissible (j1, j2)
    # bands (kymatio only computes U2 for j2 > j1); here all K2*K1 responses
    # are computed and pruned before the low-pass.
    u2 = conv_wavelet_modulus(u1_ext, filt["psi2_band"])                 # (K2, K1*C0, N)
    u2 = u2.reshape(K2 * K1, c0, n)
    u2 = u2[pair_flat_idx]                                               # (P, C0, N)
    p = int(pair_flat_idx.shape[0])
    u2_ext = _extend_circular(u2.reshape(p * c0, n))
    s2 = conv_phi(u2_ext, filt["phi_band"]).reshape(p, c0, M_OUT)        # (P, C0, M)

    return jnp.concatenate([s0, s1, s2], axis=0)                         # (C, C0, M)


def scattering_loss(target, recon, filt, pair_flat_idx):
    b = target.shape[0]
    # One scattering pass for target+recon stacked (halves launches / weight loads).
    s = scattering1d(jnp.concatenate([target, recon], axis=0), filt, pair_flat_idx)
    return l1_sum(s[:, :b], s[:, b:])


# ----------------------------------------------------------------------------
if __name__ == "__main__":
    filt, pair_flat_idx = build_filterbank()

    key = jax.random.PRNGKey(0)
    kt, kr = jax.random.split(key)
    B = 2
    target = jax.random.normal(kt, (B, N_SAMPLES), dtype=jnp.float32)
    recon = jax.random.normal(kr, (B, N_SAMPLES), dtype=jnp.float32)

    loss_fn = jax.jit(lambda t, r: scattering_loss(t, r, filt, pair_flat_idx))
    loss = loss_fn(target, recon)
    jax.block_until_ready(loss)
    assert jnp.isfinite(loss)
    print("KERNEL_OK")
</pallas_src>

<mosaic_0001>
module attributes {stable_mosaic.version = 11 : i64} {
  func.func @_wavelet_modulus_kernel(%arg0: i32, %arg1: i32, %arg2: i32, %arg3: memref<4x128xbf16, #tpu.memory_space<vmem>>, %arg4: memref<4x128xbf16, #tpu.memory_space<vmem>>, %arg5: memref<1x256x256xbf16, #tpu.memory_space<vmem>>, %arg6: memref<1x4x128xbf16, #tpu.memory_space<vmem>>) attributes {dimension_semantics = [#tpu.dimension_semantics<parallel>, #tpu.dimension_semantics<parallel>, #tpu.dimension_semantics<parallel>], iteration_bounds = array<i64: 16, 1, 16>, scalar_prefetch = 0 : i64, scratch_operands = 0 : i64, tpu.core_type = #tpu.core_type<tc>, window_params = [{transform_indices = @transform_0, window_bounds = array<i64: 4, 128>}, {transform_indices = @transform_1, window_bounds = array<i64: 4, 128>}, {transform_indices = @transform_2, window_bounds = array<i64: 1, 256, 256>}, {transform_indices = @transform_3, window_bounds = array<i64: 1, 4, 128>}]} {
    %c0 = arith.constant 0 : index
    %c0_0 = arith.constant 0 : index
    %0 = vector.load %arg3[%c0, %c0_0] : memref<4x128xbf16, #tpu.memory_space<vmem>>, vector<4x128xbf16>
    %c0_1 = arith.constant 0 : index
    %c0_2 = arith.constant 0 : index
    %1 = vector.load %arg4[%c0_1, %c0_2] : memref<4x128xbf16, #tpu.memory_space<vmem>>, vector<4x128xbf16>
    %2 = tpu.concatenate %0, %1 in 1 : vector<4x128xbf16>, vector<4x128xbf16> -> vector<4x256xbf16>
    %c0_3 = arith.constant 0 : index
    %c0_4 = arith.constant 0 : index
    %c0_5 = arith.constant 0 : index
    %3 = vector.load %arg5[%c0_3, %c0_4, %c0_5] : memref<1x256x256xbf16, #tpu.memory_space<vmem>>, vector<1x256x256xbf16>
    %4 = vector.shape_cast %3 : vector<1x256x256xbf16> to vector<256x256xbf16>
    %cst = arith.constant dense<0.000000e+00> : vector<4x256xf32>
    %5 = tpu.matmul %2, %4, %cst {dimension_numbers = #tpu.dot_dimension_numbers<[1], [0], [0], [1], [0, 0, 1, 1], [], []>} : vector<4x256xbf16>, vector<256x256xbf16>, vector<4x256xf32> -> vector<4x256xf32>
    %6 = vector.extract_strided_slice %5 {offsets = [0, 0], sizes = [4, 128], strides = [1, 1]} : vector<4x256xf32> to vector<4x128xf32>
    %7 = vector.extract_strided_slice %5 {offsets = [0, 128], sizes = [4, 128], strides = [1, 1]} : vector<4x256xf32> to vector<4x128xf32>
    %8 = arith.mulf %6, %6 : vector<4x128xf32>
    %9 = arith.mulf %7, %7 : vector<4x128xf32>
    %10 = arith.addf %8, %9 : vector<4x128xf32>
    %cst_6 = arith.constant 9.99999996E-13 : f32
    %11 = vector.broadcast %cst_6 : f32 to vector<4x128xf32>
    %12 = arith.addf %10, %11 : vector<4x128xf32>
    %13 = math.sqrt %12 : vector<4x128xf32>
    %14 = vector.shape_cast %13 : vector<4x128xf32> to vector<1x4x128xf32>
    %15 = arith.truncf %14 : vector<1x4x128xf32> to vector<1x4x128xbf16>
    %c0_7 = arith.constant 0 : index
    %c0_8 = arith.constant 0 : index
    %c0_9 = arith.constant 0 : index
    %16 = vector.load %arg6[%c0_7, %c0_8, %c0_9] : memref<1x4x128xbf16, #tpu.memory_space<vmem>>, vector<1x4x128xbf16>
    tpu.vector_store %arg6[%c0_7, %c0_8, %c0_9], %15 {strides = array<i32>} : memref<1x4x128xbf16, #tpu.memory_space<vmem>>, vector<1x4x128xbf16>,
    return
  }
  func.func @transform_0(%arg0: i32, %arg1: i32, %arg2: i32) -> (i32, i32) {
    %c0_i32 = arith.constant 0 : i32
    return %arg1, %arg2 : i32, i32
  }
  func.func @transform_1(%arg0: i32, %arg1: i32, %arg2: i32) -> (i32, i32) {
    %c1_i32 = arith.constant 1 : i32
    %0 = arith.addi %arg2, %c1_i32 : i32
    %c0_i32 = arith.constant 0 : i32
    return %arg1, %0 : i32, i32
  }
  func.func @transform_2(%arg0: i32, %arg1: i32, %arg2: i32) -> (i32, i32, i32) {
    %c0_i32 = arith.constant 0 : i32
    %c0_i32_0 = arith.constant 0 : i32
    %c0_i32_1 = arith.constant 0 : i32
    return %arg0, %c0_i32, %c0_i32_0 : i32, i32, i32
  }
  func.func @transform_3(%arg0: i32, %arg1: i32, %arg2: i32) -> (i32, i32, i32) {
    %c0_i32 = arith.constant 0 : i32
    return %arg0, %arg1, %arg2 : i32, i32, i32
  }
}

module attributes {stable_mosaic.version = 11 : i64} {
  func.func @_wavelet_modulus_kernel(%arg0: i32, %arg1: i32, %arg2: i32, %arg3: memref<32x128xbf16, #tpu.memory_space<vmem>>, %arg4: memref<32x128xbf16, #tpu.memory_space<vmem>>, %arg5: memref<1x256x256xbf16, #tpu.memory_space<vmem>>, %arg6: memref<1x32x128xbf16, #tpu.memory_space<vmem>>) attributes {dimension_semantics = [#tpu.dimension_semantics<parallel>, #tpu.dimension_semantics<parallel>, #tpu.dimension_semantics<parallel>], iteration_bounds = array<i64: 4, 2, 16>, scalar_prefetch = 0 : i64, scratch_operands = 0 : i64, tpu.core_type = #tpu.core_type<tc>, window_params = [{transform_indices = @transform_0, window_bounds = array<i64: 32, 128>}, {transform_indices = @transform_1, window_bounds = array<i64: 32, 128>}, {transform_indices = @transform_2, window_bounds = array<i64: 1, 256, 256>}, {transform_indices = @transform_3, window_bounds = array<i64: 1, 32, 128>}]} {
    %c0 = arith.constant 0 : index
    %c0_0 = arith.constant 0 : index
    %0 = vector.load %arg3[%c0, %c0_0] : memref<32x128xbf16, #tpu.memory_space<vmem>>, vector<32x128xbf16>
    %c0_1 = arith.constant 0 : index
    %c0_2 = arith.constant 0 : index
    %1 = vector.load %arg4[%c0_1, %c0_2] : memref<32x128xbf16, #tpu.memory_space<vmem>>, vector<32x128xbf16>
    %2 = tpu.concatenate %0, %1 in 1 : vector<32x128xbf16>, vector<32x128xbf16> -> vector<32x256xbf16>
    %c0_3 = arith.constant 0 : index
    %c0_4 = arith.constant 0 : index
    %c0_5 = arith.constant 0 : index
    %3 = vector.load %arg5[%c0_3, %c0_4, %c0_5] : memref<1x256x256xbf16, #tpu.memory_space<vmem>>, vector<1x256x256xbf16>
    %4 = vector.shape_cast %3 : vector<1x256x256xbf16> to vector<256x256xbf16>
    %cst = arith.constant dense<0.000000e+00> : vector<32x256xf32>
    %5 = tpu.matmul %2, %4, %cst {dimension_numbers = #tpu.dot_dimension_numbers<[1], [0], [0], [1], [0, 0, 1, 1], [], []>} : vector<32x256xbf16>, vector<256x256xbf16>, vector<32x256xf32> -> vector<32x256xf32>
    %6 = vector.extract_strided_slice %5 {offsets = [0, 0], sizes = [32, 128], strides = [1, 1]} : vector<32x256xf32> to vector<32x128xf32>
    %7 = vector.extract_strided_slice %5 {offsets = [0, 128], sizes = [32, 128], strides = [1, 1]} : vector<32x256xf32> to vector<32x128xf32>
    %8 = arith.mulf %6, %6 : vector<32x128xf32>
    %9 = arith.mulf %7, %7 : vector<32x128xf32>
    %10 = arith.addf %8, %9 : vector<32x128xf32>
    %cst_6 = arith.constant 9.99999996E-13 : f32
    %11 = vector.broadcast %cst_6 : f32 to vector<32x128xf32>
    %12 = arith.addf %10, %11 : vector<32x128xf32>
    %13 = math.sqrt %12 : vector<32x128xf32>
    %14 = vector.shape_cast %13 : vector<32x128xf32> to vector<1x32x128xf32>
    %15 = arith.truncf %14 : vector<1x32x128xf32> to vector<1x32x128xbf16>
    %c0_7 = arith.constant 0 : index
    %c0_8 = arith.constant 0 : index
    %c0_9 = arith.constant 0 : index
    %16 = vector.load %arg6[%c0_7, %c0_8, %c0_9] : memref<1x32x128xbf16, #tpu.memory_space<vmem>>, vector<1x32x128xbf16>
    tpu.vector_store %arg6[%c0_7, %c0_8, %c0_9], %15 {strides = array<i32>} : memref<1x32x128xbf16, #tpu.memory_space<vmem>>, vector<1x32x128xbf16>,
    return
  }
  func.func @transform_0(%arg0: i32, %arg1: i32, %arg2: i32) -> (i32, i32) {
    %c0_i32 = arith.constant 0 : i32
    return %arg1, %arg2 : i32, i32
  }
  func.func @transform_1(%arg0: i32, %arg1: i32, %arg2: i32) -> (i32, i32) {
    %c1_i32 = arith.constant 1 : i32
    %0 = arith.addi %arg2, %c1_i32 : i32
    %c0_i32 = arith.constant 0 : i32
    return %arg1, %0 : i32, i32
  }
  func.func @transform_2(%arg0: i32, %arg1: i32, %arg2: i32) -> (i32, i32, i32) {
    %c0_i32 = arith.constant 0 : i32
    %c0_i32_0 = arith.constant 0 : i32
    %c0_i32_1 = arith.constant 0 : i32
    return %arg0, %c0_i32, %c0_i32_0 : i32, i32, i32
  }
  func.func @transform_3(%arg0: i32, %arg1: i32, %arg2: i32) -> (i32, i32, i32) {
    %c0_i32 = arith.constant 0 : i32
    return %arg0, %arg1, %arg2 : i32, i32, i32
  }
}

module attributes {stable_mosaic.version = 11 : i64} {
  func.func @_phi_kernel(%arg0: i32, %arg1: memref<32x2176xbf16, #tpu.memory_space<vmem>>, %arg2: memref<2176x128xbf16, #tpu.memory_space<vmem>>, %arg3: memref<32x128xf32, #tpu.memory_space<vmem>>) attributes {dimension_semantics = [#tpu.dimension_semantics<parallel>], iteration_bounds = array<i64: 3>, scalar_prefetch = 0 : i64, scratch_operands = 0 : i64, tpu.core_type = #tpu.core_type<tc>, window_params = [{transform_indices = @transform_0, window_bounds = array<i64: 32, 2176>}, {pipeline_mode = #tpu.pipeline_mode<synchronous>, transform_indices = @transform_1, window_bounds = array<i64: 2176, 128>}, {transform_indices = @transform_2, window_bounds = array<i64: 32, 128>}]} {
    %c0 = arith.constant 0 : index
    %c0_0 = arith.constant 0 : index
    %0 = vector.load %arg1[%c0, %c0_0] : memref<32x2176xbf16, #tpu.memory_space<vmem>>, vector<32x2176xbf16>
    %c0_1 = arith.constant 0 : index
    %c0_2 = arith.constant 0 : index
    %1 = vector.load %arg2[%c0_1, %c0_2] : memref<2176x128xbf16, #tpu.memory_space<vmem>>, vector<2176x128xbf16>
    %cst = arith.constant dense<0.000000e+00> : vector<32x128xf32>
    %2 = tpu.matmul %0, %1, %cst {dimension_numbers = #tpu.dot_dimension_numbers<[1], [0], [0], [1], [0, 0, 1, 1], [], []>} : vector<32x2176xbf16>, vector<2176x128xbf16>, vector<32x128xf32> -> vector<32x128xf32>
    %c0_3 = arith.constant 0 : index
    %c0_4 = arith.constant 0 : index
    %3 = vector.load %arg3[%c0_3, %c0_4] : memref<32x128xf32, #tpu.memory_space<vmem>>, vector<32x128xf32>
    tpu.vector_store %arg3[%c0_3, %c0_4], %2 {strides = array<i32>} : memref<32x128xf32, #tpu.memory_space<vmem>>, vector<32x128xf32>,
    return
  }
  func.func @transform_0(%arg0: i32) -> (i32, i32) {
    %c0_i32 = arith.constant 0 : i32
    %c0_i32_0 = arith.constant 0 : i32
    return %arg0, %c0_i32 : i32, i32
  }
  func.func @transform_1(%arg0: i32) -> (i32, i32) {
    %c0_i32 = arith.constant 0 : i32
    %c0_i32_0 = arith.constant 0 : i32
    %c0_i32_1 = arith.constant 0 : i32
    return %c0_i32, %c0_i32_0 : i32, i32
  }
  func.func @transform_2(%arg0: i32) -> (i32, i32) {
    %c0_i32 = arith.constant 0 : i32
    %c0_i32_0 = arith.constant 0 : i32
    return %arg0, %c0_i32 : i32, i32
  }
}

module attributes {stable_mosaic.version = 11 : i64} {
  func.func @_phi_kernel(%arg0: i32, %arg1: memref<32x2176xbf16, #tpu.memory_space<vmem>>, %arg2: memref<2176x128xbf16, #tpu.memory_space<vmem>>, %arg3: memref<32x128xf32, #tpu.memory_space<vmem>>) attributes {dimension_semantics = [#tpu.dimension_semantics<parallel>], iteration_bounds = array<i64: 2>, scalar_prefetch = 0 : i64, scratch_operands = 0 : i64, tpu.core_type = #tpu.core_type<tc>, window_params = [{transform_indices = @transform_0, window_bounds = array<i64: 32, 2176>}, {pipeline_mode = #tpu.pipeline_mode<synchronous>, transform_indices = @transform_1, window_bounds = array<i64: 2176, 128>}, {transform_indices = @transform_2, window_bounds = array<i64: 32, 128>}]} {
    %c0 = arith.constant 0 : index
    %c0_0 = arith.constant 0 : index
    %0 = vector.load %arg1[%c0, %c0_0] : memref<32x2176xbf16, #tpu.memory_space<vmem>>, vector<32x2176xbf16>
    %c0_1 = arith.constant 0 : index
    %c0_2 = arith.constant 0 : index
    %1 = vector.load %arg2[%c0_1, %c0_2] : memref<2176x128xbf16, #tpu.memory_space<vmem>>, vector<2176x128xbf16>
    %cst = arith.constant dense<0.000000e+00> : vector<32x128xf32>
    %2 = tpu.matmul %0, %1, %cst {dimension_numbers = #tpu.dot_dimension_numbers<[1], [0], [0], [1], [0, 0, 1, 1], [], []>} : vector<32x2176xbf16>, vector<2176x128xbf16>, vector<32x128xf32> -> vector<32x128xf32>
    %c0_3 = arith.constant 0 : index
    %c0_4 = arith.constant 0 : index
    %3 = vector.load %arg3[%c0_3, %c0_4] : memref<32x128xf32, #tpu.memory_space<vmem>>, vector<32x128xf32>
    tpu.vector_store %arg3[%c0_3, %c0_4], %2 {strides = array<i32>} : memref<32x128xf32, #tpu.memory_space<vmem>>, vector<32x128xf32>,
    return
  }
  func.func @transform_0(%arg0: i32) -> (i32, i32) {
    %c0_i32 = arith.constant 0 : i32
    %c0_i32_0 = arith.constant 0 : i32
    return %arg0, %c0_i32 : i32, i32
  }
  func.func @transform_1(%arg0: i32) -> (i32, i32) {
    %c0_i32 = arith.constant 0 : i32
    %c0_i32_0 = arith.constant 0 : i32
    %c0_i32_1 = arith.constant 0 : i32
    return %c0_i32, %c0_i32_0 : i32, i32
  }
  func.func @transform_2(%arg0: i32) -> (i32, i32) {
    %c0_i32 = arith.constant 0 : i32
    %c0_i32_0 = arith.constant 0 : i32
    return %arg0, %c0_i32 : i32, i32
  }
}

module attributes {stable_mosaic.version = 11 : i64} {
  func.func @_phi_kernel(%arg0: i32, %arg1: memref<4x2176xbf16, #tpu.memory_space<vmem>>, %arg2: memref<2176x128xbf16, #tpu.memory_space<vmem>>, %arg3: memref<4x128xf32, #tpu.memory_space<vmem>>) attributes {dimension_semantics = [#tpu.dimension_semantics<parallel>], iteration_bounds = array<i64: 1>, scalar_prefetch = 0 : i64, scratch_operands = 0 : i64, tpu.core_type = #tpu.core_type<tc>, window_params = [{transform_indices = @transform_0, window_bounds = array<i64: 4, 2176>}, {pipeline_mode = #tpu.pipeline_mode<synchronous>, transform_indices = @transform_1, window_bounds = array<i64: 2176, 128>}, {transform_indices = @transform_2, window_bounds = array<i64: 4, 128>}]} {
    %c0 = arith.constant 0 : index
    %c0_0 = arith.constant 0 : index
    %0 = vector.load %arg1[%c0, %c0_0] : memref<4x2176xbf16, #tpu.memory_space<vmem>>, vector<4x2176xbf16>
    %c0_1 = arith.constant 0 : index
    %c0_2 = arith.constant 0 : index
    %1 = vector.load %arg2[%c0_1, %c0_2] : memref<2176x128xbf16, #tpu.memory_space<vmem>>, vector<2176x128xbf16>
    %cst = arith.constant dense<0.000000e+00> : vector<4x128xf32>
    %2 = tpu.matmul %0, %1, %cst {dimension_numbers = #tpu.dot_dimension_numbers<[1], [0], [0], [1], [0, 0, 1, 1], [], []>} : vector<4x2176xbf16>, vector<2176x128xbf16>, vector<4x128xf32> -> vector<4x128xf32>
    %c0_3 = arith.constant 0 : index
    %c0_4 = arith.constant 0 : index
    %3 = vector.load %arg3[%c0_3, %c0_4] : memref<4x128xf32, #tpu.memory_space<vmem>>, vector<4x128xf32>
    tpu.vector_store %arg3[%c0_3, %c0_4], %2 {strides = array<i32>} : memref<4x128xf32, #tpu.memory_space<vmem>>, vector<4x128xf32>,
    return
  }
  func.func @transform_0(%arg0: i32) -> (i32, i32) {
    %c0_i32 = arith.constant 0 : i32
    %c0_i32_0 = arith.constant 0 : i32
    return %arg0, %c0_i32 : i32, i32
  }
  func.func @transform_1(%arg0: i32) -> (i32, i32) {
    %c0_i32 = arith.constant 0 : i32
    %c0_i32_0 = arith.constant 0 : i32
    %c0_i32_1 = arith.constant 0 : i32
    return %c0_i32, %c0_i32_0 : i32, i32
  }
  func.func @transform_2(%arg0: i32) -> (i32, i32) {
    %c0_i32 = arith.constant 0 : i32
    %c0_i32_0 = arith.constant 0 : i32
    return %arg0, %c0_i32 : i32, i32
  }
}

module attributes {stable_mosaic.version = 11 : i64} {
  func.func @_l1_kernel(%arg0: i32, %arg1: memref<88x128xf32, #tpu.memory_space<vmem>>, %arg2: memref<88x128xf32, #tpu.memory_space<vmem>>, %arg3: memref<8x128xf32, #tpu.memory_space<vmem>>, %arg4: memref<8x128xf32, #tpu.memory_space<vmem>>) attributes {dimension_semantics = [#tpu.dimension_semantics<arbitrary>], iteration_bounds = array<i64: 1>, scalar_prefetch = 0 : i64, scratch_operands = 1 : i64, tpu.core_type = #tpu.core_type<tc>, window_params = [{transform_indices = @transform_0, window_bounds = array<i64: 88, 128>}, {transform_indices = @transform_1, window_bounds = array<i64: 88, 128>}, {pipeline_mode = #tpu.pipeline_mode<synchronous>, transform_indices = @transform_2, window_bounds = array<i64: 8, 128>}]} {
    %c0_i32 = arith.constant 0 : i32
    %0 = arith.cmpi eq, %arg0, %c0_i32 : i32
    %1 = arith.extui %0 : i1 to i32
    %c0_i32_0 = arith.constant 0 : i32
    %2 = arith.cmpi ne, %1, %c0_i32_0 : i32
    scf.if %2 {
      %cst_10 = arith.constant 0.000000e+00 : f32
      %15 = vector.broadcast %cst_10 : f32 to vector<8x128xf32>
      %c0_11 = arith.constant 0 : index
      %c0_12 = arith.constant 0 : index
      %16 = vector.load %arg4[%c0_11, %c0_12] : memref<8x128xf32, #tpu.memory_space<vmem>>, vector<8x128xf32>
      tpu.vector_store %arg4[%c0_11, %c0_12], %15 {strides = array<i32>} : memref<8x128xf32, #tpu.memory_space<vmem>>, vector<8x128xf32>,
    } else {
    }
    %c0 = arith.constant 0 : index
    %c0_1 = arith.constant 0 : index
    %3 = vector.load %arg1[%c0, %c0_1] : memref<88x128xf32, #tpu.memory_space<vmem>>, vector<88x128xf32>
    %c0_2 = arith.constant 0 : index
    %c0_3 = arith.constant 0 : index
    %4 = vector.load %arg2[%c0_2, %c0_3] : memref<88x128xf32, #tpu.memory_space<vmem>>, vector<88x128xf32>
    %5 = arith.subf %3, %4 : vector<88x128xf32>
    %6 = math.absf %5 : vector<88x128xf32>
    %c0_4 = arith.constant 0 : index
    %c0_5 = arith.constant 0 : index
    %7 = vector.load %arg4[%c0_4, %c0_5] : memref<8x128xf32, #tpu.memory_space<vmem>>, vector<8x128xf32>
    %8 = vector.shape_cast %6 : vector<88x128xf32> to vector<11x8x128xf32>
    %cst = arith.constant dense<0.000000e+00> : vector<8x128xf32>
    %9 = vector.multi_reduction <add>, %8, %cst [0] : vector<11x8x128xf32> to vector<8x128xf32>
    %10 = arith.addf %7, %9 : vector<8x128xf32>
    %c0_6 = arith.constant 0 : index
    %c0_7 = arith.constant 0 : index
    %11 = vector.load %arg4[%c0_6, %c0_7] : memref<8x128xf32, #tpu.memory_space<vmem>>, vector<8x128xf32>
    tpu.vector_store %arg4[%c0_6, %c0_7], %10 {strides = array<i32>} : memref<8x128xf32, #tpu.memory_space<vmem>>, vector<8x128xf32>,
    %c0_i32_8 = arith.constant 0 : i32
    %12 = arith.cmpi eq, %arg0, %c0_i32_8 : i32
    %13 = arith.extui %12 : i1 to i32
    %c0_i32_9 = arith.constant 0 : i32
    %14 = arith.cmpi ne, %13, %c0_i32_9 : i32
    scf.if %14 {
      %c0_10 = arith.constant 0 : index
      %c0_11 = arith.constant 0 : index
      %15 = vector.load %arg4[%c0_10, %c0_11] : memref<8x128xf32, #tpu.memory_space<vmem>>, vector<8x128xf32>
      %c0_12 = arith.constant 0 : index
      %c0_13 = arith.constant 0 : index
      %16 = vector.load %arg3[%c0_12, %c0_13] : memref<8x128xf32, #tpu.memory_space<vmem>>, vector<8x128xf32>
      tpu.vector_store %arg3[%c0_12, %c0_13], %15 {strides = array<i32>} : memref<8x128xf32, #tpu.memory_space<vmem>>, vector<8x128xf32>,
    } else {
    }
    return
  }
  func.func @transform_0(%arg0: i32) -> (i32, i32) {
    %c0_i32 = arith.constant 0 : i32
    %c0_i32_0 = arith.constant 0 : i32
    return %arg0, %c0_i32 : i32, i32
  }
  func.func @transform_1(%arg0: i32) -> (i32, i32) {
    %c0_i32 = arith.constant 0 : i32
    %c0_i32_0 = arith.constant 0 : i32
    return %arg0, %c0_i32 : i32, i32
  }
  func.func @transform_2(%arg0: i32) -> (i32, i32) {
    %c0_i32 = arith.constant 0 : i32
    %c0_i32_0 = arith.constant 0 : i32
    %c0_i32_1 = arith.constant 0 : i32
    return %c0_i32, %c0_i32_0 : i32, i32
  }
}

</mosaic_0001>

<llo_original>
// kernel: _lambda_.7
$region0: #{_lambda_.7}
  #allocation0 [shape = 'u32[]', space=smem, size = 0x4, offset = 0x4, fixed_abs, tag = 'smem constant byte address 0x4 - core index']
  #allocation1 [shape = 'u32[144,128]{1,0:T(1,128)}', space=vmem, size = 0x12000, scoped, tag = 'internal scratch']
  %s0 = inlined_call_operand.vmem [shape: bf16[4,2176], index: 0, kind: input, shape index: {}, may-alias: {0,1}]
  %s1 = inlined_call_operand.vmem [shape: bf16[4,2176], index: 1, kind: input, shape index: {}, may-alias: {0,1}]
  %s2 = inlined_call_operand.vmem [shape: bf16[16,256,256], index: 2, kind: input, shape index: {}]
  %s3 = inlined_call_operand.vmem [shape: bf16[16,4,2048], index: 3, kind: output, shape index: {}]
  %s4 = sld [smem:[#allocation0]]
  $region45: #{_lambda_.7} parent=0
    _
  %s6 = ssub.s32 1, %s4
  %s7 = scalar_select 0, %s6, %s4
  loop: start=0, step=1, limit=258
  $region2: #{_lambda_.7} parent=0 // loop_pre_header
    _
  $region3: #{_lambda_.7} parent=0 // loop_header
    %s9 = sphi 0, %s13
    %p10 = scmp.ge.s32.totalorder %s9, 258
    %s16 = sphi 0, %s35
    %s17 = sphi 0, %s31
    %s18 = sphi 0, %s27
    %s19 = sphi 0, %s16
    %s20 = sphi 0, %s17
    %s21 = sphi 0, %s18
    %s22 = sphi 0, %s19
    %s23 = sphi 0, %s20
    %s24 = sphi 0, %s21
    %s40 = sphi 0, %s42
    %s43 = sphi 0, %s40
    %s44 = sphi 0, %s43
    %s60 = sphi 0, %s44
    %s70 = sphi 0, %s72
    %s73 = sphi 0, %s70
    %s74 = sphi 0, %s73
    %s90 = sphi 0, %s74
    %s96 = sphi 0, %s98
    %s99 = sphi 0, %s96
    %s100 = sphi 0, %s99
    %s116 = sphi 0, %s100
    %s126 = sphi 0, %s128
    %s129 = sphi 0, %s126
    %s130 = sphi 0, %s129
    %s146 = sphi 0, %s130
  $region4: #{_lambda_.7} parent=0 // loop_header_branch
    %12 = sbr.rel (%p10) target = $region8
  $region5: #{_lambda_.7} parent=0 // loop_body
    %s14 = ssub.s32 %s9, 1
    %s15 = ssub.s32 %s9, 2
    %s25 = sadd.s32 1, %s18
    %p26 = scmp.ge.s32.totalorder %s25, 16
    %s27 = scalar_select %p26, 0, %s25
    %s28 = sadd.s32 1, %s17
    %s29 = scalar_select %p26, %s28, %s17
    %p30 = scmp.ge.s32.totalorder %s29, 1
    %s31 = scalar_select %p30, 0, %s29
    %s32 = sadd.s32 1, %s16
    %s33 = scalar_select %p30, %s32, %s16
    %p34 = scmp.ge.s32.totalorder %s33, 16
    %s35 = scalar_select %p34, 0, %s33
    %s36 = ssub.s32 %s17, %s31
    %s37 = ssub.s32 %s18, %s27
    %s38 = sor.u32 %s36, %s37
    %p39 = scmp.eq.s32.totalorder %s38, 0
    %s41 = sadd.s32 %s40, 1
    %s42 = scalar_select %p39, %s40, %s41
    %p45 = pneg %p39
    %p46 = scmp.eq.s32.totalorder %s9, 255
    %p47 = por %p45, %p46
    %p48 = scmp.ne.s32.totalorder %s40, %s43
    %p49 = scmp.eq.s32.totalorder %s9, 0
    %p50 = por %p48, %p49
    %p51 = scmp.ne.s32.totalorder %s40, %s43
    %p52 = scmp.eq.s32.totalorder %s14, 255
    %p53 = por %p51, %p52
    %p54 = scmp.ne.s32.totalorder %s43, %s44
    %p55 = scmp.eq.s32.totalorder %s14, 0
    %p56 = por %p54, %p55
    %p57 = scmp.ne.s32.totalorder %s43, %s44
    %p58 = scmp.eq.s32.totalorder %s15, 255
    %p59 = por %p57, %p58
    %p61 = scmp.ne.s32.totalorder %s44, %s60
    %p62 = scmp.eq.s32.totalorder %s15, 0
    %p63 = por %p61, %p62
    %s64 = sadd.s32 %s18, 1
    %s65 = sadd.s32 %s27, 1
    %s66 = ssub.s32 %s17, %s31
    %s67 = ssub.s32 %s64, %s65
    %s68 = sor.u32 %s66, %s67
    %p69 = scmp.eq.s32.totalorder %s68, 0
    %s71 = sadd.s32 %s70, 1
    %s72 = scalar_select %p69, %s70, %s71
    %p75 = pneg %p69
    %p76 = scmp.eq.s32.totalorder %s9, 255
    %p77 = por %p75, %p76
    %p78 = scmp.ne.s32.totalorder %s70, %s73
    %p79 = scmp.eq.s32.totalorder %s9, 0
    %p80 = por %p78, %p79
    %p81 = scmp.ne.s32.totalorder %s70, %s73
    %p82 = scmp.eq.s32.totalorder %s14, 255
    %p83 = por %p81, %p82
    %p84 = scmp.ne.s32.totalorder %s73, %s74
    %p85 = scmp.eq.s32.totalorder %s14, 0
    %p86 = por %p84, %p85
    %p87 = scmp.ne.s32.totalorder %s73, %s74
    %p88 = scmp.eq.s32.totalorder %s15, 255
    %p89 = por %p87, %p88
    %p91 = scmp.ne.s32.totalorder %s74, %s90
    %p92 = scmp.eq.s32.totalorder %s15, 0
    %p93 = por %p91, %p92
    %s94 = ssub.s32 %s16, %s35
    %p95 = scmp.eq.s32.totalorder %s94, 0
    %s97 = sadd.s32 %s96, 1
    %s98 = scalar_select %p95, %s96, %s97
    %p101 = pneg %p95
    %p102 = scmp.eq.s32.totalorder %s9, 255
    %p103 = por %p101, %p102
    %p104 = scmp.ne.s32.totalorder %s96, %s99
    %p105 = scmp.eq.s32.totalorder %s9, 0
    %p106 = por %p104, %p105
    %p107 = scmp.ne.s32.totalorder %s96, %s99
    %p108 = scmp.eq.s32.totalorder %s14, 255
    %p109 = por %p107, %p108
    %p110 = scmp.ne.s32.totalorder %s99, %s100
    %p111 = scmp.eq.s32.totalorder %s14, 0
    %p112 = por %p110, %p111
    %p113 = scmp.ne.s32.totalorder %s99, %s100
    %p114 = scmp.eq.s32.totalorder %s15, 255
    %p115 = por %p113, %p114
    %p117 = scmp.ne.s32.totalorder %s100, %s116
    %p118 = scmp.eq.s32.totalorder %s15, 0
    %p119 = por %p117, %p118
    %s120 = ssub.s32 %s16, %s35
    %s121 = ssub.s32 %s17, %s31
    %s122 = sor.u32 %s120, %s121
    %s123 = ssub.s32 %s18, %s27
    %s124 = sor.u32 %s122, %s123
    %p125 = scmp.eq.s32.totalorder %s124, 0
    %s127 = sadd.s32 %s126, 1
    %s128 = scalar_select %p125, %s126, %s127
    %p131 = pneg %p125
    %p132 = scmp.eq.s32.totalorder %s9, 255
    %p133 = por %p131, %p132
    %p134 = scmp.ne.s32.totalorder %s126, %s129
    %p135 = scmp.eq.s32.totalorder %s9, 0
    %p136 = por %p134, %p135
    %p137 = scmp.ne.s32.totalorder %s126, %s129
    %p138 = scmp.eq.s32.totalorder %s14, 255
    %p139 = por %p137, %p138
    %p140 = scmp.ne.s32.totalorder %s129, %s130
    %p141 = scmp.eq.s32.totalorder %s14, 0
    %p142 = por %p140, %p141
    %p143 = scmp.ne.s32.totalorder %s129, %s130
    %p144 = scmp.eq.s32.totalorder %s15, 255
    %p145 = por %p143, %p144
    %p147 = scmp.ne.s32.totalorder %s130, %s146
    %p148 = scmp.eq.s32.totalorder %s15, 0
    %p149 = por %p147, %p148
    %p150 = scmp.le.s32.totalorder 1, %s9
    %p151 = scmp.lt.s32.totalorder %s9, 257
    %p152 = pnand %p150, %p151
    %p153 = pneg %p152
    // Predicated region
    $region9: #{_lambda_.7} parent=5 // pred_check
      _
    $region10: #{_lambda_.7} parent=5 // pred_check_branch
      %155 = sbr.rel (%p152) target = $region12
    $region11: #{_lambda_.7} parent=5 // pred_region
      %s156 = ssub.s32 %s9, 1
    $region12: #{_lambda_.7} parent=5 // pred_fallthru
      _
    %p157 = scmp.lt.s32.totalorder %s9, 256
    // Predicated region
    $region13: #{_lambda_.7} parent=5 // pred_check
      %p158 = pneg %p157
    $region14: #{_lambda_.7} parent=5 // pred_check_branch
      %160 = sbr.rel (%p158) target = $region16
    $region15: #{_lambda_.7} parent=5 // pred_region
      // Predicated region
      $region17: #{_lambda_.7} parent=15 // pred_check
        %p161 = pneg %p50
      $region18: #{_lambda_.7} parent=15 // pred_check_branch
        %163 = sbr.rel (%p161) target = $region20
      $region19: #{_lambda_.7} parent=15 // pred_region
        %p164 = scmp.lt.s32.totalorder %s17, 0
        %s165 = scalar_select %p164, %s17, 0
        %p166 = scmp.lt.s32.totalorder %s18, 16
        %s167 = scalar_select %p166, %s18, 16
        %s168 = smul.addr %s165, 17
        %s169 = sadd.s32 %s167, %s168
        %s170 = smul.addr %s169, 2
        %s171 = scalar_lea.vmem %s0, %s170
      $region20: #{_lambda_.7} parent=15 // pred_fallthru
        _
      // Predicated region
      $region21: #{_lambda_.7} parent=15 // pred_check
        %p172 = pneg %p80
      $region22: #{_lambda_.7} parent=15 // pred_check_branch
        %174 = sbr.rel (%p172) target = $region24
      $region23: #{_lambda_.7} parent=15 // pred_region
        %s175 = sadd.s32 %s18, 1
        %p176 = scmp.lt.s32.totalorder %s17, 0
        %s177 = scalar_select %p176, %s17, 0
        %p178 = scmp.lt.s32.totalorder %s175, 16
        %s179 = scalar_select %p178, %s175, 16
        %s180 = smul.addr %s177, 17
        %s181 = sadd.s32 %s179, %s180
        %s182 = smul.addr %s181, 2
        %s183 = scalar_lea.vmem %s1, %s182
        %s184 = sadd.s32 %s18, 1
      $region24: #{_lambda_.7} parent=15 // pred_fallthru
        _
      // Predicated region
      $region25: #{_lambda_.7} parent=15 // pred_check
        %p185 = pneg %p106
      $region26: #{_lambda_.7} parent=15 // pred_check_branch
        %187 = sbr.rel (%p185) target = $region28
      $region27: #{_lambda_.7} parent=15 // pred_region
        %p188 = scmp.lt.s32.totalorder %s16, 15
        %s189 = scalar_select %p188, %s16, 15
        %s190 = smul.addr %s189, 64
        %s191 = smul.addr %s190, 4
        %s192 = scalar_lea.vmem %s2, %s191
      $region28: #{_lambda_.7} parent=15 // pred_fallthru
        _
    $region16: #{_lambda_.7} parent=5 // pred_fallthru
      _
    %p193 = scmp.le.s32.totalorder 1, %s9
    %p194 = scmp.lt.s32.totalorder %s9, 257
    %p195 = pnand %p193, %p194
    %p196 = pneg %p195
    // Predicated region
    $region29: #{_lambda_.7} parent=5 // pred_check
      _
    $region30: #{_lambda_.7} parent=5 // pred_check_branch
      %198 = sbr.rel (%p195) target = $region32
    $region31: #{_lambda_.7} parent=5 // pred_region
      %s199 = ssub.s32 %s9, 1
      %p200 = scmp.lt.s32.totalorder %s20, 0
      %s201 = scalar_select %p200, %s20, 0
      %p202 = scmp.lt.s32.totalorder %s21, 16
      %s203 = scalar_select %p202, %s21, 16
      %s204 = smul.addr %s201, 17
      %s205 = sadd.s32 %s203, %s204
      %s206 = smul.addr %s205, 2
      %s207 = scalar_lea.vmem %s0, %s206
      %p208 = pneg %p56
      %p209 = pneg %p53
      %s210 = sadd.s32 %s21, 1
      %p211 = scmp.lt.s32.totalorder %s20, 0
      %s212 = scalar_select %p211, %s20, 0
      %p213 = scmp.lt.s32.totalorder %s210, 16
      %s214 = scalar_select %p213, %s210, 16
      %s215 = smul.addr %s212, 17
      %s216 = sadd.s32 %s214, %s215
      %s217 = smul.addr %s216, 2
      %s218 = scalar_lea.vmem %s1, %s217
      %p219 = pneg %p86
      %p220 = pneg %p83
      %p221 = scmp.lt.s32.totalorder %s19, 15
      %s222 = scalar_select %p221, %s19, 15
      %s223 = smul.addr %s222, 64
      %s224 = smul.addr %s223, 4
      %s225 = scalar_lea.vmem %s2, %s224
      %p226 = pneg %p112
      %p227 = pneg %p109
      %p228 = pneg %p142
      %p229 = pneg %p139
      %p230 = scmp.lt.s32.totalorder %s19, 15
      %s231 = scalar_select %p230, %s19, 15
      %p232 = scmp.lt.s32.totalorder %s20, 0
      %s233 = scalar_select %p232, %s20, 0
      %p234 = scmp.lt.s32.totalorder %s21, 15
      %s235 = scalar_select %p234, %s21, 15
      %s236 = smul.addr %s233, 16
      %s237 = sadd.s32 %s235, %s236
      %s238 = smul.addr %s231, 16
      %s239 = sadd.s32 %s237, %s238
      %s240 = smul.addr %s239, 2
      %s241 = scalar_lea.vmem %s3, %s240
      %p242 = scmp.lt.s32.totalorder %s20, 0
      %s243 = scalar_select %p242, %s20, 0
      %p244 = scmp.lt.s32.totalorder %s21, 16
      %s245 = scalar_select %p244, %s21, 16
      %s246 = smul.addr %s243, 17
      %s247 = sadd.s32 %s245, %s246
      %s248 = smul.addr %s247, 2
      %s249 = scalar_lea.vmem %s0, %s248
      %s250 = sadd.s32 %s21, 1
      %p251 = scmp.lt.s32.totalorder %s20, 0
      %s252 = scalar_select %p251, %s20, 0
      %p253 = scmp.lt.s32.totalorder %s250, 16
      %s254 = scalar_select %p253, %s250, 16
      %s255 = smul.addr %s252, 17
      %s256 = sadd.s32 %s254, %s255
      %s257 = smul.addr %s256, 2
      %s258 = scalar_lea.vmem %s1, %s257
      %s259 = sadd.s32 %s21, 1
      %p260 = scmp.lt.s32.totalorder %s19, 15
      %s261 = scalar_select %p260, %s19, 15
      %s262 = smul.addr %s261, 64
      %s263 = smul.addr %s262, 4
      %s264 = scalar_lea.vmem %s2, %s263
      %p265 = scmp.lt.s32.totalorder %s19, 15
      %s266 = scalar_select %p265, %s19, 15
      %p267 = scmp.lt.s32.totalorder %s20, 0
      %s268 = scalar_select %p267, %s20, 0
      %p269 = scmp.lt.s32.totalorder %s21, 15
      %s270 = scalar_select %p269, %s21, 15
      %s271 = smul.addr %s268, 16
      %s272 = sadd.s32 %s270, %s271
      %s273 = smul.addr %s266, 16
      %s274 = sadd.s32 %s272, %s273
      %s275 = smul.addr %s274, 2
      %s276 = scalar_lea.vmem %s3, %s275
      %v277 = vld [vmem:[%s249] sm:$0x3]
      %v278 = vld [vmem:[%s258] sm:$0x3]
      %v279 = vld [vmem:[%s264] sm:$0xff]
      %v280 = vld [vmem:[%s264 + $0x8] sm:$0xff]
      %v281 = vld [vmem:[%s264 + $0x10] sm:$0xff]
      %v282 = vld [vmem:[%s264 + $0x18] sm:$0xff]
      %v283 = vld [vmem:[%s264 + $0x20] sm:$0xff]
      %v284 = vld [vmem:[%s264 + $0x28] sm:$0xff]
      %v285 = vld [vmem:[%s264 + $0x30] sm:$0xff]
      %v286 = vld [vmem:[%s264 + $0x38] sm:$0xff]
      %v287 = vld [vmem:[%s264 + $0x40] sm:$0xff]
      %v288 = vld [vmem:[%s264 + $0x48] sm:$0xff]
      %v289 = vld [vmem:[%s264 + $0x50] sm:$0xff]
      %v290 = vld [vmem:[%s264 + $0x58] sm:$0xff]
      %v291 = vld [vmem:[%s264 + $0x60] sm:$0xff]
      %v292 = vld [vmem:[%s264 + $0x68] sm:$0xff]
      %v293 = vld [vmem:[%s264 + $0x70] sm:$0xff]
      %v294 = vld [vmem:[%s264 + $0x78] sm:$0xff]
      %v295 = vld [vmem:[%s264 + $0x80] sm:$0xff]
      %v296 = vld [vmem:[%s264 + $0x88] sm:$0xff]
      %v297 = vld [vmem:[%s264 + $0x90] sm:$0xff]
      %v298 = vld [vmem:[%s264 + $0x98] sm:$0xff]
      %v299 = vld [vmem:[%s264 + $0xa0] sm:$0xff]
      %v300 = vld [vmem:[%s264 + $0xa8] sm:$0xff]
      %v301 = vld [vmem:[%s264 + $0xb0] sm:$0xff]
      %v302 = vld [vmem:[%s264 + $0xb8] sm:$0xff]
      %v303 = vld [vmem:[%s264 + $0xc0] sm:$0xff]
      %v304 = vld [vmem:[%s264 + $0xc8] sm:$0xff]
      %v305 = vld [vmem:[%s264 + $0xd0] sm:$0xff]
      %v306 = vld [vmem:[%s264 + $0xd8] sm:$0xff]
      %v307 = vld [vmem:[%s264 + $0xe0] sm:$0xff]
      %v308 = vld [vmem:[%s264 + $0xe8] sm:$0xff]
      %v309 = vld [vmem:[%s264 + $0xf0] sm:$0xff]
      %v310 = vld [vmem:[%s264 + $0xf8] sm:$0xff]
      %v343 = vunpack.c.l.b16 %v279
      %v344 = vunpack.c.h.b16 %v279
      %v345 = vunpack.c.l.b16 %v280
      %v346 = vunpack.c.h.b16 %v280
      %v347 = vunpack.c.l.b16 %v281
      %v348 = vunpack.c.h.b16 %v281
      %v349 = vunpack.c.l.b16 %v282
      %v350 = vunpack.c.h.b16 %v282
      %v351 = vunpack.c.l.b16 %v283
      %v352 = vunpack.c.h.b16 %v283
      %v353 = vunpack.c.l.b16 %v284
      %v354 = vunpack.c.h.b16 %v284
      %v355 = vunpack.c.l.b16 %v285
      %v356 = vunpack.c.h.b16 %v285
      %v357 = vunpack.c.l.b16 %v286
      %v358 = vunpack.c.h.b16 %v286
      %v359 = vunpack.c.l.b16 %v287
      %v360 = vunpack.c.h.b16 %v287
      %v361 = vunpack.c.l.b16 %v288
      %v362 = vunpack.c.h.b16 %v288
      %v363 = vunpack.c.l.b16 %v289
      %v364 = vunpack.c.h.b16 %v289
      %v365 = vunpack.c.l.b16 %v290
      %v366 = vunpack.c.h.b16 %v290
      %v367 = vunpack.c.l.b16 %v291
      %v368 = vunpack.c.h.b16 %v291
      %v369 = vunpack.c.l.b16 %v292
      %v370 = vunpack.c.h.b16 %v292
      %v371 = vunpack.c.l.b16 %v293
      %v372 = vunpack.c.h.b16 %v293
      %v373 = vunpack.c.l.b16 %v294
      %v374 = vunpack.c.h.b16 %v294
      %v375 = vunpack.c.l.b16 %v295
      %v376 = vunpack.c.h.b16 %v295
      %v377 = vunpack.c.l.b16 %v296
      %v378 = vunpack.c.h.b16 %v296
      %v379 = vunpack.c.l.b16 %v297
      %v380 = vunpack.c.h.b16 %v297
      %v381 = vunpack.c.l.b16 %v298
      %v382 = vunpack.c.h.b16 %v298
      %v383 = vunpack.c.l.b16 %v299
      %v384 = vunpack.c.h.b16 %v299
      %v385 = vunpack.c.l.b16 %v300
      %v386 = vunpack.c.h.b16 %v300
      %v387 = vunpack.c.l.b16 %v301
      %v388 = vunpack.c.h.b16 %v301
      %v389 = vunpack.c.l.b16 %v302
      %v390 = vunpack.c.h.b16 %v302
      %v391 = vunpack.c.l.b16 %v303
      %v392 = vunpack.c.h.b16 %v303
      %v393 = vunpack.c.l.b16 %v304
      %v394 = vunpack.c.h.b16 %v304
      %v395 = vunpack.c.l.b16 %v305
      %v396 = vunpack.c.h.b16 %v305
      %v397 = vunpack.c.l.b16 %v306
      %v398 = vunpack.c.h.b16 %v306
      %v399 = vunpack.c.l.b16 %v307
      %v400 = vunpack.c.h.b16 %v307
      %v401 = vunpack.c.l.b16 %v308
      %v402 = vunpack.c.h.b16 %v308
      %v403 = vunpack.c.l.b16 %v309
      %v404 = vunpack.c.h.b16 %v309
      %v405 = vunpack.c.l.b16 %v310
      %v406 = vunpack.c.h.b16 %v310
      %v407 = vpack.c.b16 %v345, %v343
      %v408 = vpack.c.b16 %v346, %v344
      %v409 = vpack.c.b16 %v349, %v347
      %v410 = vpack.c.b16 %v350, %v348
      %v411 = vpack.c.b16 %v353, %v351
      %v412 = vpack.c.b16 %v354, %v352
      %v413 = vpack.c.b16 %v357, %v355
      %v414 = vpack.c.b16 %v358, %v356
      %v415 = vpack.c.b16 %v361, %v359
      %v416 = vpack.c.b16 %v362, %v360
      %v417 = vpack.c.b16 %v365, %v363
      %v418 = vpack.c.b16 %v366, %v364
      %v419 = vpack.c.b16 %v369, %v367
      %v420 = vpack.c.b16 %v370, %v368
      %v421 = vpack.c.b16 %v373, %v371
      %v422 = vpack.c.b16 %v374, %v372
      %v423 = vpack.c.b16 %v377, %v375
      %v424 = vpack.c.b16 %v378, %v376
      %v425 = vpack.c.b16 %v381, %v379
      %v426 = vpack.c.b16 %v382, %v380
      %v427 = vpack.c.b16 %v385, %v383
      %v428 = vpack.c.b16 %v386, %v384
      %v429 = vpack.c.b16 %v389, %v387
      %v430 = vpack.c.b16 %v390, %v388
      %v431 = vpack.c.b16 %v393, %v391
      %v432 = vpack.c.b16 %v394, %v392
      %v433 = vpack.c.b16 %v397, %v395
      %v434 = vpack.c.b16 %v398, %v396
      %v435 = vpack.c.b16 %v401, %v399
      %v436 = vpack.c.b16 %v402, %v400
      %v437 = vpack.c.b16 %v405, %v403
      %v438 = vpack.c.b16 %v406, %v404
      %471 = vmatprep.subr.bf16.mxu0 %v408
      %472 = vmatpush1.bf16.msra.mxu0 %v407
      %473 = vmatprep.subr.bf16.mxu0 %v410
      %474 = vmatpush1.bf16.msra.mxu0 %v409
      %475 = vmatprep.subr.bf16.mxu0 %v412
      %476 = vmatpush1.bf16.msra.mxu0 %v411
      %477 = vmatprep.subr.bf16.mxu0 %v414
      %478 = vmatpush1.bf16.msra.mxu0 %v413
      %479 = vmatprep.subr.bf16.mxu0 %v416
      %480 = vmatpush1.bf16.msra.mxu0 %v415
      %481 = vmatprep.subr.bf16.mxu0 %v418
      %482 = vmatpush1.bf16.msra.mxu0 %v417
      %483 = vmatprep.subr.bf16.mxu0 %v420
      %484 = vmatpush1.bf16.msra.mxu0 %v419
      %485 = vmatprep.subr.bf16.mxu0 %v422
      %486 = vmatpush1.bf16.msra.mxu0 %v421
      %487 = vmatprep.subr.bf16.mxu0 %v424
      %488 = vmatpush1.bf16.msra.mxu0 %v423
      %489 = vmatprep.subr.bf16.mxu0 %v426
      %490 = vmatpush1.bf16.msra.mxu0 %v425
      %491 = vmatprep.subr.bf16.mxu0 %v428
      %492 = vmatpush1.bf16.msra.mxu0 %v427
      %493 = vmatprep.subr.bf16.mxu0 %v430
      %494 = vmatpush1.bf16.msra.mxu0 %v429
      %495 = vmatprep.subr.bf16.mxu0 %v432
      %496 = vmatpush1.bf16.msra.mxu0 %v431
      %497 = vmatprep.subr.bf16.mxu0 %v434
      %498 = vmatpush1.bf16.msra.mxu0 %v433
      %499 = vmatprep.subr.bf16.mxu0 %v436
      %500 = vmatpush1.bf16.msra.mxu0 %v435
      %501 = vmatprep.subr.bf16.mxu0 %v438
      %502 = vmatpush1.bf16.msra.mxu0 %v437
      %503 = vmatprep.mubr.bf16.mxu0 %v278
      %504 = vmatmul.mubr.bf16.gmra.mrb[0].mxu0 %v277
      %v505 = vpop.f32.mrb[0].mxu0
      %v506 = vadd.f32 0.0, %v505
      %v507 = vpop.f32.mrb[0].mxu0
      %v508 = vadd.f32 0.0, %v507
      %v509 = vpop.f32.mrb[0].mxu0
      %v510 = vpop.f32.mrb[0].mxu0
      %511 = vdwg.mxu0
      %v512 = vmul.f32 %v506, %v506
      %v513 = vmul.f32 %v508, %v508
      %v514 = vadd.f32 %v512, %v513
      %v515 = vadd.f32 %v514, 1e-12
      %v516 = vrsqrt.pop %v515
      %v517 = vmul.f32 %v515, %v516
      %vm518 = vcmp.eq.f32.partialorder %v515, inf
      %v519 = vsel %vm518, %v515, %v517
      %vm520 = vcmp.eq.f32.partialorder %v515, 0.0
      %v521 = vand.u32 %v515, 2147483648
      %v522 = vsel %vm520, %v521, %v519
      %v523 = vpack.c.bf16 %v522, %v522
      %524 = vst [vmem:[%s276] sm:$0x3] %v523
      %p525 = scmp.lt.s32.totalorder %s19, 15
      %s526 = scalar_select %p525, %s19, 15
      %p527 = scmp.lt.s32.totalorder %s20, 0
      %s528 = scalar_select %p527, %s20, 0
      %p529 = scmp.lt.s32.totalorder %s21, 15
      %s530 = scalar_select %p529, %s21, 15
      %s531 = smul.addr %s528, 16
      %s532 = sadd.s32 %s530, %s531
      %s533 = smul.addr %s526, 16
      %s534 = sadd.s32 %s532, %s533
      %s535 = smul.addr %s534, 2
      %s536 = scalar_lea.vmem %s3, %s535
      // Predicated region
      $region33: #{_lambda_.7} parent=31 // pred_check
        %p537 = pneg %p139
      $region34: #{_lambda_.7} parent=31 // pred_check_branch
        %539 = sbr.rel (%p537) target = $region36
      $region35: #{_lambda_.7} parent=31 // pred_region
        _
      $region36: #{_lambda_.7} parent=31 // pred_fallthru
        _
    $region32: #{_lambda_.7} parent=5 // pred_fallthru
      _
    %p540 = scmp.le.s32.totalorder 2, %s9
    // Predicated region
    $region37: #{_lambda_.7} parent=5 // pred_check
      %p541 = pneg %p540
    $region38: #{_lambda_.7} parent=5 // pred_check_branch
      %543 = sbr.rel (%p541) target = $region40
    $region39: #{_lambda_.7} parent=5 // pred_region
      %s544 = ssub.s32 %s9, 2
      // Predicated region
      $region41: #{_lambda_.7} parent=39 // pred_check
        %p545 = pneg %p145
      $region42: #{_lambda_.7} parent=39 // pred_check_branch
        %547 = sbr.rel (%p545) target = $region44
      $region43: #{_lambda_.7} parent=39 // pred_region
        %p548 = scmp.lt.s32.totalorder %s22, 15
        %s549 = scalar_select %p548, %s22, 15
        %p550 = scmp.lt.s32.totalorder %s23, 0
        %s551 = scalar_select %p550, %s23, 0
        %p552 = scmp.lt.s32.totalorder %s24, 15
        %s553 = scalar_select %p552, %s24, 15
        %s554 = smul.addr %s551, 16
        %s555 = sadd.s32 %s553, %s554
        %s556 = smul.addr %s549, 16
        %s557 = sadd.s32 %s555, %s556
        %s558 = smul.addr %s557, 2
        %s559 = scalar_lea.vmem %s3, %s558
      $region44: #{_lambda_.7} parent=39 // pred_fallthru
        _
    $region40: #{_lambda_.7} parent=5 // pred_fallthru
      _
  $region6: #{_lambda_.7} parent=0 // loop_footer
    %s13 = sadd.s32 1, %s9
  $region7: #{_lambda_.7} parent=0 // loop_footer_branch
    %8 = sbr.rel target = $region3
  $region8: #{_lambda_.7} parent=0 // loop_exit
    _

// kernel: _lambda_.9
$region0: #{_lambda_.9}
  #allocation0 [shape = 'u32[]', space=smem, size = 0x4, offset = 0x4, fixed_abs, tag = 'smem constant byte address 0x4 - core index']
  #allocation1 [shape = 'u32[144,128]{1,0:T(1,128)}', space=vmem, size = 0x12000, scoped, tag = 'internal scratch']
  %s0 = inlined_call_operand.vmem [shape: bf16[64,2176], index: 0, kind: input, shape index: {}, may-alias: {0,1}]
  %s1 = inlined_call_operand.vmem [shape: bf16[64,2176], index: 1, kind: input, shape index: {}, may-alias: {0,1}]
  %s2 = inlined_call_operand.vmem [shape: bf16[4,256,256], index: 2, kind: input, shape index: {}]
  %s3 = inlined_call_operand.vmem [shape: bf16[4,64,2048], index: 3, kind: output, shape index: {}]
  %s4 = sld [smem:[#allocation0]]
  $region164: #{_lambda_.9} parent=0
    _
  %s6 = ssub.s32 1, %s4
  %s7 = scalar_select 0, %s6, %s4
  $region1: #{_lambda_.9} parent=0
    #allocation2 [shape = 'u8[16384]{0}', space=vmem, size = 0x4000, scoped, tag = 'input window, operand 0']
    #allocation3 [shape = 'u8[16384]{0}', space=vmem, size = 0x4000, scoped, tag = 'input window, operand 1']
    #allocation4 [shape = 'u8[16384]{0}', space=vmem, size = 0x4000, scoped, tag = 'output window, operand 0']
    loop: start=0, step=1, limit=130
    $region2: #{_lambda_.9} parent=1 // loop_pre_header
      _
    $region3: #{_lambda_.9} parent=1 // loop_header
      %s9 = sphi 0, %s13
      %p10 = scmp.ge.s32.totalorder %s9, 130
      %s16 = sphi 0, %s35
      %s17 = sphi 0, %s31
      %s18 = sphi 0, %s27
      %s19 = sphi 0, %s16
      %s20 = sphi 0, %s17
      %s21 = sphi 0, %s18
      %s22 = sphi 0, %s19
      %s23 = sphi 0, %s20
      %s24 = sphi 0, %s21
      %s40 = sphi 0, %s42
      %s43 = sphi 0, %s40
      %s44 = sphi 0, %s43
      %s60 = sphi 0, %s44
      %s70 = sphi 0, %s72
      %s73 = sphi 0, %s70
      %s74 = sphi 0, %s73
      %s90 = sphi 0, %s74
      %s96 = sphi 0, %s98
      %s99 = sphi 0, %s96
      %s100 = sphi 0, %s99
      %s116 = sphi 0, %s100
      %s126 = sphi 0, %s128
      %s129 = sphi 0, %s126
      %s130 = sphi 0, %s129
      %s146 = sphi 0, %s130
    $region4: #{_lambda_.9} parent=1 // loop_header_branch
      %12 = sbr.rel (%p10) target = $region8
    $region5: #{_lambda_.9} parent=1 // loop_body
      %s14 = ssub.s32 %s9, 1
      %s15 = ssub.s32 %s9, 2
      %s25 = sadd.s32 1, %s18
      %p26 = scmp.ge.s32.totalorder %s25, 16
      %s27 = scalar_select %p26, 0, %s25
      %s28 = sadd.s32 1, %s17
      %s29 = scalar_select %p26, %s28, %s17
      %p30 = scmp.ge.s32.totalorder %s29, 2
      %s31 = scalar_select %p30, 0, %s29
      %s32 = sadd.s32 1, %s16
      %s33 = scalar_select %p30, %s32, %s16
      %p34 = scmp.ge.s32.totalorder %s33, 4
      %s35 = scalar_select %p34, 0, %s33
      %s36 = ssub.s32 %s17, %s31
      %s37 = ssub.s32 %s18, %s27
      %s38 = sor.u32 %s36, %s37
      %p39 = scmp.eq.s32.totalorder %s38, 0
      %s41 = sadd.s32 %s40, 1
      %s42 = scalar_select %p39, %s40, %s41
      %p45 = pneg %p39
      %p46 = scmp.eq.s32.totalorder %s9, 127
      %p47 = por %p45, %p46
      %p48 = scmp.ne.s32.totalorder %s40, %s43
      %p49 = scmp.eq.s32.totalorder %s9, 0
      %p50 = por %p48, %p49
      %p51 = scmp.ne.s32.totalorder %s40, %s43
      %p52 = scmp.eq.s32.totalorder %s14, 127
      %p53 = por %p51, %p52
      %p54 = scmp.ne.s32.totalorder %s43, %s44
      %p55 = scmp.eq.s32.totalorder %s14, 0
      %p56 = por %p54, %p55
      %p57 = scmp.ne.s32.totalorder %s43, %s44
      %p58 = scmp.eq.s32.totalorder %s15, 127
      %p59 = por %p57, %p58
      %p61 = scmp.ne.s32.totalorder %s44, %s60
      %p62 = scmp.eq.s32.totalorder %s15, 0
      %p63 = por %p61, %p62
      %s64 = sadd.s32 %s18, 1
      %s65 = sadd.s32 %s27, 1
      %s66 = ssub.s32 %s17, %s31
      %s67 = ssub.s32 %s64, %s65
      %s68 = sor.u32 %s66, %s67
      %p69 = scmp.eq.s32.totalorder %s68, 0
      %s71 = sadd.s32 %s70, 1
      %s72 = scalar_select %p69, %s70, %s71
      %p75 = pneg %p69
      %p76 = scmp.eq.s32.totalorder %s9, 127
      %p77 = por %p75, %p76
      %p78 = scmp.ne.s32.totalorder %s70, %s73
      %p79 = scmp.eq.s32.totalorder %s9, 0
      %p80 = por %p78, %p79
      %p81 = scmp.ne.s32.totalorder %s70, %s73
      %p82 = scmp.eq.s32.totalorder %s14, 127
      %p83 = por %p81, %p82
      %p84 = scmp.ne.s32.totalorder %s73, %s74
      %p85 = scmp.eq.s32.totalorder %s14, 0
      %p86 = por %p84, %p85
      %p87 = scmp.ne.s32.totalorder %s73, %s74
      %p88 = scmp.eq.s32.totalorder %s15, 127
      %p89 = por %p87, %p88
      %p91 = scmp.ne.s32.totalorder %s74, %s90
      %p92 = scmp.eq.s32.totalorder %s15, 0
      %p93 = por %p91, %p92
      %s94 = ssub.s32 %s16, %s35
      %p95 = scmp.eq.s32.totalorder %s94, 0
      %s97 = sadd.s32 %s96, 1
      %s98 = scalar_select %p95, %s96, %s97
      %p101 = pneg %p95
      %p102 = scmp.eq.s32.totalorder %s9, 127
      %p103 = por %p101, %p102
      %p104 = scmp.ne.s32.totalorder %s96, %s99
      %p105 = scmp.eq.s32.totalorder %s9, 0
      %p106 = por %p104, %p105
      %p107 = scmp.ne.s32.totalorder %s96, %s99
      %p108 = scmp.eq.s32.totalorder %s14, 127
      %p109 = por %p107, %p108
      %p110 = scmp.ne.s32.totalorder %s99, %s100
      %p111 = scmp.eq.s32.totalorder %s14, 0
      %p112 = por %p110, %p111
      %p113 = scmp.ne.s32.totalorder %s99, %s100
      %p114 = scmp.eq.s32.totalorder %s15, 127
      %p115 = por %p113, %p114
      %p117 = scmp.ne.s32.totalorder %s100, %s116
      %p118 = scmp.eq.s32.totalorder %s15, 0
      %p119 = por %p117, %p118
      %s120 = ssub.s32 %s16, %s35
      %s121 = ssub.s32 %s17, %s31
      %s122 = sor.u32 %s120, %s121
      %s123 = ssub.s32 %s18, %s27
      %s124 = sor.u32 %s122, %s123
      %p125 = scmp.eq.s32.totalorder %s124, 0
      %s127 = sadd.s32 %s126, 1
      %s128 = scalar_select %p125, %s126, %s127
      %p131 = pneg %p125
      %p132 = scmp.eq.s32.totalorder %s9, 127
      %p133 = por %p131, %p132
      %p134 = scmp.ne.s32.totalorder %s126, %s129
      %p135 = scmp.eq.s32.totalorder %s9, 0
      %p136 = por %p134, %p135
      %p137 = scmp.ne.s32.totalorder %s126, %s129
      %p138 = scmp.eq.s32.totalorder %s14, 127
      %p139 = por %p137, %p138
      %p140 = scmp.ne.s32.totalorder %s129, %s130
      %p141 = scmp.eq.s32.totalorder %s14, 0
      %p142 = por %p140, %p141
      %p143 = scmp.ne.s32.totalorder %s129, %s130
      %p144 = scmp.eq.s32.totalorder %s15, 127
      %p145 = por %p143, %p144
      %p147 = scmp.ne.s32.totalorder %s130, %s146
      %p148 = scmp.eq.s32.totalorder %s15, 0
      %p149 = por %p147, %p148
      %p150 = scmp.le.s32.totalorder 1, %s9
      %p151 = scmp.lt.s32.totalorder %s9, 129
      %p152 = pnand %p150, %p151
      %p153 = pneg %p152
      // Predicated region
      $region9: #{_lambda_.9} parent=5 // pred_check
        _
      $region10: #{_lambda_.9} parent=5 // pred_check_branch
        %155 = sbr.rel (%p152) target = $region12
      $region11: #{_lambda_.9} parent=5 // pred_region
        %s156 = ssub.s32 %s9, 1
      $region12: #{_lambda_.9} parent=5 // pred_fallthru
        _
      %p157 = scmp.lt.s32.totalorder %s9, 128
      // Predicated region
      $region13: #{_lambda_.9} parent=5 // pred_check
        %p158 = pneg %p157
      $region14: #{_lambda_.9} parent=5 // pred_check_branch
        %160 = sbr.rel (%p158) target = $region16
      $region15: #{_lambda_.9} parent=5 // pred_region
        // Predicated region
        $region17: #{_lambda_.9} parent=15 // pred_check
          %p161 = pneg %p50
        $region18: #{_lambda_.9} parent=15 // pred_check_branch
          %163 = sbr.rel (%p161) target = $region20
        $region19: #{_lambda_.9} parent=15 // pred_region
          %s164 = sand.u32 %s40, 1
          %s165 = sand.u32 %s40, 1
          %s166 = smul.addr %s165, 16
          %s167 = scalar_lea.vmem [#allocation2], %s166
          %s168 = smul.u32 4, %s17
          %s169 = smul.addr %s168, 17
          %s170 = sadd.s32 %s18, %s169
          %s171 = smul.addr %s170, 4
          %s172 = scalar_lea.vmem %s0, %s171
          // Predicated region
          $region21: #{_lambda_.9} parent=19 // pred_check
            _
          $region22: #{_lambda_.9} parent=19 // pred_check_branch
            %174 = sbr.rel (0) target = $region24
          $region23: #{_lambda_.9} parent=19 // pred_region
            // Predicated region
            $region25: #{_lambda_.9} parent=23 // pred_check
              _
            $region26: #{_lambda_.9} parent=23 // pred_check_branch
              %176 = sbr.rel target = $region28
            $region27: #{_lambda_.9} parent=23 // pred_region
              // Predicated region
              $region40: #{_lambda_.9} parent=27 // pred_check
                _
              $region41: #{_lambda_.9} parent=27 // pred_check_branch
                %197 = sbr.rel (0) target = $region43
              $region42: #{_lambda_.9} parent=27 // pred_region
                loop: start=0, step=1, limit=1
                $region44: #{_lambda_.9} parent=42 // loop_pre_header
                  _
                $region45: #{_lambda_.9} parent=42 // loop_header
                  %s199 = sphi 0, %s203
                  %p200 = scmp.ge.s32.totalorder %s199, 1
                  %s204 = sphi %s172, %s172
                  %s205 = sphi %s167, %s167
                $region46: #{_lambda_.9} parent=42 // loop_header_branch
                  %202 = sbr.rel (%p200) target = $region50
                $region47: #{_lambda_.9} parent=42 // loop_body
                  _
                $region48: #{_lambda_.9} parent=42 // loop_footer
                  %s203 = sadd.s32 1, %s199
                $region49: #{_lambda_.9} parent=42 // loop_footer_branch
                  %198 = sbr.rel target = $region45
                $region50: #{_lambda_.9} parent=42 // loop_exit
                  _
                loop: start=0, step=1, limit=1
                $region51: #{_lambda_.9} parent=42 // loop_pre_header
                  _
                $region52: #{_lambda_.9} parent=42 // loop_header
                  %s208 = sphi 0, %s212
                  %p209 = scmp.ge.s32.totalorder %s208, 1
                  %s213 = sphi %s172, %s172
                  %s214 = sphi %s167, %s167
                $region53: #{_lambda_.9} parent=42 // loop_header_branch
                  %211 = sbr.rel (%p209) target = $region57
                $region54: #{_lambda_.9} parent=42 // loop_body
                  %v215 = vld [vmem:[%s213] sm:$0xf]
                  %216 = vst [vmem:[%s214] sm:$0xf] %v215
                  %v217 = vld [vmem:[%s213 + $0x44] sm:$0xf]
                  %218 = vst [vmem:[%s214 + $0x4] sm:$0xf] %v217
                  %v219 = vld [vmem:[%s213 + $0x88] sm:$0xf]
                  %220 = vst [vmem:[%s214 + $0x8] sm:$0xf] %v219
                  %v221 = vld [vmem:[%s213 + $0xcc] sm:$0xf]
                  %222 = vst [vmem:[%s214 + $0xc] sm:$0xf] %v221
                $region55: #{_lambda_.9} parent=42 // loop_footer
                  %s212 = sadd.s32 1, %s208
                $region56: #{_lambda_.9} parent=42 // loop_footer_branch
                  %207 = sbr.rel target = $region52
                $region57: #{_lambda_.9} parent=42 // loop_exit
                  _
              $region43: #{_lambda_.9} parent=27 // pred_fallthru
                _
            $region28: #{_lambda_.9} parent=23 // pred_fallthru
              _
            // Predicated region
            $region29: #{_lambda_.9} parent=23 // pred_check
              _
            $region30: #{_lambda_.9} parent=23 // pred_check_branch
              %178 = sbr.rel (0) target = $region32
            $region31: #{_lambda_.9} parent=23 // pred_region
              loop: start=0, step=1, limit=1
              $region33: #{_lambda_.9} parent=31 // loop_pre_header
                _
              $region34: #{_lambda_.9} parent=31 // loop_header
                %s181 = sphi 0, %s185
                %p182 = scmp.ge.s32.totalorder %s181, 1
                %s186 = sphi %s172, %s172
                %s187 = sphi %s167, %s167
              $region35: #{_lambda_.9} parent=31 // loop_header_branch
                %184 = sbr.rel (%p182) target = $region39
              $region36: #{_lambda_.9} parent=31 // loop_body
                %v188 = vld [vmem:[%s186] sm:$0xf]
                %189 = vst [vmem:[%s187] sm:$0xf] %v188
                %v190 = vld [vmem:[%s186 + $0x44] sm:$0xf]
                %191 = vst [vmem:[%s187 + $0x4] sm:$0xf] %v190
                %v192 = vld [vmem:[%s186 + $0x88] sm:$0xf]
                %193 = vst [vmem:[%s187 + $0x8] sm:$0xf] %v192
                %v194 = vld [vmem:[%s186 + $0xcc] sm:$0xf]
                %195 = vst [vmem:[%s187 + $0xc] sm:$0xf] %v194
              $region37: #{_lambda_.9} parent=31 // loop_footer
                %s185 = sadd.s32 1, %s181
              $region38: #{_lambda_.9} parent=31 // loop_footer_branch
                %180 = sbr.rel target = $region34
              $region39: #{_lambda_.9} parent=31 // loop_exit
                _
            $region32: #{_lambda_.9} parent=23 // pred_fallthru
              _
          $region24: #{_lambda_.9} parent=19 // pred_fallthru
            _
          %223 = vnop
        $region20: #{_lambda_.9} parent=15 // pred_fallthru
          _
        // Predicated region
        $region58: #{_lambda_.9} parent=15 // pred_check
          %p224 = pneg %p80
        $region59: #{_lambda_.9} parent=15 // pred_check_branch
          %226 = sbr.rel (%p224) target = $region61
        $region60: #{_lambda_.9} parent=15 // pred_region
          %s227 = sand.u32 %s70, 1
          %s228 = sand.u32 %s70, 1
          %s229 = smul.addr %s228, 16
          %s230 = scalar_lea.vmem [#allocation3], %s229
          %s231 = sadd.s32 %s18, 1
          %s232 = smul.u32 4, %s17
          %s233 = smul.addr %s232, 17
          %s234 = sadd.s32 %s231, %s233
          %s235 = smul.addr %s234, 4
          %s236 = scalar_lea.vmem %s1, %s235
          // Predicated region
          $region62: #{_lambda_.9} parent=60 // pred_check
            _
          $region63: #{_lambda_.9} parent=60 // pred_check_branch
            %238 = sbr.rel (0) target = $region65
          $region64: #{_lambda_.9} parent=60 // pred_region
            // Predicated region
            $region66: #{_lambda_.9} parent=64 // pred_check
              _
            $region67: #{_lambda_.9} parent=64 // pred_check_branch
              %240 = sbr.rel target = $region69
            $region68: #{_lambda_.9} parent=64 // pred_region
              // Predicated region
              $region81: #{_lambda_.9} parent=68 // pred_check
                _
              $region82: #{_lambda_.9} parent=68 // pred_check_branch
                %261 = sbr.rel (0) target = $region84
              $region83: #{_lambda_.9} parent=68 // pred_region
                loop: start=0, step=1, limit=1
                $region85: #{_lambda_.9} parent=83 // loop_pre_header
                  _
                $region86: #{_lambda_.9} parent=83 // loop_header
                  %s263 = sphi 0, %s267
                  %p264 = scmp.ge.s32.totalorder %s263, 1
                  %s268 = sphi %s236, %s236
                  %s269 = sphi %s230, %s230
                $region87: #{_lambda_.9} parent=83 // loop_header_branch
                  %266 = sbr.rel (%p264) target = $region91
                $region88: #{_lambda_.9} parent=83 // loop_body
                  _
                $region89: #{_lambda_.9} parent=83 // loop_footer
                  %s267 = sadd.s32 1, %s263
                $region90: #{_lambda_.9} parent=83 // loop_footer_branch
                  %262 = sbr.rel target = $region86
                $region91: #{_lambda_.9} parent=83 // loop_exit
                  _
                loop: start=0, step=1, limit=1
                $region92: #{_lambda_.9} parent=83 // loop_pre_header
                  _
                $region93: #{_lambda_.9} parent=83 // loop_header
                  %s272 = sphi 0, %s276
                  %p273 = scmp.ge.s32.totalorder %s272, 1
                  %s277 = sphi %s236, %s236
                  %s278 = sphi %s230, %s230
                $region94: #{_lambda_.9} parent=83 // loop_header_branch
                  %275 = sbr.rel (%p273) target = $region98
                $region95: #{_lambda_.9} parent=83 // loop_body
                  %v279 = vld [vmem:[%s277] sm:$0xf]
                  %280 = vst [vmem:[%s278] sm:$0xf] %v279
                  %v281 = vld [vmem:[%s277 + $0x44] sm:$0xf]
                  %282 = vst [vmem:[%s278 + $0x4] sm:$0xf] %v281
                  %v283 = vld [vmem:[%s277 + $0x88] sm:$0xf]
                  %284 = vst [vmem:[%s278 + $0x8] sm:$0xf] %v283
                  %v285 = vld [vmem:[%s277 + $0xcc] sm:$0xf]
                  %286 = vst [vmem:[%s278 + $0xc] sm:$0xf] %v285
                $region96: #{_lambda_.9} parent=83 // loop_footer
                  %s276 = sadd.s32 1, %s272
                $region97: #{_lambda_.9} parent=83 // loop_footer_branch
                  %271 = sbr.rel target = $region93
                $region98: #{_lambda_.9} parent=83 // loop_exit
                  _
              $region84: #{_lambda_.9} parent=68 // pred_fallthru
                _
            $region69: #{_lambda_.9} parent=64 // pred_fallthru
              _
            // Predicated region
            $region70: #{_lambda_.9} parent=64 // pred_check
              _
            $region71: #{_lambda_.9} parent=64 // pred_check_branch
              %242 = sbr.rel (0) target = $region73
            $region72: #{_lambda_.9} parent=64 // pred_region
              loop: start=0, step=1, limit=1
              $region74: #{_lambda_.9} parent=72 // loop_pre_header
                _
              $region75: #{_lambda_.9} parent=72 // loop_header
                %s245 = sphi 0, %s249
                %p246 = scmp.ge.s32.totalorder %s245, 1
                %s250 = sphi %s236, %s236
                %s251 = sphi %s230, %s230
              $region76: #{_lambda_.9} parent=72 // loop_header_branch
                %248 = sbr.rel (%p246) target = $region80
              $region77: #{_lambda_.9} parent=72 // loop_body
                %v252 = vld [vmem:[%s250] sm:$0xf]
                %253 = vst [vmem:[%s251] sm:$0xf] %v252
                %v254 = vld [vmem:[%s250 + $0x44] sm:$0xf]
                %255 = vst [vmem:[%s251 + $0x4] sm:$0xf] %v254
                %v256 = vld [vmem:[%s250 + $0x88] sm:$0xf]
                %257 = vst [vmem:[%s251 + $0x8] sm:$0xf] %v256
                %v258 = vld [vmem:[%s250 + $0xcc] sm:$0xf]
                %259 = vst [vmem:[%s251 + $0xc] sm:$0xf] %v258
              $region78: #{_lambda_.9} parent=72 // loop_footer
                %s249 = sadd.s32 1, %s245
              $region79: #{_lambda_.9} parent=72 // loop_footer_branch
                %244 = sbr.rel target = $region75
              $region80: #{_lambda_.9} parent=72 // loop_exit
                _
            $region73: #{_lambda_.9} parent=64 // pred_fallthru
              _
          $region65: #{_lambda_.9} parent=60 // pred_fallthru
            _
          %287 = vnop
        $region61: #{_lambda_.9} parent=15 // pred_fallthru
          _
        // Predicated region
        $region99: #{_lambda_.9} parent=15 // pred_check
          %p288 = pneg %p106
        $region100: #{_lambda_.9} parent=15 // pred_check_branch
          %290 = sbr.rel (%p288) target = $region102
        $region101: #{_lambda_.9} parent=15 // pred_region
          %p291 = scmp.lt.s32.totalorder %s16, 3
          %s292 = scalar_select %p291, %s16, 3
          %s293 = smul.addr %s292, 64
          %s294 = smul.addr %s293, 4
          %s295 = scalar_lea.vmem %s2, %s294
        $region102: #{_lambda_.9} parent=15 // pred_fallthru
          _
      $region16: #{_lambda_.9} parent=5 // pred_fallthru
        _
      %p296 = scmp.le.s32.totalorder 1, %s9
      %p297 = scmp.lt.s32.totalorder %s9, 129
      %p298 = pnand %p296, %p297
      %p299 = pneg %p298
      // Predicated region
      $region103: #{_lambda_.9} parent=5 // pred_check
        _
      $region104: #{_lambda_.9} parent=5 // pred_check_branch
        %301 = sbr.rel (%p298) target = $region106
      $region105: #{_lambda_.9} parent=5 // pred_region
        %s302 = ssub.s32 %s9, 1
        %s303 = sand.u32 %s43, 1
        %s304 = sand.u32 %s43, 1
        %s305 = smul.addr %s304, 16
        %s306 = scalar_lea.vmem [#allocation2], %s305
        // Predicated region
        $region107: #{_lambda_.9} parent=105 // pred_check
          %p307 = pneg %p56
        $region108: #{_lambda_.9} parent=105 // pred_check_branch
          %309 = sbr.rel (%p307) target = $region110
        $region109: #{_lambda_.9} parent=105 // pred_region
          _
        $region110: #{_lambda_.9} parent=105 // pred_fallthru
          _
        %s310 = sand.u32 %s73, 1
        %s311 = sand.u32 %s73, 1
        %s312 = smul.addr %s311, 16
        %s313 = scalar_lea.vmem [#allocation3], %s312
        // Predicated region
        $region111: #{_lambda_.9} parent=105 // pred_check
          %p314 = pneg %p86
        $region112: #{_lambda_.9} parent=105 // pred_check_branch
          %316 = sbr.rel (%p314) target = $region114
        $region113: #{_lambda_.9} parent=105 // pred_region
          _
        $region114: #{_lambda_.9} parent=105 // pred_fallthru
          _
        %s317 = sand.u32 %s43, 1
        %s318 = sand.u32 %s43, 1
        %s319 = smul.addr %s318, 16
        %s320 = scalar_lea.vmem [#allocation2], %s319
        %p321 = pneg %p56
        %p322 = pneg %p53
        %s323 = sand.u32 %s73, 1
        %s324 = sand.u32 %s73, 1
        %s325 = smul.addr %s324, 16
        %s326 = scalar_lea.vmem [#allocation3], %s325
        %p327 = pneg %p86
        %p328 = pneg %p83
        %p329 = scmp.lt.s32.totalorder %s19, 3
        %s330 = scalar_select %p329, %s19, 3
        %s331 = smul.addr %s330, 64
        %s332 = smul.addr %s331, 4
        %s333 = scalar_lea.vmem %s2, %s332
        %p334 = pneg %p112
        %p335 = pneg %p109
        %p336 = pneg %p142
        %p337 = pneg %p139
        %s338 = sand.u32 %s129, 1
        %s339 = sand.u32 %s129, 1
        %s340 = smul.addr %s339, 16
        %s341 = scalar_lea.vmem [#allocation4], %s340
        %s342 = smul.u32 4, %s20
        %s343 = sadd.s32 %s21, 1
        %s344 = smul.u32 4, %s20
        %p345 = scmp.lt.s32.totalorder %s19, 3
        %s346 = scalar_select %p345, %s19, 3
        %s347 = smul.addr %s346, 64
        %s348 = smul.addr %s347, 4
        %s349 = scalar_lea.vmem %s2, %s348
        %s350 = smul.u32 4, %s20
        %v351 = vld [vmem:[%s306] sm:$0xf]
        %v352 = vld [vmem:[%s306 + $0x4] sm:$0xf]
        %v353 = vld [vmem:[%s306 + $0x8] sm:$0xf]
        %v354 = vld [vmem:[%s306 + $0xc] sm:$0xf]
        %v355 = vld [vmem:[%s313] sm:$0xf]
        %v356 = vld [vmem:[%s313 + $0x4] sm:$0xf]
        %v357 = vld [vmem:[%s313 + $0x8] sm:$0xf]
        %v358 = vld [vmem:[%s313 + $0xc] sm:$0xf]
        %v363 = vunpack.c.l.b16 %v351
        %v364 = vunpack.c.l.b16 %v352
        %v365 = vunpack.c.l.b16 %v353
        %v366 = vunpack.c.l.b16 %v354
        %v367 = vpack.c.b16 %v364, %v363
        %v368 = vpack.c.b16 %v366, %v365
        %v375 = vunpack.c.l.b16 %v355
        %v376 = vunpack.c.l.b16 %v356
        %v377 = vunpack.c.l.b16 %v357
        %v378 = vunpack.c.l.b16 %v358
        %v379 = vpack.c.b16 %v376, %v375
        %v380 = vpack.c.b16 %v378, %v377
        %v383 = vld [vmem:[%s349] sm:$0xff]
        %v384 = vld [vmem:[%s349 + $0x8] sm:$0xff]
        %v385 = vld [vmem:[%s349 + $0x10] sm:$0xff]
        %v386 = vld [vmem:[%s349 + $0x18] sm:$0xff]
        %v387 = vld [vmem:[%s349 + $0x20] sm:$0xff]
        %v388 = vld [vmem:[%s349 + $0x28] sm:$0xff]
        %v389 = vld [vmem:[%s349 + $0x30] sm:$0xff]
        %v390 = vld [vmem:[%s349 + $0x38] sm:$0xff]
        %v391 = vld [vmem:[%s349 + $0x40] sm:$0xff]
        %v392 = vld [vmem:[%s349 + $0x48] sm:$0xff]
        %v393 = vld [vmem:[%s349 + $0x50] sm:$0xff]
        %v394 = vld [vmem:[%s349 + $0x58] sm:$0xff]
        %v395 = vld [vmem:[%s349 + $0x60] sm:$0xff]
        %v396 = vld [vmem:[%s349 + $0x68] sm:$0xff]
        %v397 = vld [vmem:[%s349 + $0x70] sm:$0xff]
        %v398 = vld [vmem:[%s349 + $0x78] sm:$0xff]
        %v399 = vld [vmem:[%s349 + $0x80] sm:$0xff]
        %v400 = vld [vmem:[%s349 + $0x88] sm:$0xff]
        %v401 = vld [vmem:[%s349 + $0x90] sm:$0xff]
        %v402 = vld [vmem:[%s349 + $0x98] sm:$0xff]
        %v403 = vld [vmem:[%s349 + $0xa0] sm:$0xff]
        %v404 = vld [vmem:[%s349 + $0xa8] sm:$0xff]
        %v405 = vld [vmem:[%s349 + $0xb0] sm:$0xff]
        %v406 = vld [vmem:[%s349 + $0xb8] sm:$0xff]
        %v407 = vld [vmem:[%s349 + $0xc0] sm:$0xff]
        %v408 = vld [vmem:[%s349 + $0xc8] sm:$0xff]
        %v409 = vld [vmem:[%s349 + $0xd0] sm:$0xff]
        %v410 = vld [vmem:[%s349 + $0xd8] sm:$0xff]
        %v411 = vld [vmem:[%s349 + $0xe0] sm:$0xff]
        %v412 = vld [vmem:[%s349 + $0xe8] sm:$0xff]
        %v413 = vld [vmem:[%s349 + $0xf0] sm:$0xff]
        %v414 = vld [vmem:[%s349 + $0xf8] sm:$0xff]
        %v447 = vunpack.c.l.b16 %v383
        %v448 = vunpack.c.h.b16 %v383
        %v449 = vunpack.c.l.b16 %v384
        %v450 = vunpack.c.h.b16 %v384
        %v451 = vunpack.c.l.b16 %v385
        %v452 = vunpack.c.h.b16 %v385
        %v453 = vunpack.c.l.b16 %v386
        %v454 = vunpack.c.h.b16 %v386
        %v455 = vunpack.c.l.b16 %v387
        %v456 = vunpack.c.h.b16 %v387
        %v457 = vunpack.c.l.b16 %v388
        %v458 = vunpack.c.h.b16 %v388
        %v459 = vunpack.c.l.b16 %v389
        %v460 = vunpack.c.h.b16 %v389
        %v461 = vunpack.c.l.b16 %v390
        %v462 = vunpack.c.h.b16 %v390
        %v463 = vunpack.c.l.b16 %v391
        %v464 = vunpack.c.h.b16 %v391
        %v465 = vunpack.c.l.b16 %v392
        %v466 = vunpack.c.h.b16 %v392
        %v467 = vunpack.c.l.b16 %v393
        %v468 = vunpack.c.h.b16 %v393
        %v469 = vunpack.c.l.b16 %v394
        %v470 = vunpack.c.h.b16 %v394
        %v471 = vunpack.c.l.b16 %v395
        %v472 = vunpack.c.h.b16 %v395
        %v473 = vunpack.c.l.b16 %v396
        %v474 = vunpack.c.h.b16 %v396
        %v475 = vunpack.c.l.b16 %v397
        %v476 = vunpack.c.h.b16 %v397
        %v477 = vunpack.c.l.b16 %v398
        %v478 = vunpack.c.h.b16 %v398
        %v479 = vunpack.c.l.b16 %v399
        %v480 = vunpack.c.h.b16 %v399
        %v481 = vunpack.c.l.b16 %v400
        %v482 = vunpack.c.h.b16 %v400
        %v483 = vunpack.c.l.b16 %v401
        %v484 = vunpack.c.h.b16 %v401
        %v485 = vunpack.c.l.b16 %v402
        %v486 = vunpack.c.h.b16 %v402
        %v487 = vunpack.c.l.b16 %v403
        %v488 = vunpack.c.h.b16 %v403
        %v489 = vunpack.c.l.b16 %v404
        %v490 = vunpack.c.h.b16 %v404
        %v491 = vunpack.c.l.b16 %v405
        %v492 = vunpack.c.h.b16 %v405
        %v493 = vunpack.c.l.b16 %v406
        %v494 = vunpack.c.h.b16 %v406
        %v495 = vunpack.c.l.b16 %v407
        %v496 = vunpack.c.h.b16 %v407
        %v497 = vunpack.c.l.b16 %v408
        %v498 = vunpack.c.h.b16 %v408
        %v499 = vunpack.c.l.b16 %v409
        %v500 = vunpack.c.h.b16 %v409
        %v501 = vunpack.c.l.b16 %v410
        %v502 = vunpack.c.h.b16 %v410
        %v503 = vunpack.c.l.b16 %v411
        %v504 = vunpack.c.h.b16 %v411
        %v505 = vunpack.c.l.b16 %v412
        %v506 = vunpack.c.h.b16 %v412
        %v507 = vunpack.c.l.b16 %v413
        %v508 = vunpack.c.h.b16 %v413
        %v509 = vunpack.c.l.b16 %v414
        %v510 = vunpack.c.h.b16 %v414
        %v511 = vpack.c.b16 %v449, %v447
        %v512 = vpack.c.b16 %v450, %v448
        %v513 = vpack.c.b16 %v453, %v451
        %v514 = vpack.c.b16 %v454, %v452
        %v515 = vpack.c.b16 %v457, %v455
        %v516 = vpack.c.b16 %v458, %v456
        %v517 = vpack.c.b16 %v461, %v459
        %v518 = vpack.c.b16 %v462, %v460
        %v519 = vpack.c.b16 %v465, %v463
        %v520 = vpack.c.b16 %v466, %v464
        %v521 = vpack.c.b16 %v469, %v467
        %v522 = vpack.c.b16 %v470, %v468
        %v523 = vpack.c.b16 %v473, %v471
        %v524 = vpack.c.b16 %v474, %v472
        %v525 = vpack.c.b16 %v477, %v475
        %v526 = vpack.c.b16 %v478, %v476
        %v527 = vpack.c.b16 %v481, %v479
        %v528 = vpack.c.b16 %v482, %v480
        %v529 = vpack.c.b16 %v485, %v483
        %v530 = vpack.c.b16 %v486, %v484
        %v531 = vpack.c.b16 %v489, %v487
        %v532 = vpack.c.b16 %v490, %v488
        %v533 = vpack.c.b16 %v493, %v491
        %v534 = vpack.c.b16 %v494, %v492
        %v535 = vpack.c.b16 %v497, %v495
        %v536 = vpack.c.b16 %v498, %v496
        %v537 = vpack.c.b16 %v501, %v499
        %v538 = vpack.c.b16 %v502, %v500
        %v539 = vpack.c.b16 %v505, %v503
        %v540 = vpack.c.b16 %v506, %v504
        %v541 = vpack.c.b16 %v509, %v507
        %v542 = vpack.c.b16 %v510, %v508
        %575 = vmatprep.subr.bf16.mxu0 %v512
        %576 = vmatpush1.bf16.msra.mxu0 %v511
        %577 = vmatprep.subr.bf16.mxu0 %v514
        %578 = vmatpush1.bf16.msra.mxu0 %v513
        %579 = vmatprep.subr.bf16.mxu0 %v516
        %580 = vmatpush1.bf16.msra.mxu0 %v515
        %581 = vmatprep.subr.bf16.mxu0 %v518
        %582 = vmatpush1.bf16.msra.mxu0 %v517
        %583 = vmatprep.subr.bf16.mxu0 %v520
        %584 = vmatpush1.bf16.msra.mxu0 %v519
        %585 = vmatprep.subr.bf16.mxu0 %v522
        %586 = vmatpush1.bf16.msra.mxu0 %v521
        %587 = vmatprep.subr.bf16.mxu0 %v524
        %588 = vmatpush1.bf16.msra.mxu0 %v523
        %589 = vmatprep.subr.bf16.mxu0 %v526
        %590 = vmatpush1.bf16.msra.mxu0 %v525
        %591 = vmatprep.subr.bf16.mxu0 %v528
        %592 = vmatpush1.bf16.msra.mxu0 %v527
        %593 = vmatprep.subr.bf16.mxu0 %v530
        %594 = vmatpush1.bf16.msra.mxu0 %v529
        %595 = vmatprep.subr.bf16.mxu0 %v532
        %596 = vmatpush1.bf16.msra.mxu0 %v531
        %597 = vmatprep.subr.bf16.mxu0 %v534
        %598 = vmatpush1.bf16.msra.mxu0 %v533
        %599 = vmatprep.subr.bf16.mxu0 %v536
        %600 = vmatpush1.bf16.msra.mxu0 %v535
        %601 = vmatprep.subr.bf16.mxu0 %v538
        %602 = vmatpush1.bf16.msra.mxu0 %v537
        %603 = vmatprep.subr.bf16.mxu0 %v540
        %604 = vmatpush1.bf16.msra.mxu0 %v539
        %605 = vmatprep.subr.bf16.mxu0 %v542
        %606 = vmatpush1.bf16.msra.mxu0 %v541
        %607 = vmatprep.mubr.bf16.mxu0 %v379
        %608 = vmatmul.mubr.bf16.gmra.mrb[0].mxu0 %v367
        %v609 = vpop.f32.mrb[0].mxu0
        %v610 = vadd.f32 0.0, %v609
        %v611 = vpop.f32.mrb[0].mxu0
        %v612 = vadd.f32 0.0, %v611
        %v613 = vpop.f32.mrb[0].mxu0
        %v614 = vadd.f32 0.0, %v613
        %v615 = vpop.f32.mrb[0].mxu0
        %v616 = vadd.f32 0.0, %v615
        %617 = vmatprep.mubr.bf16.mxu0 %v380
        %618 = vmatmul.mubr.bf16.gmra.mrb[0].mxu0 %v368
        %v619 = vpop.f32.mrb[0].mxu0
        %v620 = vadd.f32 0.0, %v619
        %v621 = vpop.f32.mrb[0].mxu0
        %v622 = vadd.f32 0.0, %v621
        %v623 = vpop.f32.mrb[0].mxu0
        %v624 = vadd.f32 0.0, %v623
        %v625 = vpop.f32.mrb[0].mxu0
        %v626 = vadd.f32 0.0, %v625
        %627 = vdwg.mxu0
        %v628 = vmul.f32 %v610, %v610
        %v629 = vmul.f32 %v614, %v614
        %v630 = vmul.f32 %v620, %v620
        %v631 = vmul.f32 %v624, %v624
        %v632 = vmul.f32 %v612, %v612
        %v633 = vmul.f32 %v616, %v616
        %v634 = vmul.f32 %v622, %v622
        %v635 = vmul.f32 %v626, %v626
        %v636 = vadd.f32 %v628, %v632
        %v637 = vadd.f32 %v629, %v633
        %v638 = vadd.f32 %v630, %v634
        %v639 = vadd.f32 %v631, %v635
        %v640 = vadd.f32 %v636, 1e-12
        %v641 = vadd.f32 %v637, 1e-12
        %v642 = vadd.f32 %v638, 1e-12
        %v643 = vadd.f32 %v639, 1e-12
        %v644 = vrsqrt.pop %v640
        %v645 = vmul.f32 %v640, %v644
        %vm646 = vcmp.eq.f32.partialorder %v640, inf
        %v647 = vsel %vm646, %v640, %v645
        %vm648 = vcmp.eq.f32.partialorder %v640, 0.0
        %v649 = vand.u32 %v640, 2147483648
        %v650 = vsel %vm648, %v649, %v647
        %v651 = vrsqrt.pop %v641
        %v652 = vmul.f32 %v641, %v651
        %vm653 = vcmp.eq.f32.partialorder %v641, inf
        %v654 = vsel %vm653, %v641, %v652
        %vm655 = vcmp.eq.f32.partialorder %v641, 0.0
        %v656 = vand.u32 %v641, 2147483648
        %v657 = vsel %vm655, %v656, %v654
        %v658 = vrsqrt.pop %v642
        %v659 = vmul.f32 %v642, %v658
        %vm660 = vcmp.eq.f32.partialorder %v642, inf
        %v661 = vsel %vm660, %v642, %v659
        %vm662 = vcmp.eq.f32.partialorder %v642, 0.0
        %v663 = vand.u32 %v642, 2147483648
        %v664 = vsel %vm662, %v663, %v661
        %v665 = vrsqrt.pop %v643
        %v666 = vmul.f32 %v643, %v665
        %vm667 = vcmp.eq.f32.partialorder %v643, inf
        %v668 = vsel %vm667, %v643, %v666
        %vm669 = vcmp.eq.f32.partialorder %v643, 0.0
        %v670 = vand.u32 %v643, 2147483648
        %v671 = vsel %vm669, %v670, %v668
        %v672 = vpack.c.bf16 %v657, %v650
        %v673 = vpack.c.bf16 %v671, %v664
        %v676 = vunpack.c.l.b16 %v672
        %v677 = vunpack.c.h.b16 %v672
        %v678 = vunpack.c.l.b16 %v673
        %v679 = vunpack.c.h.b16 %v673
        %v680 = vpack.c.b16 %v676, %v676
        %v681 = vpack.c.b16 %v677, %v677
        %v682 = vpack.c.b16 %v678, %v678
        %v683 = vpack.c.b16 %v679, %v679
        %688 = vst [vmem:[%s341] sm:$0xf] %v680
        %689 = vst [vmem:[%s341 + $0x4] sm:$0xf] %v681
        %690 = vst [vmem:[%s341 + $0x8] sm:$0xf] %v682
        %691 = vst [vmem:[%s341 + $0xc] sm:$0xf] %v683
        %s692 = sand.u32 %s129, 1
        %s693 = sand.u32 %s129, 1
        %s694 = smul.addr %s693, 16
        %s695 = scalar_lea.vmem [#allocation4], %s694
        // Predicated region
        $region115: #{_lambda_.9} parent=105 // pred_check
          %p696 = pneg %p139
        $region116: #{_lambda_.9} parent=105 // pred_check_branch
          %698 = sbr.rel (%p696) target = $region118
        $region117: #{_lambda_.9} parent=105 // pred_region
          %s699 = smul.u32 4, %s20
          %s700 = smul.addr %s699, 16
          %s701 = sadd.s32 %s21, %s700
          %s702 = smul.addr %s19, 128
          %s703 = sadd.s32 %s701, %s702
          %s704 = smul.addr %s703, 4
          %s705 = scalar_lea.vmem %s3, %s704
          // Predicated region
          $region119: #{_lambda_.9} parent=117 // pred_check
            _
          $region120: #{_lambda_.9} parent=117 // pred_check_branch
            %707 = sbr.rel (0) target = $region122
          $region121: #{_lambda_.9} parent=117 // pred_region
            // Predicated region
            $region123: #{_lambda_.9} parent=121 // pred_check
              _
            $region124: #{_lambda_.9} parent=121 // pred_check_branch
              %709 = sbr.rel target = $region126
            $region125: #{_lambda_.9} parent=121 // pred_region
              // Predicated region
              $region138: #{_lambda_.9} parent=125 // pred_check
                _
              $region139: #{_lambda_.9} parent=125 // pred_check_branch
                %730 = sbr.rel (0) target = $region141
              $region140: #{_lambda_.9} parent=125 // pred_region
                loop: start=0, step=1, limit=1
                $region142: #{_lambda_.9} parent=140 // loop_pre_header
                  _
                $region143: #{_lambda_.9} parent=140 // loop_header
                  %s732 = sphi 0, %s736
                  %p733 = scmp.ge.s32.totalorder %s732, 1
                  %s737 = sphi %s695, %s695
                  %s738 = sphi %s705, %s705
                $region144: #{_lambda_.9} parent=140 // loop_header_branch
                  %735 = sbr.rel (%p733) target = $region148
                $region145: #{_lambda_.9} parent=140 // loop_body
                  _
                $region146: #{_lambda_.9} parent=140 // loop_footer
                  %s736 = sadd.s32 1, %s732
                $region147: #{_lambda_.9} parent=140 // loop_footer_branch
                  %731 = sbr.rel target = $region143
                $region148: #{_lambda_.9} parent=140 // loop_exit
                  _
                loop: start=0, step=1, limit=1
                $region149: #{_lambda_.9} parent=140 // loop_pre_header
                  _
                $region150: #{_lambda_.9} parent=140 // loop_header
                  %s741 = sphi 0, %s745
                  %p742 = scmp.ge.s32.totalorder %s741, 1
                  %s746 = sphi %s695, %s695
                  %s747 = sphi %s705, %s705
                $region151: #{_lambda_.9} parent=140 // loop_header_branch
                  %744 = sbr.rel (%p742) target = $region155
                $region152: #{_lambda_.9} parent=140 // loop_body
                  %v748 = vld [vmem:[%s746] sm:$0xf]
                  %749 = vst [vmem:[%s747] sm:$0xf] %v748
                  %v750 = vld [vmem:[%s746 + $0x4] sm:$0xf]
                  %751 = vst [vmem:[%s747 + $0x40] sm:$0xf] %v750
                  %v752 = vld [vmem:[%s746 + $0x8] sm:$0xf]
                  %753 = vst [vmem:[%s747 + $0x80] sm:$0xf] %v752
                  %v754 = vld [vmem:[%s746 + $0xc] sm:$0xf]
                  %755 = vst [vmem:[%s747 + $0xc0] sm:$0xf] %v754
                $region153: #{_lambda_.9} parent=140 // loop_footer
                  %s745 = sadd.s32 1, %s741
                $region154: #{_lambda_.9} parent=140 // loop_footer_branch
                  %740 = sbr.rel target = $region150
                $region155: #{_lambda_.9} parent=140 // loop_exit
                  _
              $region141: #{_lambda_.9} parent=125 // pred_fallthru
                _
            $region126: #{_lambda_.9} parent=121 // pred_fallthru
              _
            // Predicated region
            $region127: #{_lambda_.9} parent=121 // pred_check
              _
            $region128: #{_lambda_.9} parent=121 // pred_check_branch
              %711 = sbr.rel (0) target = $region130
            $region129: #{_lambda_.9} parent=121 // pred_region
              loop: start=0, step=1, limit=1
              $region131: #{_lambda_.9} parent=129 // loop_pre_header
                _
              $region132: #{_lambda_.9} parent=129 // loop_header
                %s714 = sphi 0, %s718
                %p715 = scmp.ge.s32.totalorder %s714, 1
                %s719 = sphi %s695, %s695
                %s720 = sphi %s705, %s705
              $region133: #{_lambda_.9} parent=129 // loop_header_branch
                %717 = sbr.rel (%p715) target = $region137
              $region134: #{_lambda_.9} parent=129 // loop_body
                %v721 = vld [vmem:[%s719] sm:$0xf]
                %722 = vst [vmem:[%s720] sm:$0xf] %v721
                %v723 = vld [vmem:[%s719 + $0x4] sm:$0xf]
                %724 = vst [vmem:[%s720 + $0x40] sm:$0xf] %v723
                %v725 = vld [vmem:[%s719 + $0x8] sm:$0xf]
                %726 = vst [vmem:[%s720 + $0x80] sm:$0xf] %v725
                %v727 = vld [vmem:[%s719 + $0xc] sm:$0xf]
                %728 = vst [vmem:[%s720 + $0xc0] sm:$0xf] %v727
              $region135: #{_lambda_.9} parent=129 // loop_footer
                %s718 = sadd.s32 1, %s714
              $region136: #{_lambda_.9} parent=129 // loop_footer_branch
                %713 = sbr.rel target = $region132
              $region137: #{_lambda_.9} parent=129 // loop_exit
                _
            $region130: #{_lambda_.9} parent=121 // pred_fallthru
              _
          $region122: #{_lambda_.9} parent=117 // pred_fallthru
            _
          %756 = vnop
        $region118: #{_lambda_.9} parent=105 // pred_fallthru
          _
      $region106: #{_lambda_.9} parent=5 // pred_fallthru
        _
      %p757 = scmp.le.s32.totalorder 2, %s9
      // Predicated region
      $region156: #{_lambda_.9} parent=5 // pred_check
        %p758 = pneg %p757
      $region157: #{_lambda_.9} parent=5 // pred_check_branch
        %760 = sbr.rel (%p758) target = $region159
      $region158: #{_lambda_.9} parent=5 // pred_region
        %s761 = ssub.s32 %s9, 2
        // Predicated region
        $region160: #{_lambda_.9} parent=158 // pred_check
          %p762 = pneg %p145
        $region161: #{_lambda_.9} parent=158 // pred_check_branch
          %764 = sbr.rel (%p762) target = $region163
        $region162: #{_lambda_.9} parent=158 // pred_region
          %s765 = sand.u32 %s130, 1
          %s766 = sand.u32 %s130, 1
          %s767 = smul.addr %s766, 16
          %s768 = scalar_lea.vmem [#allocation4], %s767
        $region163: #{_lambda_.9} parent=158 // pred_fallthru
          _
      $region159: #{_lambda_.9} parent=5 // pred_fallthru
        _
    $region6: #{_lambda_.9} parent=1 // loop_footer
      %s13 = sadd.s32 1, %s9
    $region7: #{_lambda_.9} parent=1 // loop_footer_branch
      %8 = sbr.rel target = $region3
    $region8: #{_lambda_.9} parent=1 // loop_exit
      _

// kernel: _lambda_.10
$region0: #{_lambda_.10}
  #allocation0 [shape = 'u32[]', space=smem, size = 0x4, offset = 0x4, fixed_abs, tag = 'smem constant byte address 0x4 - core index']
  #allocation1 [shape = 'u32[144,128]{1,0:T(1,128)}', space=vmem, size = 0x12000, scoped, tag = 'internal scratch']
  %s0 = inlined_call_operand.vmem [shape: bf16[96,2176], index: 0, kind: input, shape index: {}]
  %s1 = inlined_call_operand.vmem [shape: bf16[2176,128], index: 1, kind: input, shape index: {}]
  %s2 = inlined_call_operand.vmem [shape: f32[96,128], index: 2, kind: output, shape index: {}]
  %s3 = sld [smem:[#allocation0]]
  $region41: #{_lambda_.10} parent=0
    _
  %s5 = ssub.s32 1, %s3
  %s6 = scalar_select 0, %s5, %s3
  loop: start=0, step=1, limit=5
  $region2: #{_lambda_.10} parent=0 // loop_pre_header
    _
  $region3: #{_lambda_.10} parent=0 // loop_header
    %s8 = sphi 0, %s12
    %p9 = scmp.ge.s32.totalorder %s8, 5
    %s18 = sphi 0, %s20
    %s21 = sphi 0, %s18
    %s22 = sphi 0, %s21
    %s38 = sphi 0, %s22
    %s42 = sphi 0, %s42
    %s44 = sphi 0, %s42
    %s45 = sphi 0, %s44
    %s59 = sphi 0, %s45
    %s65 = sphi 0, %s67
    %s68 = sphi 0, %s65
    %s69 = sphi 0, %s68
    %s85 = sphi 0, %s69
  $region4: #{_lambda_.10} parent=0 // loop_header_branch
    %11 = sbr.rel (%p9) target = $region8
  $region5: #{_lambda_.10} parent=0 // loop_body
    %s13 = ssub.s32 %s8, 1
    %s14 = ssub.s32 %s8, 2
    %s15 = sadd.s32 %s8, 1
    %s16 = ssub.s32 %s8, %s15
    %p17 = scmp.eq.s32.totalorder %s16, 0
    %s19 = sadd.s32 %s18, 1
    %s20 = scalar_select %p17, %s18, %s19
    %p23 = pneg %p17
    %p24 = scmp.eq.s32.totalorder %s8, 2
    %p25 = por %p23, %p24
    %p26 = scmp.ne.s32.totalorder %s18, %s21
    %p27 = scmp.eq.s32.totalorder %s8, 0
    %p28 = por %p26, %p27
    %p29 = scmp.ne.s32.totalorder %s18, %s21
    %p30 = scmp.eq.s32.totalorder %s13, 2
    %p31 = por %p29, %p30
    %p32 = scmp.ne.s32.totalorder %s21, %s22
    %p33 = scmp.eq.s32.totalorder %s13, 0
    %p34 = por %p32, %p33
    %p35 = scmp.ne.s32.totalorder %s21, %s22
    %p36 = scmp.eq.s32.totalorder %s14, 2
    %p37 = por %p35, %p36
    %p39 = scmp.ne.s32.totalorder %s22, %s38
    %p40 = scmp.eq.s32.totalorder %s14, 0
    %p41 = por %p39, %p40
    %s43 = sadd.s32 %s42, 1
    %p46 = scmp.eq.s32.totalorder %s8, 2
    %p47 = scmp.ne.s32.totalorder %s42, %s44
    %p48 = scmp.eq.s32.totalorder %s8, 0
    %p49 = por %p47, %p48
    %p50 = scmp.ne.s32.totalorder %s42, %s44
    %p51 = scmp.eq.s32.totalorder %s13, 2
    %p52 = por %p50, %p51
    %p53 = scmp.ne.s32.totalorder %s44, %s45
    %p54 = scmp.eq.s32.totalorder %s13, 0
    %p55 = por %p53, %p54
    %p56 = scmp.ne.s32.totalorder %s44, %s45
    %p57 = scmp.eq.s32.totalorder %s14, 2
    %p58 = por %p56, %p57
    %p60 = scmp.ne.s32.totalorder %s45, %s59
    %p61 = scmp.eq.s32.totalorder %s14, 0
    %p62 = por %p60, %p61
    %s63 = ssub.s32 %s8, %s15
    %p64 = scmp.eq.s32.totalorder %s63, 0
    %s66 = sadd.s32 %s65, 1
    %s67 = scalar_select %p64, %s65, %s66
    %p70 = pneg %p64
    %p71 = scmp.eq.s32.totalorder %s8, 2
    %p72 = por %p70, %p71
    %p73 = scmp.ne.s32.totalorder %s65, %s68
    %p74 = scmp.eq.s32.totalorder %s8, 0
    %p75 = por %p73, %p74
    %p76 = scmp.ne.s32.totalorder %s65, %s68
    %p77 = scmp.eq.s32.totalorder %s13, 2
    %p78 = por %p76, %p77
    %p79 = scmp.ne.s32.totalorder %s68, %s69
    %p80 = scmp.eq.s32.totalorder %s13, 0
    %p81 = por %p79, %p80
    %p82 = scmp.ne.s32.totalorder %s68, %s69
    %p83 = scmp.eq.s32.totalorder %s14, 2
    %p84 = por %p82, %p83
    %p86 = scmp.ne.s32.totalorder %s69, %s85
    %p87 = scmp.eq.s32.totalorder %s14, 0
    %p88 = por %p86, %p87
    %p89 = scmp.le.s32.totalorder 1, %s8
    %p90 = scmp.lt.s32.totalorder %s8, 4
    %p91 = pnand %p89, %p90
    %p92 = pneg %p91
    // Predicated region
    $region9: #{_lambda_.10} parent=5 // pred_check
      _
    $region10: #{_lambda_.10} parent=5 // pred_check_branch
      %94 = sbr.rel (%p91) target = $region12
    $region11: #{_lambda_.10} parent=5 // pred_region
      %s95 = ssub.s32 %s8, 1
      // Predicated region
      $region13: #{_lambda_.10} parent=11 // pred_check
        %p96 = pneg %p55
      $region14: #{_lambda_.10} parent=11 // pred_check_branch
        %98 = sbr.rel (%p96) target = $region16
      $region15: #{_lambda_.10} parent=11 // pred_region
        _
      $region16: #{_lambda_.10} parent=11 // pred_fallthru
        _
    $region12: #{_lambda_.10} parent=5 // pred_fallthru
      _
    %p99 = scmp.lt.s32.totalorder %s8, 3
    // Predicated region
    $region17: #{_lambda_.10} parent=5 // pred_check
      %p100 = pneg %p99
    $region18: #{_lambda_.10} parent=5 // pred_check_branch
      %102 = sbr.rel (%p100) target = $region20
    $region19: #{_lambda_.10} parent=5 // pred_region
      // Predicated region
      $region21: #{_lambda_.10} parent=19 // pred_check
        %p103 = pneg %p28
      $region22: #{_lambda_.10} parent=19 // pred_check_branch
        %105 = sbr.rel (%p103) target = $region24
      $region23: #{_lambda_.10} parent=19 // pred_region
        %s106 = smul.u32 4, %s8
        %p107 = scmp.lt.s32.totalorder %s106, 11
        %s108 = scalar_select %p107, %s106, 11
        %s109 = smul.addr %s108, 17
        %s110 = smul.addr %s109, 4
        %s111 = scalar_lea.vmem %s0, %s110
        %s112 = smul.u32 4, %s8
      $region24: #{_lambda_.10} parent=19 // pred_fallthru
        _
    $region20: #{_lambda_.10} parent=5 // pred_fallthru
      _
    %p113 = scmp.le.s32.totalorder 1, %s8
    %p114 = scmp.lt.s32.totalorder %s8, 4
    %p115 = pnand %p113, %p114
    %p116 = pneg %p115
    // Predicated region
    $region25: #{_lambda_.10} parent=5 // pred_check
      _
    $region26: #{_lambda_.10} parent=5 // pred_check_branch
      %118 = sbr.rel (%p115) target = $region28
    $region27: #{_lambda_.10} parent=5 // pred_region
      %s119 = ssub.s32 %s8, 1
      %s120 = smul.u32 4, %s13
      %p121 = scmp.lt.s32.totalorder %s120, 11
      %s122 = scalar_select %p121, %s120, 11
      %s123 = smul.addr %s122, 17
      %s124 = smul.addr %s123, 4
      %s125 = scalar_lea.vmem %s0, %s124
      %p126 = pneg %p34
      %p127 = pneg %p31
      %p128 = pneg %p55
      %p129 = pneg %p52
      %p130 = pneg %p81
      %p131 = pneg %p78
      %s132 = smul.u32 4, %s13
      %p133 = scmp.lt.s32.totalorder %s132, 11
      %s134 = scalar_select %p133, %s132, 11
      %s135 = smul.addr %s134, 8
      %s136 = scalar_lea.vmem %s2, %s135
      %s137 = smul.u32 4, %s13
      %p138 = scmp.lt.s32.totalorder %s137, 11
      %s139 = scalar_select %p138, %s137, 11
      %s140 = smul.addr %s139, 17
      %s141 = smul.addr %s140, 4
      %s142 = scalar_lea.vmem %s0, %s141
      %s143 = smul.u32 4, %s13
      %s144 = smul.u32 4, %s13
      %p145 = scmp.lt.s32.totalorder %s144, 11
      %s146 = scalar_select %p145, %s144, 11
      %s147 = smul.addr %s146, 8
      %s148 = scalar_lea.vmem %s2, %s147
      %s149 = smul.u32 4, %s13
      %v151 = vld [vmem:[%s142] sm:$0xff]
      %v152 = vld [vmem:[%s142 + $0x8] sm:$0xff]
      %v153 = vld [vmem:[%s142 + $0x10] sm:$0xff]
      %v154 = vld [vmem:[%s142 + $0x18] sm:$0xff]
      %v155 = vld [vmem:[%s142 + $0x20] sm:$0xff]
      %v156 = vld [vmem:[%s142 + $0x28] sm:$0xff]
      %v157 = vld [vmem:[%s142 + $0x30] sm:$0xff]
      %v158 = vld [vmem:[%s142 + $0x38] sm:$0xff]
      %v159 = vld [vmem:[%s142 + $0x40] sm:$0xf]
      %v160 = vld [vmem:[%s142 + $0x44] sm:$0xff]
      %v161 = vld [vmem:[%s142 + $0x4c] sm:$0xff]
      %v162 = vld [vmem:[%s142 + $0x54] sm:$0xff]
      %v163 = vld [vmem:[%s142 + $0x5c] sm:$0xff]
      %v164 = vld [vmem:[%s142 + $0x64] sm:$0xff]
      %v165 = vld [vmem:[%s142 + $0x6c] sm:$0xff]
      %v166 = vld [vmem:[%s142 + $0x74] sm:$0xff]
      %v167 = vld [vmem:[%s142 + $0x7c] sm:$0xff]
      %v168 = vld [vmem:[%s142 + $0x84] sm:$0xf]
      %v169 = vld [vmem:[%s142 + $0x88] sm:$0xff]
      %v170 = vld [vmem:[%s142 + $0x90] sm:$0xff]
      %v171 = vld [vmem:[%s142 + $0x98] sm:$0xff]
      %v172 = vld [vmem:[%s142 + $0xa0] sm:$0xff]
      %v173 = vld [vmem:[%s142 + $0xa8] sm:$0xff]
      %v174 = vld [vmem:[%s142 + $0xb0] sm:$0xff]
      %v175 = vld [vmem:[%s142 + $0xb8] sm:$0xff]
      %v176 = vld [vmem:[%s142 + $0xc0] sm:$0xff]
      %v177 = vld [vmem:[%s142 + $0xc8] sm:$0xf]
      %v178 = vld [vmem:[%s142 + $0xcc] sm:$0xff]
      %v179 = vld [vmem:[%s142 + $0xd4] sm:$0xff]
      %v180 = vld [vmem:[%s142 + $0xdc] sm:$0xff]
      %v181 = vld [vmem:[%s142 + $0xe4] sm:$0xff]
      %v182 = vld [vmem:[%s142 + $0xec] sm:$0xff]
      %v183 = vld [vmem:[%s142 + $0xf4] sm:$0xff]
      %v184 = vld [vmem:[%s142 + $0xfc] sm:$0xff]
      %v185 = vld [vmem:[%s142 + $0x104] sm:$0xff]
      %v186 = vld [vmem:[%s142 + $0x10c] sm:$0xf]
      %v187 = vld [vmem:[%s1] sm:$0xf]
      %v188 = vld [vmem:[%s1 + $0x4] sm:$0xf]
      %v189 = vld [vmem:[%s1 + $0x8] sm:$0xf]
      %v190 = vld [vmem:[%s1 + $0xc] sm:$0xf]
      %v191 = vld [vmem:[%s1 + $0x10] sm:$0xf]
      %v192 = vld [vmem:[%s1 + $0x14] sm:$0xf]
      %v193 = vld [vmem:[%s1 + $0x18] sm:$0xf]
      %v194 = vld [vmem:[%s1 + $0x1c] sm:$0xf]
      %v195 = vld [vmem:[%s1 + $0x20] sm:$0xf]
      %v196 = vld [vmem:[%s1 + $0x24] sm:$0xf]
      %v197 = vld [vmem:[%s1 + $0x28] sm:$0xf]
      %v198 = vld [vmem:[%s1 + $0x2c] sm:$0xf]
      %v199 = vld [vmem:[%s1 + $0x30] sm:$0xf]
      %v200 = vld [vmem:[%s1 + $0x34] sm:$0xf]
      %v201 = vld [vmem:[%s1 + $0x38] sm:$0xf]
      %v202 = vld [vmem:[%s1 + $0x3c] sm:$0xf]
      %v203 = vld [vmem:[%s1 + $0x40] sm:$0xf]
      %v204 = vld [vmem:[%s1 + $0x44] sm:$0xf]
      %v205 = vld [vmem:[%s1 + $0x48] sm:$0xf]
      %v206 = vld [vmem:[%s1 + $0x4c] sm:$0xf]
      %v207 = vld [vmem:[%s1 + $0x50] sm:$0xf]
      %v208 = vld [vmem:[%s1 + $0x54] sm:$0xf]
      %v209 = vld [vmem:[%s1 + $0x58] sm:$0xf]
      %v210 = vld [vmem:[%s1 + $0x5c] sm:$0xf]
      %v211 = vld [vmem:[%s1 + $0x60] sm:$0xf]
      %v212 = vld [vmem:[%s1 + $0x64] sm:$0xf]
      %v213 = vld [vmem:[%s1 + $0x68] sm:$0xf]
      %v214 = vld [vmem:[%s1 + $0x6c] sm:$0xf]
      %v215 = vld [vmem:[%s1 + $0x70] sm:$0xf]
      %v216 = vld [vmem:[%s1 + $0x74] sm:$0xf]
      %v217 = vld [vmem:[%s1 + $0x78] sm:$0xf]
      %v218 = vld [vmem:[%s1 + $0x7c] sm:$0xf]
      %v219 = vld [vmem:[%s1 + $0x80] sm:$0xf]
      %v220 = vld [vmem:[%s1 + $0x84] sm:$0xf]
      %v221 = vld [vmem:[%s1 + $0x88] sm:$0xf]
      %v222 = vld [vmem:[%s1 + $0x8c] sm:$0xf]
      %v223 = vld [vmem:[%s1 + $0x90] sm:$0xf]
      %v224 = vld [vmem:[%s1 + $0x94] sm:$0xf]
      %v225 = vld [vmem:[%s1 + $0x98] sm:$0xf]
      %v226 = vld [vmem:[%s1 + $0x9c] sm:$0xf]
      %v227 = vld [vmem:[%s1 + $0xa0] sm:$0xf]
      %v228 = vld [vmem:[%s1 + $0xa4] sm:$0xf]
      %v229 = vld [vmem:[%s1 + $0xa8] sm:$0xf]
      %v230 = vld [vmem:[%s1 + $0xac] sm:$0xf]
      %v231 = vld [vmem:[%s1 + $0xb0] sm:$0xf]
      %v232 = vld [vmem:[%s1 + $0xb4] sm:$0xf]
      %v233 = vld [vmem:[%s1 + $0xb8] sm:$0xf]
      %v234 = vld [vmem:[%s1 + $0xbc] sm:$0xf]
      %v235 = vld [vmem:[%s1 + $0xc0] sm:$0xf]
      %v236 = vld [vmem:[%s1 + $0xc4] sm:$0xf]
      %v237 = vld [vmem:[%s1 + $0xc8] sm:$0xf]
      %v238 = vld [vmem:[%s1 + $0xcc] sm:$0xf]
      %v239 = vld [vmem:[%s1 + $0xd0] sm:$0xf]
      %v240 = vld [vmem:[%s1 + $0xd4] sm:$0xf]
      %v241 = vld [vmem:[%s1 + $0xd8] sm:$0xf]
      %v242 = vld [vmem:[%s1 + $0xdc] sm:$0xf]
      %v243 = vld [vmem:[%s1 + $0xe0] sm:$0xf]
      %v244 = vld [vmem:[%s1 + $0xe4] sm:$0xf]
      %v245 = vld [vmem:[%s1 + $0xe8] sm:$0xf]
      %v246 = vld [vmem:[%s1 + $0xec] sm:$0xf]
      %v247 = vld [vmem:[%s1 + $0xf0] sm:$0xf]
      %v248 = vld [vmem:[%s1 + $0xf4] sm:$0xf]
      %v249 = vld [vmem:[%s1 + $0xf8] sm:$0xf]
      %v250 = vld [vmem:[%s1 + $0xfc] sm:$0xf]
      %v251 = vld [vmem:[%s1 + $0x100] sm:$0xf]
      %v252 = vld [vmem:[%s1 + $0x104] sm:$0xf]
      %v253 = vld [vmem:[%s1 + $0x108] sm:$0xf]
      %v254 = vld [vmem:[%s1 + $0x10c] sm:$0xf]
      %v255 = vld [vmem:[%s1 + $0x110] sm:$0xf]
      %v256 = vld [vmem:[%s1 + $0x114] sm:$0xf]
      %v257 = vld [vmem:[%s1 + $0x118] sm:$0xf]
      %v258 = vld [vmem:[%s1 + $0x11c] sm:$0xf]
      %v259 = vld [vmem:[%s1 + $0x120] sm:$0xf]
      %v260 = vld [vmem:[%s1 + $0x124] sm:$0xf]
      %v261 = vld [vmem:[%s1 + $0x128] sm:$0xf]
      %v262 = vld [vmem:[%s1 + $0x12c] sm:$0xf]
      %v263 = vld [vmem:[%s1 + $0x130] sm:$0xf]
      %v264 = vld [vmem:[%s1 + $0x134] sm:$0xf]
      %v265 = vld [vmem:[%s1 + $0x138] sm:$0xf]
      %v266 = vld [vmem:[%s1 + $0x13c] sm:$0xf]
      %v267 = vld [vmem:[%s1 + $0x140] sm:$0xf]
      %v268 = vld [vmem:[%s1 + $0x144] sm:$0xf]
      %v269 = vld [vmem:[%s1 + $0x148] sm:$0xf]
      %v270 = vld [vmem:[%s1 + $0x14c] sm:$0xf]
      %v271 = vld [vmem:[%s1 + $0x150] sm:$0xf]
      %v272 = vld [vmem:[%s1 + $0x154] sm:$0xf]
      %v273 = vld [vmem:[%s1 + $0x158] sm:$0xf]
      %v274 = vld [vmem:[%s1 + $0x15c] sm:$0xf]
      %v275 = vld [vmem:[%s1 + $0x160] sm:$0xf]
      %v276 = vld [vmem:[%s1 + $0x164] sm:$0xf]
      %v277 = vld [vmem:[%s1 + $0x168] sm:$0xf]
      %v278 = vld [vmem:[%s1 + $0x16c] sm:$0xf]
      %v279 = vld [vmem:[%s1 + $0x170] sm:$0xf]
      %v280 = vld [vmem:[%s1 + $0x174] sm:$0xf]
      %v281 = vld [vmem:[%s1 + $0x178] sm:$0xf]
      %v282 = vld [vmem:[%s1 + $0x17c] sm:$0xf]
      %v283 = vld [vmem:[%s1 + $0x180] sm:$0xf]
      %v284 = vld [vmem:[%s1 + $0x184] sm:$0xf]
      %v285 = vld [vmem:[%s1 + $0x188] sm:$0xf]
      %v286 = vld [vmem:[%s1 + $0x18c] sm:$0xf]
      %v287 = vld [vmem:[%s1 + $0x190] sm:$0xf]
      %v288 = vld [vmem:[%s1 + $0x194] sm:$0xf]
      %v289 = vld [vmem:[%s1 + $0x198] sm:$0xf]
      %v290 = vld [vmem:[%s1 + $0x19c] sm:$0xf]
      %v291 = vld [vmem:[%s1 + $0x1a0] sm:$0xf]
      %v292 = vld [vmem:[%s1 + $0x1a4] sm:$0xf]
      %v293 = vld [vmem:[%s1 + $0x1a8] sm:$0xf]
      %v294 = vld [vmem:[%s1 + $0x1ac] sm:$0xf]
      %v295 = vld [vmem:[%s1 + $0x1b0] sm:$0xf]
      %v296 = vld [vmem:[%s1 + $0x1b4] sm:$0xf]
      %v297 = vld [vmem:[%s1 + $0x1b8] sm:$0xf]
      %v298 = vld [vmem:[%s1 + $0x1bc] sm:$0xf]
      %v299 = vld [vmem:[%s1 + $0x1c0] sm:$0xf]
      %v300 = vld [vmem:[%s1 + $0x1c4] sm:$0xf]
      %v301 = vld [vmem:[%s1 + $0x1c8] sm:$0xf]
      %v302 = vld [vmem:[%s1 + $0x1cc] sm:$0xf]
      %v303 = vld [vmem:[%s1 + $0x1d0] sm:$0xf]
      %v304 = vld [vmem:[%s1 + $0x1d4] sm:$0xf]
      %v305 = vld [vmem:[%s1 + $0x1d8] sm:$0xf]
      %v306 = vld [vmem:[%s1 + $0x1dc] sm:$0xf]
      %v307 = vld [vmem:[%s1 + $0x1e0] sm:$0xf]
      %v308 = vld [vmem:[%s1 + $0x1e4] sm:$0xf]
      %v309 = vld [vmem:[%s1 + $0x1e8] sm:$0xf]
      %v310 = vld [vmem:[%s1 + $0x1ec] sm:$0xf]
      %v311 = vld [vmem:[%s1 + $0x1f0] sm:$0xf]
      %v312 = vld [vmem:[%s1 + $0x1f4] sm:$0xf]
      %v313 = vld [vmem:[%s1 + $0x1f8] sm:$0xf]
      %v314 = vld [vmem:[%s1 + $0x1fc] sm:$0xf]
      %v315 = vld [vmem:[%s1 + $0x200] sm:$0xf]
      %v316 = vld [vmem:[%s1 + $0x204] sm:$0xf]
      %v317 = vld [vmem:[%s1 + $0x208] sm:$0xf]
      %v318 = vld [vmem:[%s1 + $0x20c] sm:$0xf]
      %v319 = vld [vmem:[%s1 + $0x210] sm:$0xf]
      %v320 = vld [vmem:[%s1 + $0x214] sm:$0xf]
      %v321 = vld [vmem:[%s1 + $0x218] sm:$0xf]
      %v322 = vld [vmem:[%s1 + $0x21c] sm:$0xf]
      %v323 = vld [vmem:[%s1 + $0x220] sm:$0xf]
      %v324 = vld [vmem:[%s1 + $0x224] sm:$0xf]
      %v325 = vld [vmem:[%s1 + $0x228] sm:$0xf]
      %v326 = vld [vmem:[%s1 + $0x22c] sm:$0xf]
      %v327 = vld [vmem:[%s1 + $0x230] sm:$0xf]
      %v328 = vld [vmem:[%s1 + $0x234] sm:$0xf]
      %v329 = vld [vmem:[%s1 + $0x238] sm:$0xf]
      %v330 = vld [vmem:[%s1 + $0x23c] sm:$0xf]
      %v331 = vld [vmem:[%s1 + $0x240] sm:$0xf]
      %v332 = vld [vmem:[%s1 + $0x244] sm:$0xf]
      %v333 = vld [vmem:[%s1 + $0x248] sm:$0xf]
      %v334 = vld [vmem:[%s1 + $0x24c] sm:$0xf]
      %v335 = vld [vmem:[%s1 + $0x250] sm:$0xf]
      %v336 = vld [vmem:[%s1 + $0x254] sm:$0xf]
      %v337 = vld [vmem:[%s1 + $0x258] sm:$0xf]
      %v338 = vld [vmem:[%s1 + $0x25c] sm:$0xf]
      %v339 = vld [vmem:[%s1 + $0x260] sm:$0xf]
      %v340 = vld [vmem:[%s1 + $0x264] sm:$0xf]
      %v341 = vld [vmem:[%s1 + $0x268] sm:$0xf]
      %v342 = vld [vmem:[%s1 + $0x26c] sm:$0xf]
      %v343 = vld [vmem:[%s1 + $0x270] sm:$0xf]
      %v344 = vld [vmem:[%s1 + $0x274] sm:$0xf]
      %v345 = vld [vmem:[%s1 + $0x278] sm:$0xf]
      %v346 = vld [vmem:[%s1 + $0x27c] sm:$0xf]
      %v347 = vld [vmem:[%s1 + $0x280] sm:$0xf]
      %v348 = vld [vmem:[%s1 + $0x284] sm:$0xf]
      %v349 = vld [vmem:[%s1 + $0x288] sm:$0xf]
      %v350 = vld [vmem:[%s1 + $0x28c] sm:$0xf]
      %v351 = vld [vmem:[%s1 + $0x290] sm:$0xf]
      %v352 = vld [vmem:[%s1 + $0x294] sm:$0xf]
      %v353 = vld [vmem:[%s1 + $0x298] sm:$0xf]
      %v354 = vld [vmem:[%s1 + $0x29c] sm:$0xf]
      %v355 = vld [vmem:[%s1 + $0x2a0] sm:$0xf]
      %v356 = vld [vmem:[%s1 + $0x2a4] sm:$0xf]
      %v357 = vld [vmem:[%s1 + $0x2a8] sm:$0xf]
      %v358 = vld [vmem:[%s1 + $0x2ac] sm:$0xf]
      %v359 = vld [vmem:[%s1 + $0x2b0] sm:$0xf]
      %v360 = vld [vmem:[%s1 + $0x2b4] sm:$0xf]
      %v361 = vld [vmem:[%s1 + $0x2b8] sm:$0xf]
      %v362 = vld [vmem:[%s1 + $0x2bc] sm:$0xf]
      %v363 = vld [vmem:[%s1 + $0x2c0] sm:$0xf]
      %v364 = vld [vmem:[%s1 + $0x2c4] sm:$0xf]
      %v365 = vld [vmem:[%s1 + $0x2c8] sm:$0xf]
      %v366 = vld [vmem:[%s1 + $0x2cc] sm:$0xf]
      %v367 = vld [vmem:[%s1 + $0x2d0] sm:$0xf]
      %v368 = vld [vmem:[%s1 + $0x2d4] sm:$0xf]
      %v369 = vld [vmem:[%s1 + $0x2d8] sm:$0xf]
      %v370 = vld [vmem:[%s1 + $0x2dc] sm:$0xf]
      %v371 = vld [vmem:[%s1 + $0x2e0] sm:$0xf]
      %v372 = vld [vmem:[%s1 + $0x2e4] sm:$0xf]
      %v373 = vld [vmem:[%s1 + $0x2e8] sm:$0xf]
      %v374 = vld [vmem:[%s1 + $0x2ec] sm:$0xf]
      %v375 = vld [vmem:[%s1 + $0x2f0] sm:$0xf]
      %v376 = vld [vmem:[%s1 + $0x2f4] sm:$0xf]
      %v377 = vld [vmem:[%s1 + $0x2f8] sm:$0xf]
      %v378 = vld [vmem:[%s1 + $0x2fc] sm:$0xf]
      %v379 = vld [vmem:[%s1 + $0x300] sm:$0xf]
      %v380 = vld [vmem:[%s1 + $0x304] sm:$0xf]
      %v381 = vld [vmem:[%s1 + $0x308] sm:$0xf]
      %v382 = vld [vmem:[%s1 + $0x30c] sm:$0xf]
      %v383 = vld [vmem:[%s1 + $0x310] sm:$0xf]
      %v384 = vld [vmem:[%s1 + $0x314] sm:$0xf]
      %v385 = vld [vmem:[%s1 + $0x318] sm:$0xf]
      %v386 = vld [vmem:[%s1 + $0x31c] sm:$0xf]
      %v387 = vld [vmem:[%s1 + $0x320] sm:$0xf]
      %v388 = vld [vmem:[%s1 + $0x324] sm:$0xf]
      %v389 = vld [vmem:[%s1 + $0x328] sm:$0xf]
      %v390 = vld [vmem:[%s1 + $0x32c] sm:$0xf]
      %v391 = vld [vmem:[%s1 + $0x330] sm:$0xf]
      %v392 = vld [vmem:[%s1 + $0x334] sm:$0xf]
      %v393 = vld [vmem:[%s1 + $0x338] sm:$0xf]
      %v394 = vld [vmem:[%s1 + $0x33c] sm:$0xf]
      %v395 = vld [vmem:[%s1 + $0x340] sm:$0xf]
      %v396 = vld [vmem:[%s1 + $0x344] sm:$0xf]
      %v397 = vld [vmem:[%s1 + $0x348] sm:$0xf]
      %v398 = vld [vmem:[%s1 + $0x34c] sm:$0xf]
      %v399 = vld [vmem:[%s1 + $0x350] sm:$0xf]
      %v400 = vld [vmem:[%s1 + $0x354] sm:$0xf]
      %v401 = vld [vmem:[%s1 + $0x358] sm:$0xf]
      %v402 = vld [vmem:[%s1 + $0x35c] sm:$0xf]
      %v403 = vld [vmem:[%s1 + $0x360] sm:$0xf]
      %v404 = vld [vmem:[%s1 + $0x364] sm:$0xf]
      %v405 = vld [vmem:[%s1 + $0x368] sm:$0xf]
      %v406 = vld [vmem:[%s1 + $0x36c] sm:$0xf]
      %v407 = vld [vmem:[%s1 + $0x370] sm:$0xf]
      %v408 = vld [vmem:[%s1 + $0x374] sm:$0xf]
      %v409 = vld [vmem:[%s1 + $0x378] sm:$0xf]
      %v410 = vld [vmem:[%s1 + $0x37c] sm:$0xf]
      %v411 = vld [vmem:[%s1 + $0x380] sm:$0xf]
      %v412 = vld [vmem:[%s1 + $0x384] sm:$0xf]
      %v413 = vld [vmem:[%s1 + $0x388] sm:$0xf]
      %v414 = vld [vmem:[%s1 + $0x38c] sm:$0xf]
      %v415 = vld [vmem:[%s1 + $0x390] sm:$0xf]
      %v416 = vld [vmem:[%s1 + $0x394] sm:$0xf]
      %v417 = vld [vmem:[%s1 + $0x398] sm:$0xf]
      %v418 = vld [vmem:[%s1 + $0x39c] sm:$0xf]
      %v419 = vld [vmem:[%s1 + $0x3a0] sm:$0xf]
      %v420 = vld [vmem:[%s1 + $0x3a4] sm:$0xf]
      %v421 = vld [vmem:[%s1 + $0x3a8] sm:$0xf]
      %v422 = vld [vmem:[%s1 + $0x3ac] sm:$0xf]
      %v423 = vld [vmem:[%s1 + $0x3b0] sm:$0xf]
      %v424 = vld [vmem:[%s1 + $0x3b4] sm:$0xf]
      %v425 = vld [vmem:[%s1 + $0x3b8] sm:$0xf]
      %v426 = vld [vmem:[%s1 + $0x3bc] sm:$0xf]
      %v427 = vld [vmem:[%s1 + $0x3c0] sm:$0xf]
      %v428 = vld [vmem:[%s1 + $0x3c4] sm:$0xf]
      %v429 = vld [vmem:[%s1 + $0x3c8] sm:$0xf]
      %v430 = vld [vmem:[%s1 + $0x3cc] sm:$0xf]
      %v431 = vld [vmem:[%s1 + $0x3d0] sm:$0xf]
      %v432 = vld [vmem:[%s1 + $0x3d4] sm:$0xf]
      %v433 = vld [vmem:[%s1 + $0x3d8] sm:$0xf]
      %v434 = vld [vmem:[%s1 + $0x3dc] sm:$0xf]
      %v435 = vld [vmem:[%s1 + $0x3e0] sm:$0xf]
      %v436 = vld [vmem:[%s1 + $0x3e4] sm:$0xf]
      %v437 = vld [vmem:[%s1 + $0x3e8] sm:$0xf]
      %v438 = vld [vmem:[%s1 + $0x3ec] sm:$0xf]
      %v439 = vld [vmem:[%s1 + $0x3f0] sm:$0xf]
      %v440 = vld [vmem:[%s1 + $0x3f4] sm:$0xf]
      %v441 = vld [vmem:[%s1 + $0x3f8] sm:$0xf]
      %v442 = vld [vmem:[%s1 + $0x3fc] sm:$0xf]
      %v443 = vld [vmem:[%s1 + $0x400] sm:$0xf]
      %v444 = vld [vmem:[%s1 + $0x404] sm:$0xf]
      %v445 = vld [vmem:[%s1 + $0x408] sm:$0xf]
      %v446 = vld [vmem:[%s1 + $0x40c] sm:$0xf]
      %v447 = vld [vmem:[%s1 + $0x410] sm:$0xf]
      %v448 = vld [vmem:[%s1 + $0x414] sm:$0xf]
      %v449 = vld [vmem:[%s1 + $0x418] sm:$0xf]
      %v450 = vld [vmem:[%s1 + $0x41c] sm:$0xf]
      %v451 = vld [vmem:[%s1 + $0x420] sm:$0xf]
      %v452 = vld [vmem:[%s1 + $0x424] sm:$0xf]
      %v453 = vld [vmem:[%s1 + $0x428] sm:$0xf]
      %v454 = vld [vmem:[%s1 + $0x42c] sm:$0xf]
      %v455 = vld [vmem:[%s1 + $0x430] sm:$0xf]
      %v456 = vld [vmem:[%s1 + $0x434] sm:$0xf]
      %v457 = vld [vmem:[%s1 + $0x438] sm:$0xf]
      %v458 = vld [vmem:[%s1 + $0x43c] sm:$0xf]
      %v495 = vunpack.c.l.b16 %v151
      %v496 = vunpack.c.h.b16 %v151
      %v497 = vunpack.c.l.b16 %v152
      %v498 = vunpack.c.h.b16 %v152
      %v499 = vunpack.c.l.b16 %v153
      %v500 = vunpack.c.h.b16 %v153
      %v501 = vunpack.c.l.b16 %v154
      %v502 = vunpack.c.h.b16 %v154
      %v503 = vunpack.c.l.b16 %v155
      %v504 = vunpack.c.h.b16 %v155
      %v505 = vunpack.c.l.b16 %v156
      %v506 = vunpack.c.h.b16 %v156
      %v507 = vunpack.c.l.b16 %v157
      %v508 = vunpack.c.h.b16 %v157
      %v509 = vunpack.c.l.b16 %v158
      %v510 = vunpack.c.h.b16 %v158
      %v511 = vunpack.c.l.b16 %v159
      %v512 = vunpack.c.l.b16 %v160
      %v513 = vunpack.c.h.b16 %v160
      %v514 = vunpack.c.l.b16 %v161
      %v515 = vunpack.c.h.b16 %v161
      %v516 = vunpack.c.l.b16 %v162
      %v517 = vunpack.c.h.b16 %v162
      %v518 = vunpack.c.l.b16 %v163
      %v519 = vunpack.c.h.b16 %v163
      %v520 = vunpack.c.l.b16 %v164
      %v521 = vunpack.c.h.b16 %v164
      %v522 = vunpack.c.l.b16 %v165
      %v523 = vunpack.c.h.b16 %v165
      %v524 = vunpack.c.l.b16 %v166
      %v525 = vunpack.c.h.b16 %v166
      %v526 = vunpack.c.l.b16 %v167
      %v527 = vunpack.c.h.b16 %v167
      %v528 = vunpack.c.l.b16 %v168
      %v529 = vunpack.c.l.b16 %v169
      %v530 = vunpack.c.h.b16 %v169
      %v531 = vunpack.c.l.b16 %v170
      %v532 = vunpack.c.h.b16 %v170
      %v533 = vunpack.c.l.b16 %v171
      %v534 = vunpack.c.h.b16 %v171
      %v535 = vunpack.c.l.b16 %v172
      %v536 = vunpack.c.h.b16 %v172
      %v537 = vunpack.c.l.b16 %v173
      %v538 = vunpack.c.h.b16 %v173
      %v539 = vunpack.c.l.b16 %v174
      %v540 = vunpack.c.h.b16 %v174
      %v541 = vunpack.c.l.b16 %v175
      %v542 = vunpack.c.h.b16 %v175
      %v543 = vunpack.c.l.b16 %v176
      %v544 = vunpack.c.h.b16 %v176
      %v545 = vunpack.c.l.b16 %v177
      %v546 = vunpack.c.l.b16 %v178
      %v547 = vunpack.c.h.b16 %v178
      %v548 = vunpack.c.l.b16 %v179
      %v549 = vunpack.c.h.b16 %v179
      %v550 = vunpack.c.l.b16 %v180
      %v551 = vunpack.c.h.b16 %v180
      %v552 = vunpack.c.l.b16 %v181
      %v553 = vunpack.c.h.b16 %v181
      %v554 = vunpack.c.l.b16 %v182
      %v555 = vunpack.c.h.b16 %v182
      %v556 = vunpack.c.l.b16 %v183
      %v557 = vunpack.c.h.b16 %v183
      %v558 = vunpack.c.l.b16 %v184
      %v559 = vunpack.c.h.b16 %v184
      %v560 = vunpack.c.l.b16 %v185
      %v561 = vunpack.c.h.b16 %v185
      %v562 = vunpack.c.l.b16 %v186
      %v563 = vpack.c.b16 %v512, %v495
      %v564 = vpack.c.b16 %v513, %v496
      %v565 = vpack.c.b16 %v514, %v497
      %v566 = vpack.c.b16 %v515, %v498
      %v567 = vpack.c.b16 %v516, %v499
      %v568 = vpack.c.b16 %v517, %v500
      %v569 = vpack.c.b16 %v518, %v501
      %v570 = vpack.c.b16 %v519, %v502
      %v571 = vpack.c.b16 %v520, %v503
      %v572 = vpack.c.b16 %v521, %v504
      %v573 = vpack.c.b16 %v522, %v505
      %v574 = vpack.c.b16 %v523, %v506
      %v575 = vpack.c.b16 %v524, %v507
      %v576 = vpack.c.b16 %v525, %v508
      %v577 = vpack.c.b16 %v526, %v509
      %v578 = vpack.c.b16 %v527, %v510
      %v579 = vpack.c.b16 %v528, %v511
      %v580 = vpack.c.b16 %v546, %v529
      %v581 = vpack.c.b16 %v547, %v530
      %v582 = vpack.c.b16 %v548, %v531
      %v583 = vpack.c.b16 %v549, %v532
      %v584 = vpack.c.b16 %v550, %v533
      %v585 = vpack.c.b16 %v551, %v534
      %v586 = vpack.c.b16 %v552, %v535
      %v587 = vpack.c.b16 %v553, %v536
      %v588 = vpack.c.b16 %v554, %v537
      %v589 = vpack.c.b16 %v555, %v538
      %v590 = vpack.c.b16 %v556, %v539
      %v591 = vpack.c.b16 %v557, %v540
      %v592 = vpack.c.b16 %v558, %v541
      %v593 = vpack.c.b16 %v559, %v542
      %v594 = vpack.c.b16 %v560, %v543
      %v595 = vpack.c.b16 %v561, %v544
      %v596 = vpack.c.b16 %v562, %v545
      %v903 = vunpack.c.l.b16 %v187
      %v904 = vunpack.c.l.b16 %v188
      %v905 = vunpack.c.l.b16 %v189
      %v906 = vunpack.c.l.b16 %v190
      %v907 = vunpack.c.l.b16 %v191
      %v908 = vunpack.c.l.b16 %v192
      %v909 = vunpack.c.l.b16 %v193
      %v910 = vunpack.c.l.b16 %v194
      %v911 = vunpack.c.l.b16 %v195
      %v912 = vunpack.c.l.b16 %v196
      %v913 = vunpack.c.l.b16 %v197
      %v914 = vunpack.c.l.b16 %v198
      %v915 = vunpack.c.l.b16 %v199
      %v916 = vunpack.c.l.b16 %v200
      %v917 = vunpack.c.l.b16 %v201
      %v918 = vunpack.c.l.b16 %v202
      %v919 = vunpack.c.l.b16 %v203
      %v920 = vunpack.c.l.b16 %v204
      %v921 = vunpack.c.l.b16 %v205
      %v922 = vunpack.c.l.b16 %v206
      %v923 = vunpack.c.l.b16 %v207
      %v924 = vunpack.c.l.b16 %v208
      %v925 = vunpack.c.l.b16 %v209
      %v926 = vunpack.c.l.b16 %v210
      %v927 = vunpack.c.l.b16 %v211
      %v928 = vunpack.c.l.b16 %v212
      %v929 = vunpack.c.l.b16 %v213
      %v930 = vunpack.c.l.b16 %v214
      %v931 = vunpack.c.l.b16 %v215
      %v932 = vunpack.c.l.b16 %v216
      %v933 = vunpack.c.l.b16 %v217
      %v934 = vunpack.c.l.b16 %v218
      %v935 = vunpack.c.l.b16 %v219
      %v936 = vunpack.c.l.b16 %v220
      %v937 = vunpack.c.l.b16 %v221
      %v938 = vunpack.c.l.b16 %v222
      %v939 = vunpack.c.l.b16 %v223
      %v940 = vunpack.c.l.b16 %v224
      %v941 = vunpack.c.l.b16 %v225
      %v942 = vunpack.c.l.b16 %v226
      %v943 = vunpack.c.l.b16 %v227
      %v944 = vunpack.c.l.b16 %v228
      %v945 = vunpack.c.l.b16 %v229
      %v946 = vunpack.c.l.b16 %v230
      %v947 = vunpack.c.l.b16 %v231
      %v948 = vunpack.c.l.b16 %v232
      %v949 = vunpack.c.l.b16 %v233
      %v950 = vunpack.c.l.b16 %v234
      %v951 = vunpack.c.l.b16 %v235
      %v952 = vunpack.c.l.b16 %v236
      %v953 = vunpack.c.l.b16 %v237
      %v954 = vunpack.c.l.b16 %v238
      %v955 = vunpack.c.l.b16 %v239
      %v956 = vunpack.c.l.b16 %v240
      %v957 = vunpack.c.l.b16 %v241
      %v958 = vunpack.c.l.b16 %v242
      %v959 = vunpack.c.l.b16 %v243
      %v960 = vunpack.c.l.b16 %v244
      %v961 = vunpack.c.l.b16 %v245
      %v962 = vunpack.c.l.b16 %v246
      %v963 = vunpack.c.l.b16 %v247
      %v964 = vunpack.c.l.b16 %v248
      %v965 = vunpack.c.l.b16 %v249
      %v966 = vunpack.c.l.b16 %v250
      %v967 = vunpack.c.l.b16 %v251
      %v968 = vunpack.c.l.b16 %v252
      %v969 = vunpack.c.l.b16 %v253
      %v970 = vunpack.c.l.b16 %v254
      %v971 = vunpack.c.l.b16 %v255
      %v972 = vunpack.c.l.b16 %v256
      %v973 = vunpack.c.l.b16 %v257
      %v974 = vunpack.c.l.b16 %v258
      %v975 = vunpack.c.l.b16 %v259
      %v976 = vunpack.c.l.b16 %v260
      %v977 = vunpack.c.l.b16 %v261
      %v978 = vunpack.c.l.b16 %v262
      %v979 = vunpack.c.l.b16 %v263
      %v980 = vunpack.c.l.b16 %v264
      %v981 = vunpack.c.l.b16 %v265
      %v982 = vunpack.c.l.b16 %v266
      %v983 = vunpack.c.l.b16 %v267
      %v984 = vunpack.c.l.b16 %v268
      %v985 = vunpack.c.l.b16 %v269
      %v986 = vunpack.c.l.b16 %v270
      %v987 = vunpack.c.l.b16 %v271
      %v988 = vunpack.c.l.b16 %v272
      %v989 = vunpack.c.l.b16 %v273
      %v990 = vunpack.c.l.b16 %v274
      %v991 = vunpack.c.l.b16 %v275
      %v992 = vunpack.c.l.b16 %v276
      %v993 = vunpack.c.l.b16 %v277
      %v994 = vunpack.c.l.b16 %v278
      %v995 = vunpack.c.l.b16 %v279
      %v996 = vunpack.c.l.b16 %v280
      %v997 = vunpack.c.l.b16 %v281
      %v998 = vunpack.c.l.b16 %v282
      %v999 = vunpack.c.l.b16 %v283
      %v1000 = vunpack.c.l.b16 %v284
      %v1001 = vunpack.c.l.b16 %v285
      %v1002 = vunpack.c.l.b16 %v286
      %v1003 = vunpack.c.l.b16 %v287
      %v1004 = vunpack.c.l.b16 %v288
      %v1005 = vunpack.c.l.b16 %v289
      %v1006 = vunpack.c.l.b16 %v290
      %v1007 = vunpack.c.l.b16 %v291
      %v1008 = vunpack.c.l.b16 %v292
      %v1009 = vunpack.c.l.b16 %v293
      %v1010 = vunpack.c.l.b16 %v294
      %v1011 = vunpack.c.l.b16 %v295
      %v1012 = vunpack.c.l.b16 %v296
      %v1013 = vunpack.c.l.b16 %v297
      %v1014 = vunpack.c.l.b16 %v298
      %v1015 = vunpack.c.l.b16 %v299
      %v1016 = vunpack.c.l.b16 %v300
      %v1017 = vunpack.c.l.b16 %v301
      %v1018 = vunpack.c.l.b16 %v302
      %v1019 = vunpack.c.l.b16 %v303
      %v1020 = vunpack.c.l.b16 %v304
      %v1021 = vunpack.c.l.b16 %v305
      %v1022 = vunpack.c.l.b16 %v306
      %v1023 = vunpack.c.l.b16 %v307
      %v1024 = vunpack.c.l.b16 %v308
      %v1025 = vunpack.c.l.b16 %v309
      %v1026 = vunpack.c.l.b16 %v310
      %v1027 = vunpack.c.l.b16 %v311
      %v1028 = vunpack.c.l.b16 %v312
      %v1029 = vunpack.c.l.b16 %v313
      %v1030 = vunpack.c.l.b16 %v314
      %v1031 = vunpack.c.l.b16 %v315
      %v1032 = vunpack.c.l.b16 %v316
      %v1033 = vunpack.c.l.b16 %v317
      %v1034 = vunpack.c.l.b16 %v318
      %v1035 = vunpack.c.l.b16 %v319
      %v1036 = vunpack.c.l.b16 %v320
      %v1037 = vunpack.c.l.b16 %v321
      %v1038 = vunpack.c.l.b16 %v322
      %v1039 = vunpack.c.l.b16 %v323
      %v1040 = vunpack.c.l.b16 %v324
      %v1041 = vunpack.c.l.b16 %v325
      %v1042 = vunpack.c.l.b16 %v326
      %v1043 = vunpack.c.l.b16 %v327
      %v1044 = vunpack.c.l.b16 %v328
      %v1045 = vunpack.c.l.b16 %v329
      %v1046 = vunpack.c.l.b16 %v330
      %v1047 = vunpack.c.l.b16 %v331
      %v1048 = vunpack.c.l.b16 %v332
      %v1049 = vunpack.c.l.b16 %v333
      %v1050 = vunpack.c.l.b16 %v334
      %v1051 = vunpack.c.l.b16 %v335
      %v1052 = vunpack.c.l.b16 %v336
      %v1053 = vunpack.c.l.b16 %v337
      %v1054 = vunpack.c.l.b16 %v338
      %v1055 = vunpack.c.l.b16 %v339
      %v1056 = vunpack.c.l.b16 %v340
      %v1057 = vunpack.c.l.b16 %v341
      %v1058 = vunpack.c.l.b16 %v342
      %v1059 = vunpack.c.l.b16 %v343
      %v1060 = vunpack.c.l.b16 %v344
      %v1061 = vunpack.c.l.b16 %v345
      %v1062 = vunpack.c.l.b16 %v346
      %v1063 = vunpack.c.l.b16 %v347
      %v1064 = vunpack.c.l.b16 %v348
      %v1065 = vunpack.c.l.b16 %v349
      %v1066 = vunpack.c.l.b16 %v350
      %v1067 = vunpack.c.l.b16 %v351
      %v1068 = vunpack.c.l.b16 %v352
      %v1069 = vunpack.c.l.b16 %v353
      %v1070 = vunpack.c.l.b16 %v354
      %v1071 = vunpack.c.l.b16 %v355
      %v1072 = vunpack.c.l.b16 %v356
      %v1073 = vunpack.c.l.b16 %v357
      %v1074 = vunpack.c.l.b16 %v358
      %v1075 = vunpack.c.l.b16 %v359
      %v1076 = vunpack.c.l.b16 %v360
      %v1077 = vunpack.c.l.b16 %v361
      %v1078 = vunpack.c.l.b16 %v362
      %v1079 = vunpack.c.l.b16 %v363
      %v1080 = vunpack.c.l.b16 %v364
      %v1081 = vunpack.c.l.b16 %v365
      %v1082 = vunpack.c.l.b16 %v366
      %v1083 = vunpack.c.l.b16 %v367
      %v1084 = vunpack.c.l.b16 %v368
      %v1085 = vunpack.c.l.b16 %v369
      %v1086 = vunpack.c.l.b16 %v370
      %v1087 = vunpack.c.l.b16 %v371
      %v1088 = vunpack.c.l.b16 %v372
      %v1089 = vunpack.c.l.b16 %v373
      %v1090 = vunpack.c.l.b16 %v374
      %v1091 = vunpack.c.l.b16 %v375
      %v1092 = vunpack.c.l.b16 %v376
      %v1093 = vunpack.c.l.b16 %v377
      %v1094 = vunpack.c.l.b16 %v378
      %v1095 = vunpack.c.l.b16 %v379
      %v1096 = vunpack.c.l.b16 %v380
      %v1097 = vunpack.c.l.b16 %v381
      %v1098 = vunpack.c.l.b16 %v382
      %v1099 = vunpack.c.l.b16 %v383
      %v1100 = vunpack.c.l.b16 %v384
      %v1101 = vunpack.c.l.b16 %v385
      %v1102 = vunpack.c.l.b16 %v386
      %v1103 = vunpack.c.l.b16 %v387
      %v1104 = vunpack.c.l.b16 %v388
      %v1105 = vunpack.c.l.b16 %v389
      %v1106 = vunpack.c.l.b16 %v390
      %v1107 = vunpack.c.l.b16 %v391
      %v1108 = vunpack.c.l.b16 %v392
      %v1109 = vunpack.c.l.b16 %v393
      %v1110 = vunpack.c.l.b16 %v394
      %v1111 = vunpack.c.l.b16 %v395
      %v1112 = vunpack.c.l.b16 %v396
      %v1113 = vunpack.c.l.b16 %v397
      %v1114 = vunpack.c.l.b16 %v398
      %v1115 = vunpack.c.l.b16 %v399
      %v1116 = vunpack.c.l.b16 %v400
      %v1117 = vunpack.c.l.b16 %v401
      %v1118 = vunpack.c.l.b16 %v402
      %v1119 = vunpack.c.l.b16 %v403
      %v1120 = vunpack.c.l.b16 %v404
      %v1121 = vunpack.c.l.b16 %v405
      %v1122 = vunpack.c.l.b16 %v406
      %v1123 = vunpack.c.l.b16 %v407
      %v1124 = vunpack.c.l.b16 %v408
      %v1125 = vunpack.c.l.b16 %v409
      %v1126 = vunpack.c.l.b16 %v410
      %v1127 = vunpack.c.l.b16 %v411
      %v1128 = vunpack.c.l.b16 %v412
      %v1129 = vunpack.c.l.b16 %v413
      %v1130 = vunpack.c.l.b16 %v414
      %v1131 = vunpack.c.l.b16 %v415
      %v1132 = vunpack.c.l.b16 %v416
      %v1133 = vunpack.c.l.b16 %v417
      %v1134 = vunpack.c.l.b16 %v418
      %v1135 = vunpack.c.l.b16 %v419
      %v1136 = vunpack.c.l.b16 %v420
      %v1137 = vunpack.c.l.b16 %v421
      %v1138 = vunpack.c.l.b16 %v422
      %v1139 = vunpack.c.l.b16 %v423
      %v1140 = vunpack.c.l.b16 %v424
      %v1141 = vunpack.c.l.b16 %v425
      %v1142 = vunpack.c.l.b16 %v426
      %v1143 = vunpack.c.l.b16 %v427
      %v1144 = vunpack.c.l.b16 %v428
      %v1145 = vunpack.c.l.b16 %v429
      %v1146 = vunpack.c.l.b16 %v430
      %v1147 = vunpack.c.l.b16 %v431
      %v1148 = vunpack.c.l.b16 %v432
      %v1149 = vunpack.c.l.b16 %v433
      %v1150 = vunpack.c.l.b16 %v434
      %v1151 = vunpack.c.l.b16 %v435
      %v1152 = vunpack.c.l.b16 %v436
      %v1153 = vunpack.c.l.b16 %v437
      %v1154 = vunpack.c.l.b16 %v438
      %v1155 = vunpack.c.l.b16 %v439
      %v1156 = vunpack.c.l.b16 %v440
      %v1157 = vunpack.c.l.b16 %v441
      %v1158 = vunpack.c.l.b16 %v442
      %v1159 = vunpack.c.l.b16 %v443
      %v1160 = vunpack.c.l.b16 %v444
      %v1161 = vunpack.c.l.b16 %v445
      %v1162 = vunpack.c.l.b16 %v446
      %v1163 = vunpack.c.l.b16 %v447
      %v1164 = vunpack.c.l.b16 %v448
      %v1165 = vunpack.c.l.b16 %v449
      %v1166 = vunpack.c.l.b16 %v450
      %v1167 = vunpack.c.l.b16 %v451
      %v1168 = vunpack.c.l.b16 %v452
      %v1169 = vunpack.c.l.b16 %v453
      %v1170 = vunpack.c.l.b16 %v454
      %v1171 = vunpack.c.l.b16 %v455
      %v1172 = vunpack.c.l.b16 %v456
      %v1173 = vunpack.c.l.b16 %v457
      %v1174 = vunpack.c.l.b16 %v458
      %v1175 = vpack.c.b16 %v904, %v903
      %v1176 = vpack.c.b16 %v906, %v905
      %v1177 = vpack.c.b16 %v908, %v907
      %v1178 = vpack.c.b16 %v910, %v909
      %v1179 = vpack.c.b16 %v912, %v911
      %v1180 = vpack.c.b16 %v914, %v913
      %v1181 = vpack.c.b16 %v916, %v915
      %v1182 = vpack.c.b16 %v918, %v917
      %v1183 = vpack.c.b16 %v920, %v919
      %v1184 = vpack.c.b16 %v922, %v921
      %v1185 = vpack.c.b16 %v924, %v923
      %v1186 = vpack.c.b16 %v926, %v925
      %v1187 = vpack.c.b16 %v928, %v927
      %v1188 = vpack.c.b16 %v930, %v929
      %v1189 = vpack.c.b16 %v932, %v931
      %v1190 = vpack.c.b16 %v934, %v933
      %v1191 = vpack.c.b16 %v936, %v935
      %v1192 = vpack.c.b16 %v938, %v937
      %v1193 = vpack.c.b16 %v940, %v939
      %v1194 = vpack.c.b16 %v942, %v941
      %v1195 = vpack.c.b16 %v944, %v943
      %v1196 = vpack.c.b16 %v946, %v945
      %v1197 = vpack.c.b16 %v948, %v947
      %v1198 = vpack.c.b16 %v950, %v949
      %v1199 = vpack.c.b16 %v952, %v951
      %v1200 = vpack.c.b16 %v954, %v953
      %v1201 = vpack.c.b16 %v956, %v955
      %v1202 = vpack.c.b16 %v958, %v957
      %v1203 = vpack.c.b16 %v960, %v959
      %v1204 = vpack.c.b16 %v962, %v961
      %v1205 = vpack.c.b16 %v964, %v963
      %v1206 = vpack.c.b16 %v966, %v965
      %v1207 = vpack.c.b16 %v968, %v967
      %v1208 = vpack.c.b16 %v970, %v969
      %v1209 = vpack.c.b16 %v972, %v971
      %v1210 = vpack.c.b16 %v974, %v973
      %v1211 = vpack.c.b16 %v976, %v975
      %v1212 = vpack.c.b16 %v978, %v977
      %v1213 = vpack.c.b16 %v980, %v979
      %v1214 = vpack.c.b16 %v982, %v981
      %v1215 = vpack.c.b16 %v984, %v983
      %v1216 = vpack.c.b16 %v986, %v985
      %v1217 = vpack.c.b16 %v988, %v987
      %v1218 = vpack.c.b16 %v990, %v989
      %v1219 = vpack.c.b16 %v992, %v991
      %v1220 = vpack.c.b16 %v994, %v993
      %v1221 = vpack.c.b16 %v996, %v995
      %v1222 = vpack.c.b16 %v998, %v997
      %v1223 = vpack.c.b16 %v1000, %v999
      %v1224 = vpack.c.b16 %v1002, %v1001
      %v1225 = vpack.c.b16 %v1004, %v1003
      %v1226 = vpack.c.b16 %v1006, %v1005
      %v1227 = vpack.c.b16 %v1008, %v1007
      %v1228 = vpack.c.b16 %v1010, %v1009
      %v1229 = vpack.c.b16 %v1012, %v1011
      %v1230 = vpack.c.b16 %v1014, %v1013
      %v1231 = vpack.c.b16 %v1016, %v1015
      %v1232 = vpack.c.b16 %v1018, %v1017
      %v1233 = vpack.c.b16 %v1020, %v1019
      %v1234 = vpack.c.b16 %v1022, %v1021
      %v1235 = vpack.c.b16 %v1024, %v1023
      %v1236 = vpack.c.b16 %v1026, %v1025
      %v1237 = vpack.c.b16 %v1028, %v1027
      %v1238 = vpack.c.b16 %v1030, %v1029
      %v1239 = vpack.c.b16 %v1032, %v1031
      %v1240 = vpack.c.b16 %v1034, %v1033
      %v1241 = vpack.c.b16 %v1036, %v1035
      %v1242 = vpack.c.b16 %v1038, %v1037
      %v1243 = vpack.c.b16 %v1040, %v1039
      %v1244 = vpack.c.b16 %v1042, %v1041
      %v1245 = vpack.c.b16 %v1044, %v1043
      %v1246 = vpack.c.b16 %v1046, %v1045
      %v1247 = vpack.c.b16 %v1048, %v1047
      %v1248 = vpack.c.b16 %v1050, %v1049
      %v1249 = vpack.c.b16 %v1052, %v1051
      %v1250 = vpack.c.b16 %v1054, %v1053
      %v1251 = vpack.c.b16 %v1056, %v1055
      %v1252 = vpack.c.b16 %v1058, %v1057
      %v1253 = vpack.c.b16 %v1060, %v1059
      %v1254 = vpack.c.b16 %v1062, %v1061
      %v1255 = vpack.c.b16 %v1064, %v1063
      %v1256 = vpack.c.b16 %v1066, %v1065
      %v1257 = vpack.c.b16 %v1068, %v1067
      %v1258 = vpack.c.b16 %v1070, %v1069
      %v1259 = vpack.c.b16 %v1072, %v1071
      %v1260 = vpack.c.b16 %v1074, %v1073
      %v1261 = vpack.c.b16 %v1076, %v1075
      %v1262 = vpack.c.b16 %v1078, %v1077
      %v1263 = vpack.c.b16 %v1080, %v1079
      %v1264 = vpack.c.b16 %v1082, %v1081
      %v1265 = vpack.c.b16 %v1084, %v1083
      %v1266 = vpack.c.b16 %v1086, %v1085
      %v1267 = vpack.c.b16 %v1088, %v1087
      %v1268 = vpack.c.b16 %v1090, %v1089
      %v1269 = vpack.c.b16 %v1092, %v1091
      %v1270 = vpack.c.b16 %v1094, %v1093
      %v1271 = vpack.c.b16 %v1096, %v1095
      %v1272 = vpack.c.b16 %v1098, %v1097
      %v1273 = vpack.c.b16 %v1100, %v1099
      %v1274 = vpack.c.b16 %v1102, %v1101
      %v1275 = vpack.c.b16 %v1104, %v1103
      %v1276 = vpack.c.b16 %v1106, %v1105
      %v1277 = vpack.c.b16 %v1108, %v1107
      %v1278 = vpack.c.b16 %v1110, %v1109
      %v1279 = vpack.c.b16 %v1112, %v1111
      %v1280 = vpack.c.b16 %v1114, %v1113
      %v1281 = vpack.c.b16 %v1116, %v1115
      %v1282 = vpack.c.b16 %v1118, %v1117
      %v1283 = vpack.c.b16 %v1120, %v1119
      %v1284 = vpack.c.b16 %v1122, %v1121
      %v1285 = vpack.c.b16 %v1124, %v1123
      %v1286 = vpack.c.b16 %v1126, %v1125
      %v1287 = vpack.c.b16 %v1128, %v1127
      %v1288 = vpack.c.b16 %v1130, %v1129
      %v1289 = vpack.c.b16 %v1132, %v1131
      %v1290 = vpack.c.b16 %v1134, %v1133
      %v1291 = vpack.c.b16 %v1136, %v1135
      %v1292 = vpack.c.b16 %v1138, %v1137
      %v1293 = vpack.c.b16 %v1140, %v1139
      %v1294 = vpack.c.b16 %v1142, %v1141
      %v1295 = vpack.c.b16 %v1144, %v1143
      %v1296 = vpack.c.b16 %v1146, %v1145
      %v1297 = vpack.c.b16 %v1148, %v1147
      %v1298 = vpack.c.b16 %v1150, %v1149
      %v1299 = vpack.c.b16 %v1152, %v1151
      %v1300 = vpack.c.b16 %v1154, %v1153
      %v1301 = vpack.c.b16 %v1156, %v1155
      %v1302 = vpack.c.b16 %v1158, %v1157
      %v1303 = vpack.c.b16 %v1160, %v1159
      %v1304 = vpack.c.b16 %v1162, %v1161
      %v1305 = vpack.c.b16 %v1164, %v1163
      %v1306 = vpack.c.b16 %v1166, %v1165
      %v1307 = vpack.c.b16 %v1168, %v1167
      %v1308 = vpack.c.b16 %v1170, %v1169
      %v1309 = vpack.c.b16 %v1172, %v1171
      %v1310 = vpack.c.b16 %v1174, %v1173
      %1447 = vmatprep.subr.bf16.mxu0 0
      %1448 = vmatpush1.bf16.msra.mxu0 %v1175
      %1449 = vmatprep.subr.bf16.mxu0 0
      %1450 = vmatpush1.bf16.msra.mxu0 %v1176
      %1451 = vmatprep.subr.bf16.mxu0 0
      %1452 = vmatpush1.bf16.msra.mxu0 %v1177
      %1453 = vmatprep.subr.bf16.mxu0 0
      %1454 = vmatpush1.bf16.msra.mxu0 %v1178
      %1455 = vmatprep.subr.bf16.mxu0 0
      %1456 = vmatpush1.bf16.msra.mxu0 %v1179
      %1457 = vmatprep.subr.bf16.mxu0 0
      %1458 = vmatpush1.bf16.msra.mxu0 %v1180
      %1459 = vmatprep.subr.bf16.mxu0 0
      %1460 = vmatpush1.bf16.msra.mxu0 %v1181
      %1461 = vmatprep.subr.bf16.mxu0 0
      %1462 = vmatpush1.bf16.msra.mxu0 %v1182
      %1463 = vmatprep.subr.bf16.mxu0 0
      %1464 = vmatpush1.bf16.msra.mxu0 %v1183
      %1465 = vmatprep.subr.bf16.mxu0 0
      %1466 = vmatpush1.bf16.msra.mxu0 %v1184
      %1467 = vmatprep.subr.bf16.mxu0 0
      %1468 = vmatpush1.bf16.msra.mxu0 %v1185
      %1469 = vmatprep.subr.bf16.mxu0 0
      %1470 = vmatpush1.bf16.msra.mxu0 %v1186
      %1471 = vmatprep.subr.bf16.mxu0 0
      %1472 = vmatpush1.bf16.msra.mxu0 %v1187
      %1473 = vmatprep.subr.bf16.mxu0 0
      %1474 = vmatpush1.bf16.msra.mxu0 %v1188
      %1475 = vmatprep.subr.bf16.mxu0 0
      %1476 = vmatpush1.bf16.msra.mxu0 %v1189
      %1477 = vmatprep.subr.bf16.mxu0 0
      %1478 = vmatpush1.bf16.msra.mxu0 %v1190
      %1479 = vmatprep.mubr.bf16.mxu0 %v564
      %1480 = vmatmul.mubr.bf16.gmra.mrb[0].mxu0 %v563
      %v1481 = vpop.f32.mrb[0].mxu0
      %v1482 = vadd.f32 0.0, %v1481
      %v1483 = vpop.f32.mrb[0].mxu0
      %v1484 = vpop.f32.mrb[0].mxu0
      %v1485 = vadd.f32 0.0, %v1484
      %v1486 = vpop.f32.mrb[0].mxu0
      %1487 = vmatprep.mubr.bf16.mxu0 %v581
      %1488 = vmatmul.mubr.bf16.gmra.mrb[0].mxu0 %v580
      %v1489 = vpop.f32.mrb[0].mxu0
      %v1490 = vadd.f32 0.0, %v1489
      %v1491 = vpop.f32.mrb[0].mxu0
      %v1492 = vpop.f32.mrb[0].mxu0
      %v1493 = vadd.f32 0.0, %v1492
      %v1494 = vpop.f32.mrb[0].mxu0
      %1495 = vdwg.mxu0
      %1496 = vmatprep.subr.bf16.mxu0 0
      %1497 = vmatpush1.bf16.msra.mxu0 %v1191
      %1498 = vmatprep.subr.bf16.mxu0 0
      %1499 = vmatpush1.bf16.msra.mxu0 %v1192
      %1500 = vmatprep.subr.bf16.mxu0 0
      %1501 = vmatpush1.bf16.msra.mxu0 %v1193
      %1502 = vmatprep.subr.bf16.mxu0 0
      %1503 = vmatpush1.bf16.msra.mxu0 %v1194
      %1504 = vmatprep.subr.bf16.mxu0 0
      %1505 = vmatpush1.bf16.msra.mxu0 %v1195
      %1506 = vmatprep.subr.bf16.mxu0 0
      %1507 = vmatpush1.bf16.msra.mxu0 %v1196
      %1508 = vmatprep.subr.bf16.mxu0 0
      %1509 = vmatpush1.bf16.msra.mxu0 %v1197
      %1510 = vmatprep.subr.bf16.mxu0 0
      %1511 = vmatpush1.bf16.msra.mxu0 %v1198
      %1512 = vmatprep.subr.bf16.mxu0 0
      %1513 = vmatpush1.bf16.msra.mxu0 %v1199
      %1514 = vmatprep.subr.bf16.mxu0 0
      %1515 = vmatpush1.bf16.msra.mxu0 %v1200
      %1516 = vmatprep.subr.bf16.mxu0 0
      %1517 = vmatpush1.bf16.msra.mxu0 %v1201
      %1518 = vmatprep.subr.bf16.mxu0 0
      %1519 = vmatpush1.bf16.msra.mxu0 %v1202
      %1520 = vmatprep.subr.bf16.mxu0 0
      %1521 = vmatpush1.bf16.msra.mxu0 %v1203
      %1522 = vmatprep.subr.bf16.mxu0 0
      %1523 = vmatpush1.bf16.msra.mxu0 %v1204
      %1524 = vmatprep.subr.bf16.mxu0 0
      %1525 = vmatpush1.bf16.msra.mxu0 %v1205
      %1526 = vmatprep.subr.bf16.mxu0 0
      %1527 = vmatpush1.bf16.msra.mxu0 %v1206
      %1528 = vmatprep.mubr.bf16.mxu0 %v566
      %1529 = vmatmul.mubr.bf16.gmra.mrb[0].mxu0 %v565
      %v1530 = vpop.f32.mrb[0].mxu0
      %v1531 = vadd.f32 %v1482, %v1530
      %v1532 = vpop.f32.mrb[0].mxu0
      %v1533 = vpop.f32.mrb[0].mxu0
      %v1534 = vadd.f32 %v1485, %v1533
      %v1535 = vpop.f32.mrb[0].mxu0
      %1536 = vmatprep.mubr.bf16.mxu0 %v583
      %1537 = vmatmul.mubr.bf16.gmra.mrb[0].mxu0 %v582
      %v1538 = vpop.f32.mrb[0].mxu0
      %v1539 = vadd.f32 %v1490, %v1538
      %v1540 = vpop.f32.mrb[0].mxu0
      %v1541 = vpop.f32.mrb[0].mxu0
      %v1542 = vadd.f32 %v1493, %v1541
      %v1543 = vpop.f32.mrb[0].mxu0
      %1544 = vdwg.mxu0
      %1545 = vmatprep.subr.bf16.mxu0 0
      %1546 = vmatpush1.bf16.msra.mxu0 %v1207
      %1547 = vmatprep.subr.bf16.mxu0 0
      %1548 = vmatpush1.bf16.msra.mxu0 %v1208
      %1549 = vmatprep.subr.bf16.mxu0 0
      %1550 = vmatpush1.bf16.msra.mxu0 %v1209
      %1551 = vmatprep.subr.bf16.mxu0 0
      %1552 = vmatpush1.bf16.msra.mxu0 %v1210
      %1553 = vmatprep.subr.bf16.mxu0 0
      %1554 = vmatpush1.bf16.msra.mxu0 %v1211
      %1555 = vmatprep.subr.bf16.mxu0 0
      %1556 = vmatpush1.bf16.msra.mxu0 %v1212
      %1557 = vmatprep.subr.bf16.mxu0 0
      %1558 = vmatpush1.bf16.msra.mxu0 %v1213
      %1559 = vmatprep.subr.bf16.mxu0 0
      %1560 = vmatpush1.bf16.msra.mxu0 %v1214
      %1561 = vmatprep.subr.bf16.mxu0 0
      %1562 = vmatpush1.bf16.msra.mxu0 %v1215
      %1563 = vmatprep.subr.bf16.mxu0 0
      %1564 = vmatpush1.bf16.msra.mxu0 %v1216
      %1565 = vmatprep.subr.bf16.mxu0 0
      %1566 = vmatpush1.bf16.msra.mxu0 %v1217
      %1567 = vmatprep.subr.bf16.mxu0 0
      %1568 = vmatpush1.bf16.msra.mxu0 %v1218
      %1569 = vmatprep.subr.bf16.mxu0 0
      %1570 = vmatpush1.bf16.msra.mxu0 %v1219
      %1571 = vmatprep.subr.bf16.mxu0 0
      %1572 = vmatpush1.bf16.msra.mxu0 %v1220
      %1573 = vmatprep.subr.bf16.mxu0 0
      %1574 = vmatpush1.bf16.msra.mxu0 %v1221
      %1575 = vmatprep.subr.bf16.mxu0 0
      %1576 = vmatpush1.bf16.msra.mxu0 %v1222
      %1577 = vmatprep.mubr.bf16.mxu0 %v568
      %1578 = vmatmul.mubr.bf16.gmra.mrb[0].mxu0 %v567
      %v1579 = vpop.f32.mrb[0].mxu0
      %v1580 = vadd.f32 %v1531, %v1579
      %v1581 = vpop.f32.mrb[0].mxu0
      %v1582 = vpop.f32.mrb[0].mxu0
      %v1583 = vadd.f32 %v1534, %v1582
      %v1584 = vpop.f32.mrb[0].mxu0
      %1585 = vmatprep.mubr.bf16.mxu0 %v585
      %1586 = vmatmul.mubr.bf16.gmra.mrb[0].mxu0 %v584
      %v1587 = vpop.f32.mrb[0].mxu0
      %v1588 = vadd.f32 %v1539, %v1587
      %v1589 = vpop.f32.mrb[0].mxu0
      %v1590 = vpop.f32.mrb[0].mxu0
      %v1591 = vadd.f32 %v1542, %v1590
      %v1592 = vpop.f32.mrb[0].mxu0
      %1593 = vdwg.mxu0
      %1594 = vmatprep.subr.bf16.mxu0 0
      %1595 = vmatpush1.bf16.msra.mxu0 %v1223
      %1596 = vmatprep.subr.bf16.mxu0 0
      %1597 = vmatpush1.bf16.msra.mxu0 %v1224
      %1598 = vmatprep.subr.bf16.mxu0 0
      %1599 = vmatpush1.bf16.msra.mxu0 %v1225
      %1600 = vmatprep.subr.bf16.mxu0 0
      %1601 = vmatpush1.bf16.msra.mxu0 %v1226
      %1602 = vmatprep.subr.bf16.mxu0 0
      %1603 = vmatpush1.bf16.msra.mxu0 %v1227
      %1604 = vmatprep.subr.bf16.mxu0 0
      %1605 = vmatpush1.bf16.msra.mxu0 %v1228
      %1606 = vmatprep.subr.bf16.mxu0 0
      %1607 = vmatpush1.bf16.msra.mxu0 %v1229
      %1608 = vmatprep.subr.bf16.mxu0 0
      %1609 = vmatpush1.bf16.msra.mxu0 %v1230
      %1610 = vmatprep.subr.bf16.mxu0 0
      %1611 = vmatpush1.bf16.msra.mxu0 %v1231
      %1612 = vmatprep.subr.bf16.mxu0 0
      %1613 = vmatpush1.bf16.msra.mxu0 %v1232
      %1614 = vmatprep.subr.bf16.mxu0 0
      %1615 = vmatpush1.bf16.msra.mxu0 %v1233
      %1616 = vmatprep.subr.bf16.mxu0 0
      %1617 = vmatpush1.bf16.msra.mxu0 %v1234
      %1618 = vmatprep.subr.bf16.mxu0 0
      %1619 = vmatpush1.bf16.msra.mxu0 %v1235
      %1620 = vmatprep.subr.bf16.mxu0 0
      %1621 = vmatpush1.bf16.msra.mxu0 %v1236
      %1622 = vmatprep.subr.bf16.mxu0 0
      %1623 = vmatpush1.bf16.msra.mxu0 %v1237
      %1624 = vmatprep.subr.bf16.mxu0 0
      %1625 = vmatpush1.bf16.msra.mxu0 %v1238
      %1626 = vmatprep.mubr.bf16.mxu0 %v570
      %1627 = vmatmul.mubr.bf16.gmra.mrb[0].mxu0 %v569
      %v1628 = vpop.f32.mrb[0].mxu0
      %v1629 = vadd.f32 %v1580, %v1628
      %v1630 = vpop.f32.mrb[0].mxu0
      %v1631 = vpop.f32.mrb[0].mxu0
      %v1632 = vadd.f32 %v1583, %v1631
      %v1633 = vpop.f32.mrb[0].mxu0
      %1634 = vmatprep.mubr.bf16.mxu0 %v587
      %1635 = vmatmul.mubr.bf16.gmra.mrb[0].mxu0 %v586
      %v1636 = vpop.f32.mrb[0].mxu0
      %v1637 = vadd.f32 %v1588, %v1636
      %v1638 = vpop.f32.mrb[0].mxu0
      %v1639 = vpop.f32.mrb[0].mxu0
      %v1640 = vadd.f32 %v1591, %v1639
      %v1641 = vpop.f32.mrb[0].mxu0
      %1642 = vdwg.mxu0
      %1643 = vmatprep.subr.bf16.mxu0 0
      %1644 = vmatpush1.bf16.msra.mxu0 %v1239
      %1645 = vmatprep.subr.bf16.mxu0 0
      %1646 = vmatpush1.bf16.msra.mxu0 %v1240
      %1647 = vmatprep.subr.bf16.mxu0 0
      %1648 = vmatpush1.bf16.msra.mxu0 %v1241
      %1649 = vmatprep.subr.bf16.mxu0 0
      %1650 = vmatpush1.bf16.msra.mxu0 %v1242
      %1651 = vmatprep.subr.bf16.mxu0 0
      %1652 = vmatpush1.bf16.msra.mxu0 %v1243
      %1653 = vmatprep.subr.bf16.mxu0 0
      %1654 = vmatpush1.bf16.msra.mxu0 %v1244
      %1655 = vmatprep.subr.bf16.mxu0 0
      %1656 = vmatpush1.bf16.msra.mxu0 %v1245
      %1657 = vmatprep.subr.bf16.mxu0 0
      %1658 = vmatpush1.bf16.msra.mxu0 %v1246
      %1659 = vmatprep.subr.bf16.mxu0 0
      %1660 = vmatpush1.bf16.msra.mxu0 %v1247
      %1661 = vmatprep.subr.bf16.mxu0 0
      %1662 = vmatpush1.bf16.msra.mxu0 %v1248
      %1663 = vmatprep.subr.bf16.mxu0 0
      %1664 = vmatpush1.bf16.msra.mxu0 %v1249
      %1665 = vmatprep.subr.bf16.mxu0 0
      %1666 = vmatpush1.bf16.msra.mxu0 %v1250
      %1667 = vmatprep.subr.bf16.mxu0 0
      %1668 = vmatpush1.bf16.msra.mxu0 %v1251
      %1669 = vmatprep.subr.bf16.mxu0 0
      %1670 = vmatpush1.bf16.msra.mxu0 %v1252
      %1671 = vmatprep.subr.bf16.mxu0 0
      %1672 = vmatpush1.bf16.msra.mxu0 %v1253
      %1673 = vmatprep.subr.bf16.mxu0 0
      %1674 = vmatpush1.bf16.msra.mxu0 %v1254
      %1675 = vmatprep.mubr.bf16.mxu0 %v572
      %1676 = vmatmul.mubr.bf16.gmra.mrb[0].mxu0 %v571
      %v1677 = vpop.f32.mrb[0].mxu0
      %v1678 = vadd.f32 %v1629, %v1677
      %v1679 = vpop.f32.mrb[0].mxu0
      %v1680 = vpop.f32.mrb[0].mxu0
      %v1681 = vadd.f32 %v1632, %v1680
      %v1682 = vpop.f32.mrb[0].mxu0
      %1683 = vmatprep.mubr.bf16.mxu0 %v589
      %1684 = vmatmul.mubr.bf16.gmra.mrb[0].mxu0 %v588
      %v1685 = vpop.f32.mrb[0].mxu0
      %v1686 = vadd.f32 %v1637, %v1685
      %v1687 = vpop.f32.mrb[0].mxu0
      %v1688 = vpop.f32.mrb[0].mxu0
      %v1689 = vadd.f32 %v1640, %v1688
      %v1690 = vpop.f32.mrb[0].mxu0
      %1691 = vdwg.mxu0
      %1692 = vmatprep.subr.bf16.mxu0 0
      %1693 = vmatpush1.bf16.msra.mxu0 %v1255
      %1694 = vmatprep.subr.bf16.mxu0 0
      %1695 = vmatpush1.bf16.msra.mxu0 %v1256
      %1696 = vmatprep.subr.bf16.mxu0 0
      %1697 = vmatpush1.bf16.msra.mxu0 %v1257
      %1698 = vmatprep.subr.bf16.mxu0 0
      %1699 = vmatpush1.bf16.msra.mxu0 %v1258
      %1700 = vmatprep.subr.bf16.mxu0 0
      %1701 = vmatpush1.bf16.msra.mxu0 %v1259
      %1702 = vmatprep.subr.bf16.mxu0 0
      %1703 = vmatpush1.bf16.msra.mxu0 %v1260
      %1704 = vmatprep.subr.bf16.mxu0 0
      %1705 = vmatpush1.bf16.msra.mxu0 %v1261
      %1706 = vmatprep.subr.bf16.mxu0 0
      %1707 = vmatpush1.bf16.msra.mxu0 %v1262
      %1708 = vmatprep.subr.bf16.mxu0 0
      %1709 = vmatpush1.bf16.msra.mxu0 %v1263
      %1710 = vmatprep.subr.bf16.mxu0 0
      %1711 = vmatpush1.bf16.msra.mxu0 %v1264
      %1712 = vmatprep.subr.bf16.mxu0 0
      %1713 = vmatpush1.bf16.msra.mxu0 %v1265
      %1714 = vmatprep.subr.bf16.mxu0 0
      %1715 = vmatpush1.bf16.msra.mxu0 %v1266
      %1716 = vmatprep.subr.bf16.mxu0 0
      %1717 = vmatpush1.bf16.msra.mxu0 %v1267
      %1718 = vmatprep.subr.bf16.mxu0 0
      %1719 = vmatpush1.bf16.msra.mxu0 %v1268
      %1720 = vmatprep.subr.bf16.mxu0 0
      %1721 = vmatpush1.bf16.msra.mxu0 %v1269
      %1722 = vmatprep.subr.bf16.mxu0 0
      %1723 = vmatpush1.bf16.msra.mxu0 %v1270
      %1724 = vmatprep.mubr.bf16.mxu0 %v574
      %1725 = vmatmul.mubr.bf16.gmra.mrb[0].mxu0 %v573
      %v1726 = vpop.f32.mrb[0].mxu0
      %v1727 = vadd.f32 %v1678, %v1726
      %v1728 = vpop.f32.mrb[0].mxu0
      %v1729 = vpop.f32.mrb[0].mxu0
      %v1730 = vadd.f32 %v1681, %v1729
      %v1731 = vpop.f32.mrb[0].mxu0
      %1732 = vmatprep.mubr.bf16.mxu0 %v591
      %1733 = vmatmul.mubr.bf16.gmra.mrb[0].mxu0 %v590
      %v1734 = vpop.f32.mrb[0].mxu0
      %v1735 = vadd.f32 %v1686, %v1734
      %v1736 = vpop.f32.mrb[0].mxu0
      %v1737 = vpop.f32.mrb[0].mxu0
      %v1738 = vadd.f32 %v1689, %v1737
      %v1739 = vpop.f32.mrb[0].mxu0
      %1740 = vdwg.mxu0
      %1741 = vmatprep.subr.bf16.mxu0 0
      %1742 = vmatpush1.bf16.msra.mxu0 %v1271
      %1743 = vmatprep.subr.bf16.mxu0 0
      %1744 = vmatpush1.bf16.msra.mxu0 %v1272
      %1745 = vmatprep.subr.bf16.mxu0 0
      %1746 = vmatpush1.bf16.msra.mxu0 %v1273
      %1747 = vmatprep.subr.bf16.mxu0 0
      %1748 = vmatpush1.bf16.msra.mxu0 %v1274
      %1749 = vmatprep.subr.bf16.mxu0 0
      %1750 = vmatpush1.bf16.msra.mxu0 %v1275
      %1751 = vmatprep.subr.bf16.mxu0 0
      %1752 = vmatpush1.bf16.msra.mxu0 %v1276
      %1753 = vmatprep.subr.bf16.mxu0 0
      %1754 = vmatpush1.bf16.msra.mxu0 %v1277
      %1755 = vmatprep.subr.bf16.mxu0 0
      %1756 = vmatpush1.bf16.msra.mxu0 %v1278
      %1757 = vmatprep.subr.bf16.mxu0 0
      %1758 = vmatpush1.bf16.msra.mxu0 %v1279
      %1759 = vmatprep.subr.bf16.mxu0 0
      %1760 = vmatpush1.bf16.msra.mxu0 %v1280
      %1761 = vmatprep.subr.bf16.mxu0 0
      %1762 = vmatpush1.bf16.msra.mxu0 %v1281
      %1763 = vmatprep.subr.bf16.mxu0 0
      %1764 = vmatpush1.bf16.msra.mxu0 %v1282
      %1765 = vmatprep.subr.bf16.mxu0 0
      %1766 = vmatpush1.bf16.msra.mxu0 %v1283
      %1767 = vmatprep.subr.bf16.mxu0 0
      %1768 = vmatpush1.bf16.msra.mxu0 %v1284
      %1769 = vmatprep.subr.bf16.mxu0 0
      %1770 = vmatpush1.bf16.msra.mxu0 %v1285
      %1771 = vmatprep.subr.bf16.mxu0 0
      %1772 = vmatpush1.bf16.msra.mxu0 %v1286
      %1773 = vmatprep.mubr.bf16.mxu0 %v576
      %1774 = vmatmul.mubr.bf16.gmra.mrb[0].mxu0 %v575
      %v1775 = vpop.f32.mrb[0].mxu0
      %v1776 = vadd.f32 %v1727, %v1775
      %v1777 = vpop.f32.mrb[0].mxu0
      %v1778 = vpop.f32.mrb[0].mxu0
      %v1779 = vadd.f32 %v1730, %v1778
      %v1780 = vpop.f32.mrb[0].mxu0
      %1781 = vmatprep.mubr.bf16.mxu0 %v593
      %1782 = vmatmul.mubr.bf16.gmra.mrb[0].mxu0 %v592
      %v1783 = vpop.f32.mrb[0].mxu0
      %v1784 = vadd.f32 %v1735, %v1783
      %v1785 = vpop.f32.mrb[0].mxu0
      %v1786 = vpop.f32.mrb[0].mxu0
      %v1787 = vadd.f32 %v1738, %v1786
      %v1788 = vpop.f32.mrb[0].mxu0
      %1789 = vdwg.mxu0
      %1790 = vmatprep.subr.bf16.mxu0 0
      %1791 = vmatpush1.bf16.msra.mxu0 %v1287
      %1792 = vmatprep.subr.bf16.mxu0 0
      %1793 = vmatpush1.bf16.msra.mxu0 %v1288
      %1794 = vmatprep.subr.bf16.mxu0 0
      %1795 = vmatpush1.bf16.msra.mxu0 %v1289
      %1796 = vmatprep.subr.bf16.mxu0 0
      %1797 = vmatpush1.bf16.msra.mxu0 %v1290
      %1798 = vmatprep.subr.bf16.mxu0 0
      %1799 = vmatpush1.bf16.msra.mxu0 %v1291
      %1800 = vmatprep.subr.bf16.mxu0 0
      %1801 = vmatpush1.bf16.msra.mxu0 %v1292
      %1802 = vmatprep.subr.bf16.mxu0 0
      %1803 = vmatpush1.bf16.msra.mxu0 %v1293
      %1804 = vmatprep.subr.bf16.mxu0 0
      %1805 = vmatpush1.bf16.msra.mxu0 %v1294
      %1806 = vmatprep.subr.bf16.mxu0 0
      %1807 = vmatpush1.bf16.msra.mxu0 %v1295
      %1808 = vmatprep.subr.bf16.mxu0 0
      %1809 = vmatpush1.bf16.msra.mxu0 %v1296
      %1810 = vmatprep.subr.bf16.mxu0 0
      %1811 = vmatpush1.bf16.msra.mxu0 %v1297
      %1812 = vmatprep.subr.bf16.mxu0 0
      %1813 = vmatpush1.bf16.msra.mxu0 %v1298
      %1814 = vmatprep.subr.bf16.mxu0 0
      %1815 = vmatpush1.bf16.msra.mxu0 %v1299
      %1816 = vmatprep.subr.bf16.mxu0 0
      %1817 = vmatpush1.bf16.msra.mxu0 %v1300
      %1818 = vmatprep.subr.bf16.mxu0 0
      %1819 = vmatpush1.bf16.msra.mxu0 %v1301
      %1820 = vmatprep.subr.bf16.mxu0 0
      %1821 = vmatpush1.bf16.msra.mxu0 %v1302
      %1822 = vmatprep.mubr.bf16.mxu0 %v578
      %1823 = vmatmul.mubr.bf16.gmra.mrb[0].mxu0 %v577
      %v1824 = vpop.f32.mrb[0].mxu0
      %v1825 = vadd.f32 %v1776, %v1824
      %v1826 = vpop.f32.mrb[0].mxu0
      %v1827 = vpop.f32.mrb[0].mxu0
      %v1828 = vadd.f32 %v1779, %v1827
      %v1829 = vpop.f32.mrb[0].mxu0
      %1830 = vmatprep.mubr.bf16.mxu0 %v595
      %1831 = vmatmul.mubr.bf16.gmra.mrb[0].mxu0 %v594
      %v1832 = vpop.f32.mrb[0].mxu0
      %v1833 = vadd.f32 %v1784, %v1832
      %v1834 = vpop.f32.mrb[0].mxu0
      %v1835 = vpop.f32.mrb[0].mxu0
      %v1836 = vadd.f32 %v1787, %v1835
      %v1837 = vpop.f32.mrb[0].mxu0
      %1838 = vdwg.mxu0
      %1839 = vmatprep.subr.bf16.mxu0 0
      %1840 = vmatpush1.bf16.msra.mxu0 %v1303
      %1841 = vmatprep.subr.bf16.mxu0 0
      %1842 = vmatpush1.bf16.msra.mxu0 %v1304
      %1843 = vmatprep.subr.bf16.mxu0 0
      %1844 = vmatpush1.bf16.msra.mxu0 %v1305
      %1845 = vmatprep.subr.bf16.mxu0 0
      %1846 = vmatpush1.bf16.msra.mxu0 %v1306
      %1847 = vmatprep.subr.bf16.mxu0 0
      %1848 = vmatpush1.bf16.msra.mxu0 %v1307
      %1849 = vmatprep.subr.bf16.mxu0 0
      %1850 = vmatpush1.bf16.msra.mxu0 %v1308
      %1851 = vmatprep.subr.bf16.mxu0 0
      %1852 = vmatpush1.bf16.msra.mxu0 %v1309
      %1853 = vmatprep.subr.bf16.mxu0 0
      %1854 = vmatpush1.bf16.msra.mxu0 %v1310
      %1855 = vmatprep.subr.bf16.mxu0 0
      %1856 = vmatpush1.bf16.msra.mxu0 0
      %1857 = vmatprep.subr.bf16.mxu0 0
      %1858 = vmatpush1.bf16.msra.mxu0 0
      %1859 = vmatprep.subr.bf16.mxu0 0
      %1860 = vmatpush1.bf16.msra.mxu0 0
      %1861 = vmatprep.subr.bf16.mxu0 0
      %1862 = vmatpush1.bf16.msra.mxu0 0
      %1863 = vmatprep.subr.bf16.mxu0 0
      %1864 = vmatpush1.bf16.msra.mxu0 0
      %1865 = vmatprep.subr.bf16.mxu0 0
      %1866 = vmatpush1.bf16.msra.mxu0 0
      %1867 = vmatprep.subr.bf16.mxu0 0
      %1868 = vmatpush1.bf16.msra.mxu0 0
      %1869 = vmatprep.subr.bf16.mxu0 0
      %1870 = vmatpush1.bf16.msra.mxu0 0
      %1871 = vmatprep.mubr.bf16.mxu0 0
      %1872 = vmatmul.mubr.bf16.gmra.mrb[0].mxu0 %v579
      %v1873 = vpop.f32.mrb[0].mxu0
      %v1874 = vadd.f32 %v1825, %v1873
      %v1875 = vpop.f32.mrb[0].mxu0
      %v1876 = vpop.f32.mrb[0].mxu0
      %v1877 = vadd.f32 %v1828, %v1876
      %v1878 = vpop.f32.mrb[0].mxu0
      %1879 = vmatprep.mubr.bf16.mxu0 0
      %1880 = vmatmul.mubr.bf16.gmra.mrb[0].mxu0 %v596
      %v1881 = vpop.f32.mrb[0].mxu0
      %v1882 = vadd.f32 %v1833, %v1881
      %v1883 = vpop.f32.mrb[0].mxu0
      %v1884 = vpop.f32.mrb[0].mxu0
      %v1885 = vadd.f32 %v1836, %v1884
      %v1886 = vpop.f32.mrb[0].mxu0
      %1887 = vdwg.mxu0
      %1888 = vst [vmem:[%s148] sm:$0xff] %v1874
      %1889 = vst [vmem:[%s148 + $0x8] sm:$0xff] %v1877
      %1890 = vst [vmem:[%s148 + $0x10] sm:$0xff] %v1882
      %1891 = vst [vmem:[%s148 + $0x18] sm:$0xff] %v1885
      %s1892 = smul.u32 4, %s13
      %p1893 = scmp.lt.s32.totalorder %s1892, 11
      %s1894 = scalar_select %p1893, %s1892, 11
      %s1895 = smul.addr %s1894, 8
      %s1896 = scalar_lea.vmem %s2, %s1895
      // Predicated region
      $region29: #{_lambda_.10} parent=27 // pred_check
        %p1897 = pneg %p78
      $region30: #{_lambda_.10} parent=27 // pred_check_branch
        %1899 = sbr.rel (%p1897) target = $region32
      $region31: #{_lambda_.10} parent=27 // pred_region
        %s1900 = smul.u32 4, %s13
      $region32: #{_lambda_.10} parent=27 // pred_fallthru
        _
    $region28: #{_lambda_.10} parent=5 // pred_fallthru
      _
    %p1901 = scmp.le.s32.totalorder 2, %s8
    // Predicated region
    $region33: #{_lambda_.10} parent=5 // pred_check
      %p1902 = pneg %p1901
    $region34: #{_lambda_.10} parent=5 // pred_check_branch
      %1904 = sbr.rel (%p1902) target = $region36
    $region35: #{_lambda_.10} parent=5 // pred_region
      %s1905 = ssub.s32 %s8, 2
      // Predicated region
      $region37: #{_lambda_.10} parent=35 // pred_check
        %p1906 = pneg %p84
      $region38: #{_lambda_.10} parent=35 // pred_check_branch
        %1908 = sbr.rel (%p1906) target = $region40
      $region39: #{_lambda_.10} parent=35 // pred_region
        %s1909 = smul.u32 4, %s14
        %p1910 = scmp.lt.s32.totalorder %s1909, 11
        %s1911 = scalar_select %p1910, %s1909, 11
        %s1912 = smul.addr %s1911, 8
        %s1913 = scalar_lea.vmem %s2, %s1912
      $region40: #{_lambda_.10} parent=35 // pred_fallthru
        _
    $region36: #{_lambda_.10} parent=5 // pred_fallthru
      _
  $region6: #{_lambda_.10} parent=0 // loop_footer
    %s12 = sadd.s32 1, %s8
  $region7: #{_lambda_.10} parent=0 // loop_footer_branch
    %7 = sbr.rel target = $region3
  $region8: #{_lambda_.10} parent=0 // loop_exit
    _

// kernel: _lambda_.11
$region0: #{_lambda_.11}
  #allocation0 [shape = 'u32[]', space=smem, size = 0x4, offset = 0x4, fixed_abs, tag = 'smem constant byte address 0x4 - core index']
  #allocation1 [shape = 'u32[144,128]{1,0:T(1,128)}', space=vmem, size = 0x12000, scoped, tag = 'internal scratch']
  #allocation2 [shape = 'f32[8,128]{1,0:T(8,128)}', space=vmem, size = 0x1000, scoped, tag = 'scratch operand']
  %s0 = inlined_call_operand.vmem [shape: f32[88,128], index: 0, kind: input, shape index: {}]
  %s1 = inlined_call_operand.vmem [shape: f32[88,128], index: 1, kind: input, shape index: {}]
  %s2 = inlined_call_operand.vmem [shape: f32[8,128], index: 2, kind: output, shape index: {}]
  %s3 = sld [smem:[#allocation0]]
  $region26: #{_lambda_.11} parent=0
    _
  %s5 = ssub.s32 1, %s3
  %s6 = scalar_select 0, %s5, %s3
  // Predicated region
  $region2: #{_lambda_.11} parent=0 // pred_check
    _
  $region3: #{_lambda_.11} parent=0 // pred_check_branch
    %8 = sbr.rel (0) target = $region5
  $region4: #{_lambda_.11} parent=0 // pred_region
    _
  $region5: #{_lambda_.11} parent=0 // pred_fallthru
    _
  // Predicated region
  $region6: #{_lambda_.11} parent=0 // pred_check
    _
  $region7: #{_lambda_.11} parent=0 // pred_check_branch
    %10 = sbr.rel (0) target = $region9
  $region8: #{_lambda_.11} parent=0 // pred_region
    _
  $region9: #{_lambda_.11} parent=0 // pred_fallthru
    _
  %p11 = scmp.eq.s32.totalorder 0, 0
  // Predicated region
  $region10: #{_lambda_.11} parent=0 // pred_check
    %p12 = pneg %p11
  $region11: #{_lambda_.11} parent=0 // pred_check_branch
    %14 = sbr.rel (%p12) target = $region13
  $region12: #{_lambda_.11} parent=0 // pred_region
    %15 = vst [vmem:[#allocation2] sm:$0xff] 0.0
  $region13: #{_lambda_.11} parent=0 // pred_fallthru
    _
  %v16 = vld [vmem:[%s0] sm:$0xff]
  %v17 = vld [vmem:[%s0 + $0x8] sm:$0xff]
  %v18 = vld [vmem:[%s0 + $0x10] sm:$0xff]
  %v19 = vld [vmem:[%s0 + $0x18] sm:$0xff]
  %v20 = vld [vmem:[%s0 + $0x20] sm:$0xff]
  %v21 = vld [vmem:[%s0 + $0x28] sm:$0xff]
  %v22 = vld [vmem:[%s0 + $0x30] sm:$0xff]
  %v23 = vld [vmem:[%s0 + $0x38] sm:$0xff]
  %v24 = vld [vmem:[%s0 + $0x40] sm:$0xff]
  %v25 = vld [vmem:[%s0 + $0x48] sm:$0xff]
  %v26 = vld [vmem:[%s0 + $0x50] sm:$0xff]
  %v27 = vld [vmem:[%s1] sm:$0xff]
  %v28 = vld [vmem:[%s1 + $0x8] sm:$0xff]
  %v29 = vld [vmem:[%s1 + $0x10] sm:$0xff]
  %v30 = vld [vmem:[%s1 + $0x18] sm:$0xff]
  %v31 = vld [vmem:[%s1 + $0x20] sm:$0xff]
  %v32 = vld [vmem:[%s1 + $0x28] sm:$0xff]
  %v33 = vld [vmem:[%s1 + $0x30] sm:$0xff]
  %v34 = vld [vmem:[%s1 + $0x38] sm:$0xff]
  %v35 = vld [vmem:[%s1 + $0x40] sm:$0xff]
  %v36 = vld [vmem:[%s1 + $0x48] sm:$0xff]
  %v37 = vld [vmem:[%s1 + $0x50] sm:$0xff]
  %v38 = vsub.f32 %v16, %v27
  %v39 = vsub.f32 %v17, %v28
  %v40 = vsub.f32 %v18, %v29
  %v41 = vsub.f32 %v19, %v30
  %v42 = vsub.f32 %v20, %v31
  %v43 = vsub.f32 %v21, %v32
  %v44 = vsub.f32 %v22, %v33
  %v45 = vsub.f32 %v23, %v34
  %v46 = vsub.f32 %v24, %v35
  %v47 = vsub.f32 %v25, %v36
  %v48 = vsub.f32 %v26, %v37
  %v49 = vand.u32 2147483647, %v38
  %v50 = vand.u32 2147483647, %v39
  %v51 = vand.u32 2147483647, %v40
  %v52 = vand.u32 2147483647, %v41
  %v53 = vand.u32 2147483647, %v42
  %v54 = vand.u32 2147483647, %v43
  %v55 = vand.u32 2147483647, %v44
  %v56 = vand.u32 2147483647, %v45
  %v57 = vand.u32 2147483647, %v46
  %v58 = vand.u32 2147483647, %v47
  %v59 = vand.u32 2147483647, %v48
  %v60 = vld [vmem:[#allocation2] sm:$0xff]
  %v61 = vadd.f32 %v49, %v50
  %v62 = vadd.f32 %v61, %v51
  %v63 = vadd.f32 %v62, %v52
  %v64 = vadd.f32 %v63, %v53
  %v65 = vadd.f32 %v64, %v54
  %v66 = vadd.f32 %v65, %v55
  %v67 = vadd.f32 %v66, %v56
  %v68 = vadd.f32 %v67, %v57
  %v69 = vadd.f32 %v68, %v58
  %v70 = vadd.f32 %v69, %v59
  %v71 = vadd.f32 %v60, %v70
  %72 = vst [vmem:[#allocation2] sm:$0xff] %v71
  // Predicated region
  $region14: #{_lambda_.11} parent=0 // pred_check
    %p73 = pneg %p11
  $region15: #{_lambda_.11} parent=0 // pred_check_branch
    %75 = sbr.rel (%p73) target = $region17
  $region16: #{_lambda_.11} parent=0 // pred_region
    %v76 = vld [vmem:[#allocation2] sm:$0xff]
    %77 = vst [vmem:[%s2] sm:$0xff] %v76
  $region17: #{_lambda_.11} parent=0 // pred_fallthru
    _
  // Predicated region
  $region18: #{_lambda_.11} parent=0 // pred_check
    _
  $region19: #{_lambda_.11} parent=0 // pred_check_branch
    %79 = sbr.rel (0) target = $region21
  $region20: #{_lambda_.11} parent=0 // pred_region
    _
  $region21: #{_lambda_.11} parent=0 // pred_fallthru
    _
  // Predicated region
  $region22: #{_lambda_.11} parent=0 // pred_check
    _
  $region23: #{_lambda_.11} parent=0 // pred_check_branch
    %81 = sbr.rel (0) target = $region25
  $region24: #{_lambda_.11} parent=0 // pred_region
    _
  $region25: #{_lambda_.11} parent=0 // pred_fallthru
    _

// kernel: _lambda_.6
$region0: #{_lambda_.6}
  #allocation0 [shape = 'u32[]', space=smem, size = 0x4, offset = 0x4, fixed_abs, tag = 'smem constant byte address 0x4 - core index']
  #allocation1 [shape = 'u32[144,128]{1,0:T(1,128)}', space=vmem, size = 0x12000, scoped, tag = 'internal scratch']
  %s0 = inlined_call_operand.vmem [shape: bf16[4,2176], index: 0, kind: input, shape index: {}]
  %s1 = inlined_call_operand.vmem [shape: bf16[2176,128], index: 1, kind: input, shape index: {}]
  %s2 = inlined_call_operand.vmem [shape: f32[4,128], index: 2, kind: output, shape index: {}]
  %s3 = sld [smem:[#allocation0]]
  $region18: #{_lambda_.6} parent=0
    _
  %s5 = ssub.s32 1, %s3
  %s6 = scalar_select 0, %s5, %s3
  // Predicated region
  $region2: #{_lambda_.6} parent=0 // pred_check
    _
  $region3: #{_lambda_.6} parent=0 // pred_check_branch
    %8 = sbr.rel (0) target = $region5
  $region4: #{_lambda_.6} parent=0 // pred_region
    _
  $region5: #{_lambda_.6} parent=0 // pred_fallthru
    _
  // Predicated region
  $region6: #{_lambda_.6} parent=0 // pred_check
    _
  $region7: #{_lambda_.6} parent=0 // pred_check_branch
    %10 = sbr.rel (0) target = $region9
  $region8: #{_lambda_.6} parent=0 // pred_region
    _
  $region9: #{_lambda_.6} parent=0 // pred_fallthru
    _
  %v12 = vld [vmem:[%s0] sm:$0xff]
  %v13 = vld [vmem:[%s0 + $0x8] sm:$0xff]
  %v14 = vld [vmem:[%s0 + $0x10] sm:$0xff]
  %v15 = vld [vmem:[%s0 + $0x18] sm:$0xff]
  %v16 = vld [vmem:[%s0 + $0x20] sm:$0x3]
  %v17 = vld [vmem:[%s1] sm:$0xf]
  %v18 = vld [vmem:[%s1 + $0x4] sm:$0xf]
  %v19 = vld [vmem:[%s1 + $0x8] sm:$0xf]
  %v20 = vld [vmem:[%s1 + $0xc] sm:$0xf]
  %v21 = vld [vmem:[%s1 + $0x10] sm:$0xf]
  %v22 = vld [vmem:[%s1 + $0x14] sm:$0xf]
  %v23 = vld [vmem:[%s1 + $0x18] sm:$0xf]
  %v24 = vld [vmem:[%s1 + $0x1c] sm:$0xf]
  %v25 = vld [vmem:[%s1 + $0x20] sm:$0xf]
  %v26 = vld [vmem:[%s1 + $0x24] sm:$0xf]
  %v27 = vld [vmem:[%s1 + $0x28] sm:$0xf]
  %v28 = vld [vmem:[%s1 + $0x2c] sm:$0xf]
  %v29 = vld [vmem:[%s1 + $0x30] sm:$0xf]
  %v30 = vld [vmem:[%s1 + $0x34] sm:$0xf]
  %v31 = vld [vmem:[%s1 + $0x38] sm:$0xf]
  %v32 = vld [vmem:[%s1 + $0x3c] sm:$0xf]
  %v33 = vld [vmem:[%s1 + $0x40] sm:$0xf]
  %v34 = vld [vmem:[%s1 + $0x44] sm:$0xf]
  %v35 = vld [vmem:[%s1 + $0x48] sm:$0xf]
  %v36 = vld [vmem:[%s1 + $0x4c] sm:$0xf]
  %v37 = vld [vmem:[%s1 + $0x50] sm:$0xf]
  %v38 = vld [vmem:[%s1 + $0x54] sm:$0xf]
  %v39 = vld [vmem:[%s1 + $0x58] sm:$0xf]
  %v40 = vld [vmem:[%s1 + $0x5c] sm:$0xf]
  %v41 = vld [vmem:[%s1 + $0x60] sm:$0xf]
  %v42 = vld [vmem:[%s1 + $0x64] sm:$0xf]
  %v43 = vld [vmem:[%s1 + $0x68] sm:$0xf]
  %v44 = vld [vmem:[%s1 + $0x6c] sm:$0xf]
  %v45 = vld [vmem:[%s1 + $0x70] sm:$0xf]
  %v46 = vld [vmem:[%s1 + $0x74] sm:$0xf]
  %v47 = vld [vmem:[%s1 + $0x78] sm:$0xf]
  %v48 = vld [vmem:[%s1 + $0x7c] sm:$0xf]
  %v49 = vld [vmem:[%s1 + $0x80] sm:$0xf]
  %v50 = vld [vmem:[%s1 + $0x84] sm:$0xf]
  %v51 = vld [vmem:[%s1 + $0x88] sm:$0xf]
  %v52 = vld [vmem:[%s1 + $0x8c] sm:$0xf]
  %v53 = vld [vmem:[%s1 + $0x90] sm:$0xf]
  %v54 = vld [vmem:[%s1 + $0x94] sm:$0xf]
  %v55 = vld [vmem:[%s1 + $0x98] sm:$0xf]
  %v56 = vld [vmem:[%s1 + $0x9c] sm:$0xf]
  %v57 = vld [vmem:[%s1 + $0xa0] sm:$0xf]
  %v58 = vld [vmem:[%s1 + $0xa4] sm:$0xf]
  %v59 = vld [vmem:[%s1 + $0xa8] sm:$0xf]
  %v60 = vld [vmem:[%s1 + $0xac] sm:$0xf]
  %v61 = vld [vmem:[%s1 + $0xb0] sm:$0xf]
  %v62 = vld [vmem:[%s1 + $0xb4] sm:$0xf]
  %v63 = vld [vmem:[%s1 + $0xb8] sm:$0xf]
  %v64 = vld [vmem:[%s1 + $0xbc] sm:$0xf]
  %v65 = vld [vmem:[%s1 + $0xc0] sm:$0xf]
  %v66 = vld [vmem:[%s1 + $0xc4] sm:$0xf]
  %v67 = vld [vmem:[%s1 + $0xc8] sm:$0xf]
  %v68 = vld [vmem:[%s1 + $0xcc] sm:$0xf]
  %v69 = vld [vmem:[%s1 + $0xd0] sm:$0xf]
  %v70 = vld [vmem:[%s1 + $0xd4] sm:$0xf]
  %v71 = vld [vmem:[%s1 + $0xd8] sm:$0xf]
  %v72 = vld [vmem:[%s1 + $0xdc] sm:$0xf]
  %v73 = vld [vmem:[%s1 + $0xe0] sm:$0xf]
  %v74 = vld [vmem:[%s1 + $0xe4] sm:$0xf]
  %v75 = vld [vmem:[%s1 + $0xe8] sm:$0xf]
  %v76 = vld [vmem:[%s1 + $0xec] sm:$0xf]
  %v77 = vld [vmem:[%s1 + $0xf0] sm:$0xf]
  %v78 = vld [vmem:[%s1 + $0xf4] sm:$0xf]
  %v79 = vld [vmem:[%s1 + $0xf8] sm:$0xf]
  %v80 = vld [vmem:[%s1 + $0xfc] sm:$0xf]
  %v81 = vld [vmem:[%s1 + $0x100] sm:$0xf]
  %v82 = vld [vmem:[%s1 + $0x104] sm:$0xf]
  %v83 = vld [vmem:[%s1 + $0x108] sm:$0xf]
  %v84 = vld [vmem:[%s1 + $0x10c] sm:$0xf]
  %v85 = vld [vmem:[%s1 + $0x110] sm:$0xf]
  %v86 = vld [vmem:[%s1 + $0x114] sm:$0xf]
  %v87 = vld [vmem:[%s1 + $0x118] sm:$0xf]
  %v88 = vld [vmem:[%s1 + $0x11c] sm:$0xf]
  %v89 = vld [vmem:[%s1 + $0x120] sm:$0xf]
  %v90 = vld [vmem:[%s1 + $0x124] sm:$0xf]
  %v91 = vld [vmem:[%s1 + $0x128] sm:$0xf]
  %v92 = vld [vmem:[%s1 + $0x12c] sm:$0xf]
  %v93 = vld [vmem:[%s1 + $0x130] sm:$0xf]
  %v94 = vld [vmem:[%s1 + $0x134] sm:$0xf]
  %v95 = vld [vmem:[%s1 + $0x138] sm:$0xf]
  %v96 = vld [vmem:[%s1 + $0x13c] sm:$0xf]
  %v97 = vld [vmem:[%s1 + $0x140] sm:$0xf]
  %v98 = vld [vmem:[%s1 + $0x144] sm:$0xf]
  %v99 = vld [vmem:[%s1 + $0x148] sm:$0xf]
  %v100 = vld [vmem:[%s1 + $0x14c] sm:$0xf]
  %v101 = vld [vmem:[%s1 + $0x150] sm:$0xf]
  %v102 = vld [vmem:[%s1 + $0x154] sm:$0xf]
  %v103 = vld [vmem:[%s1 + $0x158] sm:$0xf]
  %v104 = vld [vmem:[%s1 + $0x15c] sm:$0xf]
  %v105 = vld [vmem:[%s1 + $0x160] sm:$0xf]
  %v106 = vld [vmem:[%s1 + $0x164] sm:$0xf]
  %v107 = vld [vmem:[%s1 + $0x168] sm:$0xf]
  %v108 = vld [vmem:[%s1 + $0x16c] sm:$0xf]
  %v109 = vld [vmem:[%s1 + $0x170] sm:$0xf]
  %v110 = vld [vmem:[%s1 + $0x174] sm:$0xf]
  %v111 = vld [vmem:[%s1 + $0x178] sm:$0xf]
  %v112 = vld [vmem:[%s1 + $0x17c] sm:$0xf]
  %v113 = vld [vmem:[%s1 + $0x180] sm:$0xf]
  %v114 = vld [vmem:[%s1 + $0x184] sm:$0xf]
  %v115 = vld [vmem:[%s1 + $0x188] sm:$0xf]
  %v116 = vld [vmem:[%s1 + $0x18c] sm:$0xf]
  %v117 = vld [vmem:[%s1 + $0x190] sm:$0xf]
  %v118 = vld [vmem:[%s1 + $0x194] sm:$0xf]
  %v119 = vld [vmem:[%s1 + $0x198] sm:$0xf]
  %v120 = vld [vmem:[%s1 + $0x19c] sm:$0xf]
  %v121 = vld [vmem:[%s1 + $0x1a0] sm:$0xf]
  %v122 = vld [vmem:[%s1 + $0x1a4] sm:$0xf]
  %v123 = vld [vmem:[%s1 + $0x1a8] sm:$0xf]
  %v124 = vld [vmem:[%s1 + $0x1ac] sm:$0xf]
  %v125 = vld [vmem:[%s1 + $0x1b0] sm:$0xf]
  %v126 = vld [vmem:[%s1 + $0x1b4] sm:$0xf]
  %v127 = vld [vmem:[%s1 + $0x1b8] sm:$0xf]
  %v128 = vld [vmem:[%s1 + $0x1bc] sm:$0xf]
  %v129 = vld [vmem:[%s1 + $0x1c0] sm:$0xf]
  %v130 = vld [vmem:[%s1 + $0x1c4] sm:$0xf]
  %v131 = vld [vmem:[%s1 + $0x1c8] sm:$0xf]
  %v132 = vld [vmem:[%s1 + $0x1cc] sm:$0xf]
  %v133 = vld [vmem:[%s1 + $0x1d0] sm:$0xf]
  %v134 = vld [vmem:[%s1 + $0x1d4] sm:$0xf]
  %v135 = vld [vmem:[%s1 + $0x1d8] sm:$0xf]
  %v136 = vld [vmem:[%s1 + $0x1dc] sm:$0xf]
  %v137 = vld [vmem:[%s1 + $0x1e0] sm:$0xf]
  %v138 = vld [vmem:[%s1 + $0x1e4] sm:$0xf]
  %v139 = vld [vmem:[%s1 + $0x1e8] sm:$0xf]
  %v140 = vld [vmem:[%s1 + $0x1ec] sm:$0xf]
  %v141 = vld [vmem:[%s1 + $0x1f0] sm:$0xf]
  %v142 = vld [vmem:[%s1 + $0x1f4] sm:$0xf]
  %v143 = vld [vmem:[%s1 + $0x1f8] sm:$0xf]
  %v144 = vld [vmem:[%s1 + $0x1fc] sm:$0xf]
  %v145 = vld [vmem:[%s1 + $0x200] sm:$0xf]
  %v146 = vld [vmem:[%s1 + $0x204] sm:$0xf]
  %v147 = vld [vmem:[%s1 + $0x208] sm:$0xf]
  %v148 = vld [vmem:[%s1 + $0x20c] sm:$0xf]
  %v149 = vld [vmem:[%s1 + $0x210] sm:$0xf]
  %v150 = vld [vmem:[%s1 + $0x214] sm:$0xf]
  %v151 = vld [vmem:[%s1 + $0x218] sm:$0xf]
  %v152 = vld [vmem:[%s1 + $0x21c] sm:$0xf]
  %v153 = vld [vmem:[%s1 + $0x220] sm:$0xf]
  %v154 = vld [vmem:[%s1 + $0x224] sm:$0xf]
  %v155 = vld [vmem:[%s1 + $0x228] sm:$0xf]
  %v156 = vld [vmem:[%s1 + $0x22c] sm:$0xf]
  %v157 = vld [vmem:[%s1 + $0x230] sm:$0xf]
  %v158 = vld [vmem:[%s1 + $0x234] sm:$0xf]
  %v159 = vld [vmem:[%s1 + $0x238] sm:$0xf]
  %v160 = vld [vmem:[%s1 + $0x23c] sm:$0xf]
  %v161 = vld [vmem:[%s1 + $0x240] sm:$0xf]
  %v162 = vld [vmem:[%s1 + $0x244] sm:$0xf]
  %v163 = vld [vmem:[%s1 + $0x248] sm:$0xf]
  %v164 = vld [vmem:[%s1 + $0x24c] sm:$0xf]
  %v165 = vld [vmem:[%s1 + $0x250] sm:$0xf]
  %v166 = vld [vmem:[%s1 + $0x254] sm:$0xf]
  %v167 = vld [vmem:[%s1 + $0x258] sm:$0xf]
  %v168 = vld [vmem:[%s1 + $0x25c] sm:$0xf]
  %v169 = vld [vmem:[%s1 + $0x260] sm:$0xf]
  %v170 = vld [vmem:[%s1 + $0x264] sm:$0xf]
  %v171 = vld [vmem:[%s1 + $0x268] sm:$0xf]
  %v172 = vld [vmem:[%s1 + $0x26c] sm:$0xf]
  %v173 = vld [vmem:[%s1 + $0x270] sm:$0xf]
  %v174 = vld [vmem:[%s1 + $0x274] sm:$0xf]
  %v175 = vld [vmem:[%s1 + $0x278] sm:$0xf]
  %v176 = vld [vmem:[%s1 + $0x27c] sm:$0xf]
  %v177 = vld [vmem:[%s1 + $0x280] sm:$0xf]
  %v178 = vld [vmem:[%s1 + $0x284] sm:$0xf]
  %v179 = vld [vmem:[%s1 + $0x288] sm:$0xf]
  %v180 = vld [vmem:[%s1 + $0x28c] sm:$0xf]
  %v181 = vld [vmem:[%s1 + $0x290] sm:$0xf]
  %v182 = vld [vmem:[%s1 + $0x294] sm:$0xf]
  %v183 = vld [vmem:[%s1 + $0x298] sm:$0xf]
  %v184 = vld [vmem:[%s1 + $0x29c] sm:$0xf]
  %v185 = vld [vmem:[%s1 + $0x2a0] sm:$0xf]
  %v186 = vld [vmem:[%s1 + $0x2a4] sm:$0xf]
  %v187 = vld [vmem:[%s1 + $0x2a8] sm:$0xf]
  %v188 = vld [vmem:[%s1 + $0x2ac] sm:$0xf]
  %v189 = vld [vmem:[%s1 + $0x2b0] sm:$0xf]
  %v190 = vld [vmem:[%s1 + $0x2b4] sm:$0xf]
  %v191 = vld [vmem:[%s1 + $0x2b8] sm:$0xf]
  %v192 = vld [vmem:[%s1 + $0x2bc] sm:$0xf]
  %v193 = vld [vmem:[%s1 + $0x2c0] sm:$0xf]
  %v194 = vld [vmem:[%s1 + $0x2c4] sm:$0xf]
  %v195 = vld [vmem:[%s1 + $0x2c8] sm:$0xf]
  %v196 = vld [vmem:[%s1 + $0x2cc] sm:$0xf]
  %v197 = vld [vmem:[%s1 + $0x2d0] sm:$0xf]
  %v198 = vld [vmem:[%s1 + $0x2d4] sm:$0xf]
  %v199 = vld [vmem:[%s1 + $0x2d8] sm:$0xf]
  %v200 = vld [vmem:[%s1 + $0x2dc] sm:$0xf]
  %v201 = vld [vmem:[%s1 + $0x2e0] sm:$0xf]
  %v202 = vld [vmem:[%s1 + $0x2e4] sm:$0xf]
  %v203 = vld [vmem:[%s1 + $0x2e8] sm:$0xf]
  %v204 = vld [vmem:[%s1 + $0x2ec] sm:$0xf]
  %v205 = vld [vmem:[%s1 + $0x2f0] sm:$0xf]
  %v206 = vld [vmem:[%s1 + $0x2f4] sm:$0xf]
  %v207 = vld [vmem:[%s1 + $0x2f8] sm:$0xf]
  %v208 = vld [vmem:[%s1 + $0x2fc] sm:$0xf]
  %v209 = vld [vmem:[%s1 + $0x300] sm:$0xf]
  %v210 = vld [vmem:[%s1 + $0x304] sm:$0xf]
  %v211 = vld [vmem:[%s1 + $0x308] sm:$0xf]
  %v212 = vld [vmem:[%s1 + $0x30c] sm:$0xf]
  %v213 = vld [vmem:[%s1 + $0x310] sm:$0xf]
  %v214 = vld [vmem:[%s1 + $0x314] sm:$0xf]
  %v215 = vld [vmem:[%s1 + $0x318] sm:$0xf]
  %v216 = vld [vmem:[%s1 + $0x31c] sm:$0xf]
  %v217 = vld [vmem:[%s1 + $0x320] sm:$0xf]
  %v218 = vld [vmem:[%s1 + $0x324] sm:$0xf]
  %v219 = vld [vmem:[%s1 + $0x328] sm:$0xf]
  %v220 = vld [vmem:[%s1 + $0x32c] sm:$0xf]
  %v221 = vld [vmem:[%s1 + $0x330] sm:$0xf]
  %v222 = vld [vmem:[%s1 + $0x334] sm:$0xf]
  %v223 = vld [vmem:[%s1 + $0x338] sm:$0xf]
  %v224 = vld [vmem:[%s1 + $0x33c] sm:$0xf]
  %v225 = vld [vmem:[%s1 + $0x340] sm:$0xf]
  %v226 = vld [vmem:[%s1 + $0x344] sm:$0xf]
  %v227 = vld [vmem:[%s1 + $0x348] sm:$0xf]
  %v228 = vld [vmem:[%s1 + $0x34c] sm:$0xf]
  %v229 = vld [vmem:[%s1 + $0x350] sm:$0xf]
  %v230 = vld [vmem:[%s1 + $0x354] sm:$0xf]
  %v231 = vld [vmem:[%s1 + $0x358] sm:$0xf]
  %v232 = vld [vmem:[%s1 + $0x35c] sm:$0xf]
  %v233 = vld [vmem:[%s1 + $0x360] sm:$0xf]
  %v234 = vld [vmem:[%s1 + $0x364] sm:$0xf]
  %v235 = vld [vmem:[%s1 + $0x368] sm:$0xf]
  %v236 = vld [vmem:[%s1 + $0x36c] sm:$0xf]
  %v237 = vld [vmem:[%s1 + $0x370] sm:$0xf]
  %v238 = vld [vmem:[%s1 + $0x374] sm:$0xf]
  %v239 = vld [vmem:[%s1 + $0x378] sm:$0xf]
  %v240 = vld [vmem:[%s1 + $0x37c] sm:$0xf]
  %v241 = vld [vmem:[%s1 + $0x380] sm:$0xf]
  %v242 = vld [vmem:[%s1 + $0x384] sm:$0xf]
  %v243 = vld [vmem:[%s1 + $0x388] sm:$0xf]
  %v244 = vld [vmem:[%s1 + $0x38c] sm:$0xf]
  %v245 = vld [vmem:[%s1 + $0x390] sm:$0xf]
  %v246 = vld [vmem:[%s1 + $0x394] sm:$0xf]
  %v247 = vld [vmem:[%s1 + $0x398] sm:$0xf]
  %v248 = vld [vmem:[%s1 + $0x39c] sm:$0xf]
  %v249 = vld [vmem:[%s1 + $0x3a0] sm:$0xf]
  %v250 = vld [vmem:[%s1 + $0x3a4] sm:$0xf]
  %v251 = vld [vmem:[%s1 + $0x3a8] sm:$0xf]
  %v252 = vld [vmem:[%s1 + $0x3ac] sm:$0xf]
  %v253 = vld [vmem:[%s1 + $0x3b0] sm:$0xf]
  %v254 = vld [vmem:[%s1 + $0x3b4] sm:$0xf]
  %v255 = vld [vmem:[%s1 + $0x3b8] sm:$0xf]
  %v256 = vld [vmem:[%s1 + $0x3bc] sm:$0xf]
  %v257 = vld [vmem:[%s1 + $0x3c0] sm:$0xf]
  %v258 = vld [vmem:[%s1 + $0x3c4] sm:$0xf]
  %v259 = vld [vmem:[%s1 + $0x3c8] sm:$0xf]
  %v260 = vld [vmem:[%s1 + $0x3cc] sm:$0xf]
  %v261 = vld [vmem:[%s1 + $0x3d0] sm:$0xf]
  %v262 = vld [vmem:[%s1 + $0x3d4] sm:$0xf]
  %v263 = vld [vmem:[%s1 + $0x3d8] sm:$0xf]
  %v264 = vld [vmem:[%s1 + $0x3dc] sm:$0xf]
  %v265 = vld [vmem:[%s1 + $0x3e0] sm:$0xf]
  %v266 = vld [vmem:[%s1 + $0x3e4] sm:$0xf]
  %v267 = vld [vmem:[%s1 + $0x3e8] sm:$0xf]
  %v268 = vld [vmem:[%s1 + $0x3ec] sm:$0xf]
  %v269 = vld [vmem:[%s1 + $0x3f0] sm:$0xf]
  %v270 = vld [vmem:[%s1 + $0x3f4] sm:$0xf]
  %v271 = vld [vmem:[%s1 + $0x3f8] sm:$0xf]
  %v272 = vld [vmem:[%s1 + $0x3fc] sm:$0xf]
  %v273 = vld [vmem:[%s1 + $0x400] sm:$0xf]
  %v274 = vld [vmem:[%s1 + $0x404] sm:$0xf]
  %v275 = vld [vmem:[%s1 + $0x408] sm:$0xf]
  %v276 = vld [vmem:[%s1 + $0x40c] sm:$0xf]
  %v277 = vld [vmem:[%s1 + $0x410] sm:$0xf]
  %v278 = vld [vmem:[%s1 + $0x414] sm:$0xf]
  %v279 = vld [vmem:[%s1 + $0x418] sm:$0xf]
  %v280 = vld [vmem:[%s1 + $0x41c] sm:$0xf]
  %v281 = vld [vmem:[%s1 + $0x420] sm:$0xf]
  %v282 = vld [vmem:[%s1 + $0x424] sm:$0xf]
  %v283 = vld [vmem:[%s1 + $0x428] sm:$0xf]
  %v284 = vld [vmem:[%s1 + $0x42c] sm:$0xf]
  %v285 = vld [vmem:[%s1 + $0x430] sm:$0xf]
  %v286 = vld [vmem:[%s1 + $0x434] sm:$0xf]
  %v287 = vld [vmem:[%s1 + $0x438] sm:$0xf]
  %v288 = vld [vmem:[%s1 + $0x43c] sm:$0xf]
  %v294 = vcombine.high %v12, %v12
  %v296 = vunpack.c.l.s4 1983009808
  %v297 = vunpack.c.0.s8 %v296
  %v298 = vlaneseq
  %v299 = vshrl.u32 %v298, 7
  %v300 = vsub.s32 %v297, %v299
  %v301 = vrot.slane %v12, %v300
  %v303 = vunpack.c.l.s4 1983009808
  %v304 = vunpack.c.0.s8 %v303
  %v305 = vlaneseq
  %v306 = vshrl.u32 %v305, 7
  %v307 = vsub.s32 %v304, %v306
  %v308 = vrot.slane %v294, %v307
  %v309 = vcombine.high %v301, %v301
  %v310 = vcombine.high %v308, %v308
  %v311 = vcombine.high %v13, %v13
  %v313 = vunpack.c.l.s4 1983009808
  %v314 = vunpack.c.0.s8 %v313
  %v315 = vlaneseq
  %v316 = vshrl.u32 %v315, 7
  %v317 = vsub.s32 %v314, %v316
  %v318 = vrot.slane %v13, %v317
  %v320 = vunpack.c.l.s4 1983009808
  %v321 = vunpack.c.0.s8 %v320
  %v322 = vlaneseq
  %v323 = vshrl.u32 %v322, 7
  %v324 = vsub.s32 %v321, %v323
  %v325 = vrot.slane %v311, %v324
  %v326 = vcombine.high %v318, %v318
  %v327 = vcombine.high %v325, %v325
  %v328 = vcombine.high %v14, %v14
  %v330 = vunpack.c.l.s4 1983009808
  %v331 = vunpack.c.0.s8 %v330
  %v332 = vlaneseq
  %v333 = vshrl.u32 %v332, 7
  %v334 = vsub.s32 %v331, %v333
  %v335 = vrot.slane %v14, %v334
  %v337 = vunpack.c.l.s4 1983009808
  %v338 = vunpack.c.0.s8 %v337
  %v339 = vlaneseq
  %v340 = vshrl.u32 %v339, 7
  %v341 = vsub.s32 %v338, %v340
  %v342 = vrot.slane %v328, %v341
  %v343 = vcombine.high %v335, %v335
  %v344 = vcombine.high %v342, %v342
  %v345 = vcombine.high %v15, %v15
  %v347 = vunpack.c.l.s4 1983009808
  %v348 = vunpack.c.0.s8 %v347
  %v349 = vlaneseq
  %v350 = vshrl.u32 %v349, 7
  %v351 = vsub.s32 %v348, %v350
  %v352 = vrot.slane %v15, %v351
  %v354 = vunpack.c.l.s4 1983009808
  %v355 = vunpack.c.0.s8 %v354
  %v356 = vlaneseq
  %v357 = vshrl.u32 %v356, 7
  %v358 = vsub.s32 %v355, %v357
  %v359 = vrot.slane %v345, %v358
  %v360 = vcombine.high %v352, %v352
  %v361 = vcombine.high %v359, %v359
  %v363 = vunpack.c.l.s4 1983009808
  %v364 = vunpack.c.0.s8 %v363
  %v365 = vlaneseq
  %v366 = vshrl.u32 %v365, 7
  %v367 = vsub.s32 %v364, %v366
  %v368 = vrot.slane %v16, %v367
  %v658 = vunpack.c.l.b16 %v17
  %v659 = vunpack.c.l.b16 %v18
  %v660 = vunpack.c.l.b16 %v19
  %v661 = vunpack.c.l.b16 %v20
  %v662 = vunpack.c.l.b16 %v21
  %v663 = vunpack.c.l.b16 %v22
  %v664 = vunpack.c.l.b16 %v23
  %v665 = vunpack.c.l.b16 %v24
  %v666 = vunpack.c.l.b16 %v25
  %v667 = vunpack.c.l.b16 %v26
  %v668 = vunpack.c.l.b16 %v27
  %v669 = vunpack.c.l.b16 %v28
  %v670 = vunpack.c.l.b16 %v29
  %v671 = vunpack.c.l.b16 %v30
  %v672 = vunpack.c.l.b16 %v31
  %v673 = vunpack.c.l.b16 %v32
  %v674 = vunpack.c.l.b16 %v33
  %v675 = vunpack.c.l.b16 %v34
  %v676 = vunpack.c.l.b16 %v35
  %v677 = vunpack.c.l.b16 %v36
  %v678 = vunpack.c.l.b16 %v37
  %v679 = vunpack.c.l.b16 %v38
  %v680 = vunpack.c.l.b16 %v39
  %v681 = vunpack.c.l.b16 %v40
  %v682 = vunpack.c.l.b16 %v41
  %v683 = vunpack.c.l.b16 %v42
  %v684 = vunpack.c.l.b16 %v43
  %v685 = vunpack.c.l.b16 %v44
  %v686 = vunpack.c.l.b16 %v45
  %v687 = vunpack.c.l.b16 %v46
  %v688 = vunpack.c.l.b16 %v47
  %v689 = vunpack.c.l.b16 %v48
  %v690 = vunpack.c.l.b16 %v49
  %v691 = vunpack.c.l.b16 %v50
  %v692 = vunpack.c.l.b16 %v51
  %v693 = vunpack.c.l.b16 %v52
  %v694 = vunpack.c.l.b16 %v53
  %v695 = vunpack.c.l.b16 %v54
  %v696 = vunpack.c.l.b16 %v55
  %v697 = vunpack.c.l.b16 %v56
  %v698 = vunpack.c.l.b16 %v57
  %v699 = vunpack.c.l.b16 %v58
  %v700 = vunpack.c.l.b16 %v59
  %v701 = vunpack.c.l.b16 %v60
  %v702 = vunpack.c.l.b16 %v61
  %v703 = vunpack.c.l.b16 %v62
  %v704 = vunpack.c.l.b16 %v63
  %v705 = vunpack.c.l.b16 %v64
  %v706 = vunpack.c.l.b16 %v65
  %v707 = vunpack.c.l.b16 %v66
  %v708 = vunpack.c.l.b16 %v67
  %v709 = vunpack.c.l.b16 %v68
  %v710 = vunpack.c.l.b16 %v69
  %v711 = vunpack.c.l.b16 %v70
  %v712 = vunpack.c.l.b16 %v71
  %v713 = vunpack.c.l.b16 %v72
  %v714 = vunpack.c.l.b16 %v73
  %v715 = vunpack.c.l.b16 %v74
  %v716 = vunpack.c.l.b16 %v75
  %v717 = vunpack.c.l.b16 %v76
  %v718 = vunpack.c.l.b16 %v77
  %v719 = vunpack.c.l.b16 %v78
  %v720 = vunpack.c.l.b16 %v79
  %v721 = vunpack.c.l.b16 %v80
  %v722 = vunpack.c.l.b16 %v81
  %v723 = vunpack.c.l.b16 %v82
  %v724 = vunpack.c.l.b16 %v83
  %v725 = vunpack.c.l.b16 %v84
  %v726 = vunpack.c.l.b16 %v85
  %v727 = vunpack.c.l.b16 %v86
  %v728 = vunpack.c.l.b16 %v87
  %v729 = vunpack.c.l.b16 %v88
  %v730 = vunpack.c.l.b16 %v89
  %v731 = vunpack.c.l.b16 %v90
  %v732 = vunpack.c.l.b16 %v91
  %v733 = vunpack.c.l.b16 %v92
  %v734 = vunpack.c.l.b16 %v93
  %v735 = vunpack.c.l.b16 %v94
  %v736 = vunpack.c.l.b16 %v95
  %v737 = vunpack.c.l.b16 %v96
  %v738 = vunpack.c.l.b16 %v97
  %v739 = vunpack.c.l.b16 %v98
  %v740 = vunpack.c.l.b16 %v99
  %v741 = vunpack.c.l.b16 %v100
  %v742 = vunpack.c.l.b16 %v101
  %v743 = vunpack.c.l.b16 %v102
  %v744 = vunpack.c.l.b16 %v103
  %v745 = vunpack.c.l.b16 %v104
  %v746 = vunpack.c.l.b16 %v105
  %v747 = vunpack.c.l.b16 %v106
  %v748 = vunpack.c.l.b16 %v107
  %v749 = vunpack.c.l.b16 %v108
  %v750 = vunpack.c.l.b16 %v109
  %v751 = vunpack.c.l.b16 %v110
  %v752 = vunpack.c.l.b16 %v111
  %v753 = vunpack.c.l.b16 %v112
  %v754 = vunpack.c.l.b16 %v113
  %v755 = vunpack.c.l.b16 %v114
  %v756 = vunpack.c.l.b16 %v115
  %v757 = vunpack.c.l.b16 %v116
  %v758 = vunpack.c.l.b16 %v117
  %v759 = vunpack.c.l.b16 %v118
  %v760 = vunpack.c.l.b16 %v119
  %v761 = vunpack.c.l.b16 %v120
  %v762 = vunpack.c.l.b16 %v121
  %v763 = vunpack.c.l.b16 %v122
  %v764 = vunpack.c.l.b16 %v123
  %v765 = vunpack.c.l.b16 %v124
  %v766 = vunpack.c.l.b16 %v125
  %v767 = vunpack.c.l.b16 %v126
  %v768 = vunpack.c.l.b16 %v127
  %v769 = vunpack.c.l.b16 %v128
  %v770 = vunpack.c.l.b16 %v129
  %v771 = vunpack.c.l.b16 %v130
  %v772 = vunpack.c.l.b16 %v131
  %v773 = vunpack.c.l.b16 %v132
  %v774 = vunpack.c.l.b16 %v133
  %v775 = vunpack.c.l.b16 %v134
  %v776 = vunpack.c.l.b16 %v135
  %v777 = vunpack.c.l.b16 %v136
  %v778 = vunpack.c.l.b16 %v137
  %v779 = vunpack.c.l.b16 %v138
  %v780 = vunpack.c.l.b16 %v139
  %v781 = vunpack.c.l.b16 %v140
  %v782 = vunpack.c.l.b16 %v141
  %v783 = vunpack.c.l.b16 %v142
  %v784 = vunpack.c.l.b16 %v143
  %v785 = vunpack.c.l.b16 %v144
  %v786 = vunpack.c.l.b16 %v145
  %v787 = vunpack.c.l.b16 %v146
  %v788 = vunpack.c.l.b16 %v147
  %v789 = vunpack.c.l.b16 %v148
  %v790 = vunpack.c.l.b16 %v149
  %v791 = vunpack.c.l.b16 %v150
  %v792 = vunpack.c.l.b16 %v151
  %v793 = vunpack.c.l.b16 %v152
  %v794 = vunpack.c.l.b16 %v153
  %v795 = vunpack.c.l.b16 %v154
  %v796 = vunpack.c.l.b16 %v155
  %v797 = vunpack.c.l.b16 %v156
  %v798 = vunpack.c.l.b16 %v157
  %v799 = vunpack.c.l.b16 %v158
  %v800 = vunpack.c.l.b16 %v159
  %v801 = vunpack.c.l.b16 %v160
  %v802 = vunpack.c.l.b16 %v161
  %v803 = vunpack.c.l.b16 %v162
  %v804 = vunpack.c.l.b16 %v163
  %v805 = vunpack.c.l.b16 %v164
  %v806 = vunpack.c.l.b16 %v165
  %v807 = vunpack.c.l.b16 %v166
  %v808 = vunpack.c.l.b16 %v167
  %v809 = vunpack.c.l.b16 %v168
  %v810 = vunpack.c.l.b16 %v169
  %v811 = vunpack.c.l.b16 %v170
  %v812 = vunpack.c.l.b16 %v171
  %v813 = vunpack.c.l.b16 %v172
  %v814 = vunpack.c.l.b16 %v173
  %v815 = vunpack.c.l.b16 %v174
  %v816 = vunpack.c.l.b16 %v175
  %v817 = vunpack.c.l.b16 %v176
  %v818 = vunpack.c.l.b16 %v177
  %v819 = vunpack.c.l.b16 %v178
  %v820 = vunpack.c.l.b16 %v179
  %v821 = vunpack.c.l.b16 %v180
  %v822 = vunpack.c.l.b16 %v181
  %v823 = vunpack.c.l.b16 %v182
  %v824 = vunpack.c.l.b16 %v183
  %v825 = vunpack.c.l.b16 %v184
  %v826 = vunpack.c.l.b16 %v185
  %v827 = vunpack.c.l.b16 %v186
  %v828 = vunpack.c.l.b16 %v187
  %v829 = vunpack.c.l.b16 %v188
  %v830 = vunpack.c.l.b16 %v189
  %v831 = vunpack.c.l.b16 %v190
  %v832 = vunpack.c.l.b16 %v191
  %v833 = vunpack.c.l.b16 %v192
  %v834 = vunpack.c.l.b16 %v193
  %v835 = vunpack.c.l.b16 %v194
  %v836 = vunpack.c.l.b16 %v195
  %v837 = vunpack.c.l.b16 %v196
  %v838 = vunpack.c.l.b16 %v197
  %v839 = vunpack.c.l.b16 %v198
  %v840 = vunpack.c.l.b16 %v199
  %v841 = vunpack.c.l.b16 %v200
  %v842 = vunpack.c.l.b16 %v201
  %v843 = vunpack.c.l.b16 %v202
  %v844 = vunpack.c.l.b16 %v203
  %v845 = vunpack.c.l.b16 %v204
  %v846 = vunpack.c.l.b16 %v205
  %v847 = vunpack.c.l.b16 %v206
  %v848 = vunpack.c.l.b16 %v207
  %v849 = vunpack.c.l.b16 %v208
  %v850 = vunpack.c.l.b16 %v209
  %v851 = vunpack.c.l.b16 %v210
  %v852 = vunpack.c.l.b16 %v211
  %v853 = vunpack.c.l.b16 %v212
  %v854 = vunpack.c.l.b16 %v213
  %v855 = vunpack.c.l.b16 %v214
  %v856 = vunpack.c.l.b16 %v215
  %v857 = vunpack.c.l.b16 %v216
  %v858 = vunpack.c.l.b16 %v217
  %v859 = vunpack.c.l.b16 %v218
  %v860 = vunpack.c.l.b16 %v219
  %v861 = vunpack.c.l.b16 %v220
  %v862 = vunpack.c.l.b16 %v221
  %v863 = vunpack.c.l.b16 %v222
  %v864 = vunpack.c.l.b16 %v223
  %v865 = vunpack.c.l.b16 %v224
  %v866 = vunpack.c.l.b16 %v225
  %v867 = vunpack.c.l.b16 %v226
  %v868 = vunpack.c.l.b16 %v227
  %v869 = vunpack.c.l.b16 %v228
  %v870 = vunpack.c.l.b16 %v229
  %v871 = vunpack.c.l.b16 %v230
  %v872 = vunpack.c.l.b16 %v231
  %v873 = vunpack.c.l.b16 %v232
  %v874 = vunpack.c.l.b16 %v233
  %v875 = vunpack.c.l.b16 %v234
  %v876 = vunpack.c.l.b16 %v235
  %v877 = vunpack.c.l.b16 %v236
  %v878 = vunpack.c.l.b16 %v237
  %v879 = vunpack.c.l.b16 %v238
  %v880 = vunpack.c.l.b16 %v239
  %v881 = vunpack.c.l.b16 %v240
  %v882 = vunpack.c.l.b16 %v241
  %v883 = vunpack.c.l.b16 %v242
  %v884 = vunpack.c.l.b16 %v243
  %v885 = vunpack.c.l.b16 %v244
  %v886 = vunpack.c.l.b16 %v245
  %v887 = vunpack.c.l.b16 %v246
  %v888 = vunpack.c.l.b16 %v247
  %v889 = vunpack.c.l.b16 %v248
  %v890 = vunpack.c.l.b16 %v249
  %v891 = vunpack.c.l.b16 %v250
  %v892 = vunpack.c.l.b16 %v251
  %v893 = vunpack.c.l.b16 %v252
  %v894 = vunpack.c.l.b16 %v253
  %v895 = vunpack.c.l.b16 %v254
  %v896 = vunpack.c.l.b16 %v255
  %v897 = vunpack.c.l.b16 %v256
  %v898 = vunpack.c.l.b16 %v257
  %v899 = vunpack.c.l.b16 %v258
  %v900 = vunpack.c.l.b16 %v259
  %v901 = vunpack.c.l.b16 %v260
  %v902 = vunpack.c.l.b16 %v261
  %v903 = vunpack.c.l.b16 %v262
  %v904 = vunpack.c.l.b16 %v263
  %v905 = vunpack.c.l.b16 %v264
  %v906 = vunpack.c.l.b16 %v265
  %v907 = vunpack.c.l.b16 %v266
  %v908 = vunpack.c.l.b16 %v267
  %v909 = vunpack.c.l.b16 %v268
  %v910 = vunpack.c.l.b16 %v269
  %v911 = vunpack.c.l.b16 %v270
  %v912 = vunpack.c.l.b16 %v271
  %v913 = vunpack.c.l.b16 %v272
  %v914 = vunpack.c.l.b16 %v273
  %v915 = vunpack.c.l.b16 %v274
  %v916 = vunpack.c.l.b16 %v275
  %v917 = vunpack.c.l.b16 %v276
  %v918 = vunpack.c.l.b16 %v277
  %v919 = vunpack.c.l.b16 %v278
  %v920 = vunpack.c.l.b16 %v279
  %v921 = vunpack.c.l.b16 %v280
  %v922 = vunpack.c.l.b16 %v281
  %v923 = vunpack.c.l.b16 %v282
  %v924 = vunpack.c.l.b16 %v283
  %v925 = vunpack.c.l.b16 %v284
  %v926 = vunpack.c.l.b16 %v285
  %v927 = vunpack.c.l.b16 %v286
  %v928 = vunpack.c.l.b16 %v287
  %v929 = vunpack.c.l.b16 %v288
  %v930 = vpack.c.b16 %v659, %v658
  %v931 = vpack.c.b16 %v661, %v660
  %v932 = vpack.c.b16 %v663, %v662
  %v933 = vpack.c.b16 %v665, %v664
  %v934 = vpack.c.b16 %v667, %v666
  %v935 = vpack.c.b16 %v669, %v668
  %v936 = vpack.c.b16 %v671, %v670
  %v937 = vpack.c.b16 %v673, %v672
  %v938 = vpack.c.b16 %v675, %v674
  %v939 = vpack.c.b16 %v677, %v676
  %v940 = vpack.c.b16 %v679, %v678
  %v941 = vpack.c.b16 %v681, %v680
  %v942 = vpack.c.b16 %v683, %v682
  %v943 = vpack.c.b16 %v685, %v684
  %v944 = vpack.c.b16 %v687, %v686
  %v945 = vpack.c.b16 %v689, %v688
  %v946 = vpack.c.b16 %v691, %v690
  %v947 = vpack.c.b16 %v693, %v692
  %v948 = vpack.c.b16 %v695, %v694
  %v949 = vpack.c.b16 %v697, %v696
  %v950 = vpack.c.b16 %v699, %v698
  %v951 = vpack.c.b16 %v701, %v700
  %v952 = vpack.c.b16 %v703, %v702
  %v953 = vpack.c.b16 %v705, %v704
  %v954 = vpack.c.b16 %v707, %v706
  %v955 = vpack.c.b16 %v709, %v708
  %v956 = vpack.c.b16 %v711, %v710
  %v957 = vpack.c.b16 %v713, %v712
  %v958 = vpack.c.b16 %v715, %v714
  %v959 = vpack.c.b16 %v717, %v716
  %v960 = vpack.c.b16 %v719, %v718
  %v961 = vpack.c.b16 %v721, %v720
  %v962 = vpack.c.b16 %v723, %v722
  %v963 = vpack.c.b16 %v725, %v724
  %v964 = vpack.c.b16 %v727, %v726
  %v965 = vpack.c.b16 %v729, %v728
  %v966 = vpack.c.b16 %v731, %v730
  %v967 = vpack.c.b16 %v733, %v732
  %v968 = vpack.c.b16 %v735, %v734
  %v969 = vpack.c.b16 %v737, %v736
  %v970 = vpack.c.b16 %v739, %v738
  %v971 = vpack.c.b16 %v741, %v740
  %v972 = vpack.c.b16 %v743, %v742
  %v973 = vpack.c.b16 %v745, %v744
  %v974 = vpack.c.b16 %v747, %v746
  %v975 = vpack.c.b16 %v749, %v748
  %v976 = vpack.c.b16 %v751, %v750
  %v977 = vpack.c.b16 %v753, %v752
  %v978 = vpack.c.b16 %v755, %v754
  %v979 = vpack.c.b16 %v757, %v756
  %v980 = vpack.c.b16 %v759, %v758
  %v981 = vpack.c.b16 %v761, %v760
  %v982 = vpack.c.b16 %v763, %v762
  %v983 = vpack.c.b16 %v765, %v764
  %v984 = vpack.c.b16 %v767, %v766
  %v985 = vpack.c.b16 %v769, %v768
  %v986 = vpack.c.b16 %v771, %v770
  %v987 = vpack.c.b16 %v773, %v772
  %v988 = vpack.c.b16 %v775, %v774
  %v989 = vpack.c.b16 %v777, %v776
  %v990 = vpack.c.b16 %v779, %v778
  %v991 = vpack.c.b16 %v781, %v780
  %v992 = vpack.c.b16 %v783, %v782
  %v993 = vpack.c.b16 %v785, %v784
  %v994 = vpack.c.b16 %v787, %v786
  %v995 = vpack.c.b16 %v789, %v788
  %v996 = vpack.c.b16 %v791, %v790
  %v997 = vpack.c.b16 %v793, %v792
  %v998 = vpack.c.b16 %v795, %v794
  %v999 = vpack.c.b16 %v797, %v796
  %v1000 = vpack.c.b16 %v799, %v798
  %v1001 = vpack.c.b16 %v801, %v800
  %v1002 = vpack.c.b16 %v803, %v802
  %v1003 = vpack.c.b16 %v805, %v804
  %v1004 = vpack.c.b16 %v807, %v806
  %v1005 = vpack.c.b16 %v809, %v808
  %v1006 = vpack.c.b16 %v811, %v810
  %v1007 = vpack.c.b16 %v813, %v812
  %v1008 = vpack.c.b16 %v815, %v814
  %v1009 = vpack.c.b16 %v817, %v816
  %v1010 = vpack.c.b16 %v819, %v818
  %v1011 = vpack.c.b16 %v821, %v820
  %v1012 = vpack.c.b16 %v823, %v822
  %v1013 = vpack.c.b16 %v825, %v824
  %v1014 = vpack.c.b16 %v827, %v826
  %v1015 = vpack.c.b16 %v829, %v828
  %v1016 = vpack.c.b16 %v831, %v830
  %v1017 = vpack.c.b16 %v833, %v832
  %v1018 = vpack.c.b16 %v835, %v834
  %v1019 = vpack.c.b16 %v837, %v836
  %v1020 = vpack.c.b16 %v839, %v838
  %v1021 = vpack.c.b16 %v841, %v840
  %v1022 = vpack.c.b16 %v843, %v842
  %v1023 = vpack.c.b16 %v845, %v844
  %v1024 = vpack.c.b16 %v847, %v846
  %v1025 = vpack.c.b16 %v849, %v848
  %v1026 = vpack.c.b16 %v851, %v850
  %v1027 = vpack.c.b16 %v853, %v852
  %v1028 = vpack.c.b16 %v855, %v854
  %v1029 = vpack.c.b16 %v857, %v856
  %v1030 = vpack.c.b16 %v859, %v858
  %v1031 = vpack.c.b16 %v861, %v860
  %v1032 = vpack.c.b16 %v863, %v862
  %v1033 = vpack.c.b16 %v865, %v864
  %v1034 = vpack.c.b16 %v867, %v866
  %v1035 = vpack.c.b16 %v869, %v868
  %v1036 = vpack.c.b16 %v871, %v870
  %v1037 = vpack.c.b16 %v873, %v872
  %v1038 = vpack.c.b16 %v875, %v874
  %v1039 = vpack.c.b16 %v877, %v876
  %v1040 = vpack.c.b16 %v879, %v878
  %v1041 = vpack.c.b16 %v881, %v880
  %v1042 = vpack.c.b16 %v883, %v882
  %v1043 = vpack.c.b16 %v885, %v884
  %v1044 = vpack.c.b16 %v887, %v886
  %v1045 = vpack.c.b16 %v889, %v888
  %v1046 = vpack.c.b16 %v891, %v890
  %v1047 = vpack.c.b16 %v893, %v892
  %v1048 = vpack.c.b16 %v895, %v894
  %v1049 = vpack.c.b16 %v897, %v896
  %v1050 = vpack.c.b16 %v899, %v898
  %v1051 = vpack.c.b16 %v901, %v900
  %v1052 = vpack.c.b16 %v903, %v902
  %v1053 = vpack.c.b16 %v905, %v904
  %v1054 = vpack.c.b16 %v907, %v906
  %v1055 = vpack.c.b16 %v909, %v908
  %v1056 = vpack.c.b16 %v911, %v910
  %v1057 = vpack.c.b16 %v913, %v912
  %v1058 = vpack.c.b16 %v915, %v914
  %v1059 = vpack.c.b16 %v917, %v916
  %v1060 = vpack.c.b16 %v919, %v918
  %v1061 = vpack.c.b16 %v921, %v920
  %v1062 = vpack.c.b16 %v923, %v922
  %v1063 = vpack.c.b16 %v925, %v924
  %v1064 = vpack.c.b16 %v927, %v926
  %v1065 = vpack.c.b16 %v929, %v928
  %1202 = vmatprep.subr.bf16.mxu0 0
  %1203 = vmatpush1.bf16.msra.mxu0 %v930
  %1204 = vmatprep.subr.bf16.mxu0 0
  %1205 = vmatpush1.bf16.msra.mxu0 %v931
  %1206 = vmatprep.subr.bf16.mxu0 0
  %1207 = vmatpush1.bf16.msra.mxu0 %v932
  %1208 = vmatprep.subr.bf16.mxu0 0
  %1209 = vmatpush1.bf16.msra.mxu0 %v933
  %1210 = vmatprep.subr.bf16.mxu0 0
  %1211 = vmatpush1.bf16.msra.mxu0 %v934
  %1212 = vmatprep.subr.bf16.mxu0 0
  %1213 = vmatpush1.bf16.msra.mxu0 %v935
  %1214 = vmatprep.subr.bf16.mxu0 0
  %1215 = vmatpush1.bf16.msra.mxu0 %v936
  %1216 = vmatprep.subr.bf16.mxu0 0
  %1217 = vmatpush1.bf16.msra.mxu0 %v937
  %1218 = vmatprep.subr.bf16.mxu0 0
  %1219 = vmatpush1.bf16.msra.mxu0 %v938
  %1220 = vmatprep.subr.bf16.mxu0 0
  %1221 = vmatpush1.bf16.msra.mxu0 %v939
  %1222 = vmatprep.subr.bf16.mxu0 0
  %1223 = vmatpush1.bf16.msra.mxu0 %v940
  %1224 = vmatprep.subr.bf16.mxu0 0
  %1225 = vmatpush1.bf16.msra.mxu0 %v941
  %1226 = vmatprep.subr.bf16.mxu0 0
  %1227 = vmatpush1.bf16.msra.mxu0 %v942
  %1228 = vmatprep.subr.bf16.mxu0 0
  %1229 = vmatpush1.bf16.msra.mxu0 %v943
  %1230 = vmatprep.subr.bf16.mxu0 0
  %1231 = vmatpush1.bf16.msra.mxu0 %v944
  %1232 = vmatprep.subr.bf16.mxu0 0
  %1233 = vmatpush1.bf16.msra.mxu0 %v945
  %1234 = vmatprep.mubr.bf16.mxu0 %v309
  %1235 = vmatmul.mubr.bf16.gmra.mrb[0].mxu0 %v301
  %v1236 = vpop.f32.mrb[0].mxu0
  %v1237 = vadd.f32 0.0, %v1236
  %v1238 = vpop.f32.mrb[0].mxu0
  %v1239 = vpop.f32.mrb[0].mxu0
  %v1240 = vpop.f32.mrb[0].mxu0
  %1241 = vdwg.mxu0
  %1242 = vmatprep.subr.bf16.mxu0 0
  %1243 = vmatpush1.bf16.msra.mxu0 %v946
  %1244 = vmatprep.subr.bf16.mxu0 0
  %1245 = vmatpush1.bf16.msra.mxu0 %v947
  %1246 = vmatprep.subr.bf16.mxu0 0
  %1247 = vmatpush1.bf16.msra.mxu0 %v948
  %1248 = vmatprep.subr.bf16.mxu0 0
  %1249 = vmatpush1.bf16.msra.mxu0 %v949
  %1250 = vmatprep.subr.bf16.mxu0 0
  %1251 = vmatpush1.bf16.msra.mxu0 %v950
  %1252 = vmatprep.subr.bf16.mxu0 0
  %1253 = vmatpush1.bf16.msra.mxu0 %v951
  %1254 = vmatprep.subr.bf16.mxu0 0
  %1255 = vmatpush1.bf16.msra.mxu0 %v952
  %1256 = vmatprep.subr.bf16.mxu0 0
  %1257 = vmatpush1.bf16.msra.mxu0 %v953
  %1258 = vmatprep.subr.bf16.mxu0 0
  %1259 = vmatpush1.bf16.msra.mxu0 %v954
  %1260 = vmatprep.subr.bf16.mxu0 0
  %1261 = vmatpush1.bf16.msra.mxu0 %v955
  %1262 = vmatprep.subr.bf16.mxu0 0
  %1263 = vmatpush1.bf16.msra.mxu0 %v956
  %1264 = vmatprep.subr.bf16.mxu0 0
  %1265 = vmatpush1.bf16.msra.mxu0 %v957
  %1266 = vmatprep.subr.bf16.mxu0 0
  %1267 = vmatpush1.bf16.msra.mxu0 %v958
  %1268 = vmatprep.subr.bf16.mxu0 0
  %1269 = vmatpush1.bf16.msra.mxu0 %v959
  %1270 = vmatprep.subr.bf16.mxu0 0
  %1271 = vmatpush1.bf16.msra.mxu0 %v960
  %1272 = vmatprep.subr.bf16.mxu0 0
  %1273 = vmatpush1.bf16.msra.mxu0 %v961
  %1274 = vmatprep.mubr.bf16.mxu0 %v310
  %1275 = vmatmul.mubr.bf16.gmra.mrb[0].mxu0 %v308
  %v1276 = vpop.f32.mrb[0].mxu0
  %v1277 = vadd.f32 %v1237, %v1276
  %v1278 = vpop.f32.mrb[0].mxu0
  %v1279 = vpop.f32.mrb[0].mxu0
  %v1280 = vpop.f32.mrb[0].mxu0
  %1281 = vdwg.mxu0
  %1282 = vmatprep.subr.bf16.mxu0 0
  %1283 = vmatpush1.bf16.msra.mxu0 %v962
  %1284 = vmatprep.subr.bf16.mxu0 0
  %1285 = vmatpush1.bf16.msra.mxu0 %v963
  %1286 = vmatprep.subr.bf16.mxu0 0
  %1287 = vmatpush1.bf16.msra.mxu0 %v964
  %1288 = vmatprep.subr.bf16.mxu0 0
  %1289 = vmatpush1.bf16.msra.mxu0 %v965
  %1290 = vmatprep.subr.bf16.mxu0 0
  %1291 = vmatpush1.bf16.msra.mxu0 %v966
  %1292 = vmatprep.subr.bf16.mxu0 0
  %1293 = vmatpush1.bf16.msra.mxu0 %v967
  %1294 = vmatprep.subr.bf16.mxu0 0
  %1295 = vmatpush1.bf16.msra.mxu0 %v968
  %1296 = vmatprep.subr.bf16.mxu0 0
  %1297 = vmatpush1.bf16.msra.mxu0 %v969
  %1298 = vmatprep.subr.bf16.mxu0 0
  %1299 = vmatpush1.bf16.msra.mxu0 %v970
  %1300 = vmatprep.subr.bf16.mxu0 0
  %1301 = vmatpush1.bf16.msra.mxu0 %v971
  %1302 = vmatprep.subr.bf16.mxu0 0
  %1303 = vmatpush1.bf16.msra.mxu0 %v972
  %1304 = vmatprep.subr.bf16.mxu0 0
  %1305 = vmatpush1.bf16.msra.mxu0 %v973
  %1306 = vmatprep.subr.bf16.mxu0 0
  %1307 = vmatpush1.bf16.msra.mxu0 %v974
  %1308 = vmatprep.subr.bf16.mxu0 0
  %1309 = vmatpush1.bf16.msra.mxu0 %v975
  %1310 = vmatprep.subr.bf16.mxu0 0
  %1311 = vmatpush1.bf16.msra.mxu0 %v976
  %1312 = vmatprep.subr.bf16.mxu0 0
  %1313 = vmatpush1.bf16.msra.mxu0 %v977
  %1314 = vmatprep.mubr.bf16.mxu0 %v326
  %1315 = vmatmul.mubr.bf16.gmra.mrb[0].mxu0 %v318
  %v1316 = vpop.f32.mrb[0].mxu0
  %v1317 = vadd.f32 %v1277, %v1316
  %v1318 = vpop.f32.mrb[0].mxu0
  %v1319 = vpop.f32.mrb[0].mxu0
  %v1320 = vpop.f32.mrb[0].mxu0
  %1321 = vdwg.mxu0
  %1322 = vmatprep.subr.bf16.mxu0 0
  %1323 = vmatpush1.bf16.msra.mxu0 %v978
  %1324 = vmatprep.subr.bf16.mxu0 0
  %1325 = vmatpush1.bf16.msra.mxu0 %v979
  %1326 = vmatprep.subr.bf16.mxu0 0
  %1327 = vmatpush1.bf16.msra.mxu0 %v980
  %1328 = vmatprep.subr.bf16.mxu0 0
  %1329 = vmatpush1.bf16.msra.mxu0 %v981
  %1330 = vmatprep.subr.bf16.mxu0 0
  %1331 = vmatpush1.bf16.msra.mxu0 %v982
  %1332 = vmatprep.subr.bf16.mxu0 0
  %1333 = vmatpush1.bf16.msra.mxu0 %v983
  %1334 = vmatprep.subr.bf16.mxu0 0
  %1335 = vmatpush1.bf16.msra.mxu0 %v984
  %1336 = vmatprep.subr.bf16.mxu0 0
  %1337 = vmatpush1.bf16.msra.mxu0 %v985
  %1338 = vmatprep.subr.bf16.mxu0 0
  %1339 = vmatpush1.bf16.msra.mxu0 %v986
  %1340 = vmatprep.subr.bf16.mxu0 0
  %1341 = vmatpush1.bf16.msra.mxu0 %v987
  %1342 = vmatprep.subr.bf16.mxu0 0
  %1343 = vmatpush1.bf16.msra.mxu0 %v988
  %1344 = vmatprep.subr.bf16.mxu0 0
  %1345 = vmatpush1.bf16.msra.mxu0 %v989
  %1346 = vmatprep.subr.bf16.mxu0 0
  %1347 = vmatpush1.bf16.msra.mxu0 %v990
  %1348 = vmatprep.subr.bf16.mxu0 0
  %1349 = vmatpush1.bf16.msra.mxu0 %v991
  %1350 = vmatprep.subr.bf16.mxu0 0
  %1351 = vmatpush1.bf16.msra.mxu0 %v992
  %1352 = vmatprep.subr.bf16.mxu0 0
  %1353 = vmatpush1.bf16.msra.mxu0 %v993
  %1354 = vmatprep.mubr.bf16.mxu0 %v327
  %1355 = vmatmul.mubr.bf16.gmra.mrb[0].mxu0 %v325
  %v1356 = vpop.f32.mrb[0].mxu0
  %v1357 = vadd.f32 %v1317, %v1356
  %v1358 = vpop.f32.mrb[0].mxu0
  %v1359 = vpop.f32.mrb[0].mxu0
  %v1360 = vpop.f32.mrb[0].mxu0
  %1361 = vdwg.mxu0
  %1362 = vmatprep.subr.bf16.mxu0 0
  %1363 = vmatpush1.bf16.msra.mxu0 %v994
  %1364 = vmatprep.subr.bf16.mxu0 0
  %1365 = vmatpush1.bf16.msra.mxu0 %v995
  %1366 = vmatprep.subr.bf16.mxu0 0
  %1367 = vmatpush1.bf16.msra.mxu0 %v996
  %1368 = vmatprep.subr.bf16.mxu0 0
  %1369 = vmatpush1.bf16.msra.mxu0 %v997
  %1370 = vmatprep.subr.bf16.mxu0 0
  %1371 = vmatpush1.bf16.msra.mxu0 %v998
  %1372 = vmatprep.subr.bf16.mxu0 0
  %1373 = vmatpush1.bf16.msra.mxu0 %v999
  %1374 = vmatprep.subr.bf16.mxu0 0
  %1375 = vmatpush1.bf16.msra.mxu0 %v1000
  %1376 = vmatprep.subr.bf16.mxu0 0
  %1377 = vmatpush1.bf16.msra.mxu0 %v1001
  %1378 = vmatprep.subr.bf16.mxu0 0
  %1379 = vmatpush1.bf16.msra.mxu0 %v1002
  %1380 = vmatprep.subr.bf16.mxu0 0
  %1381 = vmatpush1.bf16.msra.mxu0 %v1003
  %1382 = vmatprep.subr.bf16.mxu0 0
  %1383 = vmatpush1.bf16.msra.mxu0 %v1004
  %1384 = vmatprep.subr.bf16.mxu0 0
  %1385 = vmatpush1.bf16.msra.mxu0 %v1005
  %1386 = vmatprep.subr.bf16.mxu0 0
  %1387 = vmatpush1.bf16.msra.mxu0 %v1006
  %1388 = vmatprep.subr.bf16.mxu0 0
  %1389 = vmatpush1.bf16.msra.mxu0 %v1007
  %1390 = vmatprep.subr.bf16.mxu0 0
  %1391 = vmatpush1.bf16.msra.mxu0 %v1008
  %1392 = vmatprep.subr.bf16.mxu0 0
  %1393 = vmatpush1.bf16.msra.mxu0 %v1009
  %1394 = vmatprep.mubr.bf16.mxu0 %v343
  %1395 = vmatmul.mubr.bf16.gmra.mrb[0].mxu0 %v335
  %v1396 = vpop.f32.mrb[0].mxu0
  %v1397 = vadd.f32 %v1357, %v1396
  %v1398 = vpop.f32.mrb[0].mxu0
  %v1399 = vpop.f32.mrb[0].mxu0
  %v1400 = vpop.f32.mrb[0].mxu0
  %1401 = vdwg.mxu0
  %1402 = vmatprep.subr.bf16.mxu0 0
  %1403 = vmatpush1.bf16.msra.mxu0 %v1010
  %1404 = vmatprep.subr.bf16.mxu0 0
  %1405 = vmatpush1.bf16.msra.mxu0 %v1011
  %1406 = vmatprep.subr.bf16.mxu0 0
  %1407 = vmatpush1.bf16.msra.mxu0 %v1012
  %1408 = vmatprep.subr.bf16.mxu0 0
  %1409 = vmatpush1.bf16.msra.mxu0 %v1013
  %1410 = vmatprep.subr.bf16.mxu0 0
  %1411 = vmatpush1.bf16.msra.mxu0 %v1014
  %1412 = vmatprep.subr.bf16.mxu0 0
  %1413 = vmatpush1.bf16.msra.mxu0 %v1015
  %1414 = vmatprep.subr.bf16.mxu0 0
  %1415 = vmatpush1.bf16.msra.mxu0 %v1016
  %1416 = vmatprep.subr.bf16.mxu0 0
  %1417 = vmatpush1.bf16.msra.mxu0 %v1017
  %1418 = vmatprep.subr.bf16.mxu0 0
  %1419 = vmatpush1.bf16.msra.mxu0 %v1018
  %1420 = vmatprep.subr.bf16.mxu0 0
  %1421 = vmatpush1.bf16.msra.mxu0 %v1019
  %1422 = vmatprep.subr.bf16.mxu0 0
  %1423 = vmatpush1.bf16.msra.mxu0 %v1020
  %1424 = vmatprep.subr.bf16.mxu0 0
  %1425 = vmatpush1.bf16.msra.mxu0 %v1021
  %1426 = vmatprep.subr.bf16.mxu0 0
  %1427 = vmatpush1.bf16.msra.mxu0 %v1022
  %1428 = vmatprep.subr.bf16.mxu0 0
  %1429 = vmatpush1.bf16.msra.mxu0 %v1023
  %1430 = vmatprep.subr.bf16.mxu0 0
  %1431 = vmatpush1.bf16.msra.mxu0 %v1024
  %1432 = vmatprep.subr.bf16.mxu0 0
  %1433 = vmatpush1.bf16.msra.mxu0 %v1025
  %1434 = vmatprep.mubr.bf16.mxu0 %v344
  %1435 = vmatmul.mubr.bf16.gmra.mrb[0].mxu0 %v342
  %v1436 = vpop.f32.mrb[0].mxu0
  %v1437 = vadd.f32 %v1397, %v1436
  %v1438 = vpop.f32.mrb[0].mxu0
  %v1439 = vpop.f32.mrb[0].mxu0
  %v1440 = vpop.f32.mrb[0].mxu0
  %1441 = vdwg.mxu0
  %1442 = vmatprep.subr.bf16.mxu0 0
  %1443 = vmatpush1.bf16.msra.mxu0 %v1026
  %1444 = vmatprep.subr.bf16.mxu0 0
  %1445 = vmatpush1.bf16.msra.mxu0 %v1027
  %1446 = vmatprep.subr.bf16.mxu0 0
  %1447 = vmatpush1.bf16.msra.mxu0 %v1028
  %1448 = vmatprep.subr.bf16.mxu0 0
  %1449 = vmatpush1.bf16.msra.mxu0 %v1029
  %1450 = vmatprep.subr.bf16.mxu0 0
  %1451 = vmatpush1.bf16.msra.mxu0 %v1030
  %1452 = vmatprep.subr.bf16.mxu0 0
  %1453 = vmatpush1.bf16.msra.mxu0 %v1031
  %1454 = vmatprep.subr.bf16.mxu0 0
  %1455 = vmatpush1.bf16.msra.mxu0 %v1032
  %1456 = vmatprep.subr.bf16.mxu0 0
  %1457 = vmatpush1.bf16.msra.mxu0 %v1033
  %1458 = vmatprep.subr.bf16.mxu0 0
  %1459 = vmatpush1.bf16.msra.mxu0 %v1034
  %1460 = vmatprep.subr.bf16.mxu0 0
  %1461 = vmatpush1.bf16.msra.mxu0 %v1035
  %1462 = vmatprep.subr.bf16.mxu0 0
  %1463 = vmatpush1.bf16.msra.mxu0 %v1036
  %1464 = vmatprep.subr.bf16.mxu0 0
  %1465 = vmatpush1.bf16.msra.mxu0 %v1037
  %1466 = vmatprep.subr.bf16.mxu0 0
  %1467 = vmatpush1.bf16.msra.mxu0 %v1038
  %1468 = vmatprep.subr.bf16.mxu0 0
  %1469 = vmatpush1.bf16.msra.mxu0 %v1039
  %1470 = vmatprep.subr.bf16.mxu0 0
  %1471 = vmatpush1.bf16.msra.mxu0 %v1040
  %1472 = vmatprep.subr.bf16.mxu0 0
  %1473 = vmatpush1.bf16.msra.mxu0 %v1041
  %1474 = vmatprep.mubr.bf16.mxu0 %v360
  %1475 = vmatmul.mubr.bf16.gmra.mrb[0].mxu0 %v352
  %v1476 = vpop.f32.mrb[0].mxu0
  %v1477 = vadd.f32 %v1437, %v1476
  %v1478 = vpop.f32.mrb[0].mxu0
  %v1479 = vpop.f32.mrb[0].mxu0
  %v1480 = vpop.f32.mrb[0].mxu0
  %1481 = vdwg.mxu0
  %1482 = vmatprep.subr.bf16.mxu0 0
  %1483 = vmatpush1.bf16.msra.mxu0 %v1042
  %1484 = vmatprep.subr.bf16.mxu0 0
  %1485 = vmatpush1.bf16.msra.mxu0 %v1043
  %1486 = vmatprep.subr.bf16.mxu0 0
  %1487 = vmatpush1.bf16.msra.mxu0 %v1044
  %1488 = vmatprep.subr.bf16.mxu0 0
  %1489 = vmatpush1.bf16.msra.mxu0 %v1045
  %1490 = vmatprep.subr.bf16.mxu0 0
  %1491 = vmatpush1.bf16.msra.mxu0 %v1046
  %1492 = vmatprep.subr.bf16.mxu0 0
  %1493 = vmatpush1.bf16.msra.mxu0 %v1047
  %1494 = vmatprep.subr.bf16.mxu0 0
  %1495 = vmatpush1.bf16.msra.mxu0 %v1048
  %1496 = vmatprep.subr.bf16.mxu0 0
  %1497 = vmatpush1.bf16.msra.mxu0 %v1049
  %1498 = vmatprep.subr.bf16.mxu0 0
  %1499 = vmatpush1.bf16.msra.mxu0 %v1050
  %1500 = vmatprep.subr.bf16.mxu0 0
  %1501 = vmatpush1.bf16.msra.mxu0 %v1051
  %1502 = vmatprep.subr.bf16.mxu0 0
  %1503 = vmatpush1.bf16.msra.mxu0 %v1052
  %1504 = vmatprep.subr.bf16.mxu0 0
  %1505 = vmatpush1.bf16.msra.mxu0 %v1053
  %1506 = vmatprep.subr.bf16.mxu0 0
  %1507 = vmatpush1.bf16.msra.mxu0 %v1054
  %1508 = vmatprep.subr.bf16.mxu0 0
  %1509 = vmatpush1.bf16.msra.mxu0 %v1055
  %1510 = vmatprep.subr.bf16.mxu0 0
  %1511 = vmatpush1.bf16.msra.mxu0 %v1056
  %1512 = vmatprep.subr.bf16.mxu0 0
  %1513 = vmatpush1.bf16.msra.mxu0 %v1057
  %1514 = vmatprep.mubr.bf16.mxu0 %v361
  %1515 = vmatmul.mubr.bf16.gmra.mrb[0].mxu0 %v359
  %v1516 = vpop.f32.mrb[0].mxu0
  %v1517 = vadd.f32 %v1477, %v1516
  %v1518 = vpop.f32.mrb[0].mxu0
  %v1519 = vpop.f32.mrb[0].mxu0
  %v1520 = vpop.f32.mrb[0].mxu0
  %1521 = vdwg.mxu0
  %1522 = vmatprep.subr.bf16.mxu0 0
  %1523 = vmatpush1.bf16.msra.mxu0 %v1058
  %1524 = vmatprep.subr.bf16.mxu0 0
  %1525 = vmatpush1.bf16.msra.mxu0 %v1059
  %1526 = vmatprep.subr.bf16.mxu0 0
  %1527 = vmatpush1.bf16.msra.mxu0 %v1060
  %1528 = vmatprep.subr.bf16.mxu0 0
  %1529 = vmatpush1.bf16.msra.mxu0 %v1061
  %1530 = vmatprep.subr.bf16.mxu0 0
  %1531 = vmatpush1.bf16.msra.mxu0 %v1062
  %1532 = vmatprep.subr.bf16.mxu0 0
  %1533 = vmatpush1.bf16.msra.mxu0 %v1063
  %1534 = vmatprep.subr.bf16.mxu0 0
  %1535 = vmatpush1.bf16.msra.mxu0 %v1064
  %1536 = vmatprep.subr.bf16.mxu0 0
  %1537 = vmatpush1.bf16.msra.mxu0 %v1065
  %1538 = vmatprep.subr.bf16.mxu0 0
  %1539 = vmatpush1.bf16.msra.mxu0 0
  %1540 = vmatprep.subr.bf16.mxu0 0
  %1541 = vmatpush1.bf16.msra.mxu0 0
  %1542 = vmatprep.subr.bf16.mxu0 0
  %1543 = vmatpush1.bf16.msra.mxu0 0
  %1544 = vmatprep.subr.bf16.mxu0 0
  %1545 = vmatpush1.bf16.msra.mxu0 0
  %1546 = vmatprep.subr.bf16.mxu0 0
  %1547 = vmatpush1.bf16.msra.mxu0 0
  %1548 = vmatprep.subr.bf16.mxu0 0
  %1549 = vmatpush1.bf16.msra.mxu0 0
  %1550 = vmatprep.subr.bf16.mxu0 0
  %1551 = vmatpush1.bf16.msra.mxu0 0
  %1552 = vmatprep.subr.bf16.mxu0 0
  %1553 = vmatpush1.bf16.msra.mxu0 0
  %1554 = vmatprep.mubr.bf16.mxu0 0
  %1555 = vmatmul.mubr.bf16.gmra.mrb[0].mxu0 %v368
  %v1556 = vpop.f32.mrb[0].mxu0
  %v1557 = vadd.f32 %v1517, %v1556
  %v1558 = vpop.f32.mrb[0].mxu0
  %v1559 = vpop.f32.mrb[0].mxu0
  %v1560 = vpop.f32.mrb[0].mxu0
  %1561 = vdwg.mxu0
  %1562 = vst [vmem:[%s2] sm:$0xf] %v1557
  // Predicated region
  $region10: #{_lambda_.6} parent=0 // pred_check
    _
  $region11: #{_lambda_.6} parent=0 // pred_check_branch
    %1564 = sbr.rel (0) target = $region13
  $region12: #{_lambda_.6} parent=0 // pred_region
    _
  $region13: #{_lambda_.6} parent=0 // pred_fallthru
    _
  // Predicated region
  $region14: #{_lambda_.6} parent=0 // pred_check
    _
  $region15: #{_lambda_.6} parent=0 // pred_check_branch
    %1566 = sbr.rel (0) target = $region17
  $region16: #{_lambda_.6} parent=0 // pred_region
    _
  $region17: #{_lambda_.6} parent=0 // pred_fallthru
    _

// kernel: _lambda_.8
$region0: #{_lambda_.8}
  #allocation0 [shape = 'u32[]', space=smem, size = 0x4, offset = 0x4, fixed_abs, tag = 'smem constant byte address 0x4 - core index']
  #allocation1 [shape = 'u32[144,128]{1,0:T(1,128)}', space=vmem, size = 0x12000, scoped, tag = 'internal scratch']
  %s0 = inlined_call_operand.vmem [shape: bf16[64,2176], index: 0, kind: input, shape index: {}]
  %s1 = inlined_call_operand.vmem [shape: bf16[2176,128], index: 1, kind: input, shape index: {}]
  %s2 = inlined_call_operand.vmem [shape: f32[64,128], index: 2, kind: output, shape index: {}]
  %s3 = sld [smem:[#allocation0]]
  $region41: #{_lambda_.8} parent=0
    _
  %s5 = ssub.s32 1, %s3
  %s6 = scalar_select 0, %s5, %s3
  loop: start=0, step=1, limit=4
  $region2: #{_lambda_.8} parent=0 // loop_pre_header
    _
  $region3: #{_lambda_.8} parent=0 // loop_header
    %s8 = sphi 0, %s12
    %p9 = scmp.ge.s32.totalorder %s8, 4
    %s18 = sphi 0, %s20
    %s21 = sphi 0, %s18
    %s22 = sphi 0, %s21
    %s38 = sphi 0, %s22
    %s42 = sphi 0, %s42
    %s44 = sphi 0, %s42
    %s45 = sphi 0, %s44
    %s59 = sphi 0, %s45
    %s65 = sphi 0, %s67
    %s68 = sphi 0, %s65
    %s69 = sphi 0, %s68
    %s85 = sphi 0, %s69
  $region4: #{_lambda_.8} parent=0 // loop_header_branch
    %11 = sbr.rel (%p9) target = $region8
  $region5: #{_lambda_.8} parent=0 // loop_body
    %s13 = ssub.s32 %s8, 1
    %s14 = ssub.s32 %s8, 2
    %s15 = sadd.s32 %s8, 1
    %s16 = ssub.s32 %s8, %s15
    %p17 = scmp.eq.s32.totalorder %s16, 0
    %s19 = sadd.s32 %s18, 1
    %s20 = scalar_select %p17, %s18, %s19
    %p23 = pneg %p17
    %p24 = scmp.eq.s32.totalorder %s8, 1
    %p25 = por %p23, %p24
    %p26 = scmp.ne.s32.totalorder %s18, %s21
    %p27 = scmp.eq.s32.totalorder %s8, 0
    %p28 = por %p26, %p27
    %p29 = scmp.ne.s32.totalorder %s18, %s21
    %p30 = scmp.eq.s32.totalorder %s13, 1
    %p31 = por %p29, %p30
    %p32 = scmp.ne.s32.totalorder %s21, %s22
    %p33 = scmp.eq.s32.totalorder %s13, 0
    %p34 = por %p32, %p33
    %p35 = scmp.ne.s32.totalorder %s21, %s22
    %p36 = scmp.eq.s32.totalorder %s14, 1
    %p37 = por %p35, %p36
    %p39 = scmp.ne.s32.totalorder %s22, %s38
    %p40 = scmp.eq.s32.totalorder %s14, 0
    %p41 = por %p39, %p40
    %s43 = sadd.s32 %s42, 1
    %p46 = scmp.eq.s32.totalorder %s8, 1
    %p47 = scmp.ne.s32.totalorder %s42, %s44
    %p48 = scmp.eq.s32.totalorder %s8, 0
    %p49 = por %p47, %p48
    %p50 = scmp.ne.s32.totalorder %s42, %s44
    %p51 = scmp.eq.s32.totalorder %s13, 1
    %p52 = por %p50, %p51
    %p53 = scmp.ne.s32.totalorder %s44, %s45
    %p54 = scmp.eq.s32.totalorder %s13, 0
    %p55 = por %p53, %p54
    %p56 = scmp.ne.s32.totalorder %s44, %s45
    %p57 = scmp.eq.s32.totalorder %s14, 1
    %p58 = por %p56, %p57
    %p60 = scmp.ne.s32.totalorder %s45, %s59
    %p61 = scmp.eq.s32.totalorder %s14, 0
    %p62 = por %p60, %p61
    %s63 = ssub.s32 %s8, %s15
    %p64 = scmp.eq.s32.totalorder %s63, 0
    %s66 = sadd.s32 %s65, 1
    %s67 = scalar_select %p64, %s65, %s66
    %p70 = pneg %p64
    %p71 = scmp.eq.s32.totalorder %s8, 1
    %p72 = por %p70, %p71
    %p73 = scmp.ne.s32.totalorder %s65, %s68
    %p74 = scmp.eq.s32.totalorder %s8, 0
    %p75 = por %p73, %p74
    %p76 = scmp.ne.s32.totalorder %s65, %s68
    %p77 = scmp.eq.s32.totalorder %s13, 1
    %p78 = por %p76, %p77
    %p79 = scmp.ne.s32.totalorder %s68, %s69
    %p80 = scmp.eq.s32.totalorder %s13, 0
    %p81 = por %p79, %p80
    %p82 = scmp.ne.s32.totalorder %s68, %s69
    %p83 = scmp.eq.s32.totalorder %s14, 1
    %p84 = por %p82, %p83
    %p86 = scmp.ne.s32.totalorder %s69, %s85
    %p87 = scmp.eq.s32.totalorder %s14, 0
    %p88 = por %p86, %p87
    %p89 = scmp.le.s32.totalorder 1, %s8
    %p90 = scmp.lt.s32.totalorder %s8, 3
    %p91 = pnand %p89, %p90
    %p92 = pneg %p91
    // Predicated region
    $region9: #{_lambda_.8} parent=5 // pred_check
      _
    $region10: #{_lambda_.8} parent=5 // pred_check_branch
      %94 = sbr.rel (%p91) target = $region12
    $region11: #{_lambda_.8} parent=5 // pred_region
      %s95 = ssub.s32 %s8, 1
      // Predicated region
      $region13: #{_lambda_.8} parent=11 // pred_check
        %p96 = pneg %p55
      $region14: #{_lambda_.8} parent=11 // pred_check_branch
        %98 = sbr.rel (%p96) target = $region16
      $region15: #{_lambda_.8} parent=11 // pred_region
        _
      $region16: #{_lambda_.8} parent=11 // pred_fallthru
        _
    $region12: #{_lambda_.8} parent=5 // pred_fallthru
      _
    %p99 = scmp.lt.s32.totalorder %s8, 2
    // Predicated region
    $region17: #{_lambda_.8} parent=5 // pred_check
      %p100 = pneg %p99
    $region18: #{_lambda_.8} parent=5 // pred_check_branch
      %102 = sbr.rel (%p100) target = $region20
    $region19: #{_lambda_.8} parent=5 // pred_region
      // Predicated region
      $region21: #{_lambda_.8} parent=19 // pred_check
        %p103 = pneg %p28
      $region22: #{_lambda_.8} parent=19 // pred_check_branch
        %105 = sbr.rel (%p103) target = $region24
      $region23: #{_lambda_.8} parent=19 // pred_region
        %s106 = smul.u32 4, %s8
        %p107 = scmp.lt.s32.totalorder %s106, 7
        %s108 = scalar_select %p107, %s106, 7
        %s109 = smul.addr %s108, 17
        %s110 = smul.addr %s109, 4
        %s111 = scalar_lea.vmem %s0, %s110
        %s112 = smul.u32 4, %s8
      $region24: #{_lambda_.8} parent=19 // pred_fallthru
        _
    $region20: #{_lambda_.8} parent=5 // pred_fallthru
      _
    %p113 = scmp.le.s32.totalorder 1, %s8
    %p114 = scmp.lt.s32.totalorder %s8, 3
    %p115 = pnand %p113, %p114
    %p116 = pneg %p115
    // Predicated region
    $region25: #{_lambda_.8} parent=5 // pred_check
      _
    $region26: #{_lambda_.8} parent=5 // pred_check_branch
      %118 = sbr.rel (%p115) target = $region28
    $region27: #{_lambda_.8} parent=5 // pred_region
      %s119 = ssub.s32 %s8, 1
      %s120 = smul.u32 4, %s13
      %p121 = scmp.lt.s32.totalorder %s120, 7
      %s122 = scalar_select %p121, %s120, 7
      %s123 = smul.addr %s122, 17
      %s124 = smul.addr %s123, 4
      %s125 = scalar_lea.vmem %s0, %s124
      %p126 = pneg %p34
      %p127 = pneg %p31
      %p128 = pneg %p55
      %p129 = pneg %p52
      %p130 = pneg %p81
      %p131 = pneg %p78
      %s132 = smul.u32 4, %s13
      %p133 = scmp.lt.s32.totalorder %s132, 7
      %s134 = scalar_select %p133, %s132, 7
      %s135 = smul.addr %s134, 8
      %s136 = scalar_lea.vmem %s2, %s135
      %s137 = smul.u32 4, %s13
      %p138 = scmp.lt.s32.totalorder %s137, 7
      %s139 = scalar_select %p138, %s137, 7
      %s140 = smul.addr %s139, 17
      %s141 = smul.addr %s140, 4
      %s142 = scalar_lea.vmem %s0, %s141
      %s143 = smul.u32 4, %s13
      %s144 = smul.u32 4, %s13
      %p145 = scmp.lt.s32.totalorder %s144, 7
      %s146 = scalar_select %p145, %s144, 7
      %s147 = smul.addr %s146, 8
      %s148 = scalar_lea.vmem %s2, %s147
      %s149 = smul.u32 4, %s13
      %v151 = vld [vmem:[%s142] sm:$0xff]
      %v152 = vld [vmem:[%s142 + $0x8] sm:$0xff]
      %v153 = vld [vmem:[%s142 + $0x10] sm:$0xff]
      %v154 = vld [vmem:[%s142 + $0x18] sm:$0xff]
      %v155 = vld [vmem:[%s142 + $0x20] sm:$0xff]
      %v156 = vld [vmem:[%s142 + $0x28] sm:$0xff]
      %v157 = vld [vmem:[%s142 + $0x30] sm:$0xff]
      %v158 = vld [vmem:[%s142 + $0x38] sm:$0xff]
      %v159 = vld [vmem:[%s142 + $0x40] sm:$0xf]
      %v160 = vld [vmem:[%s142 + $0x44] sm:$0xff]
      %v161 = vld [vmem:[%s142 + $0x4c] sm:$0xff]
      %v162 = vld [vmem:[%s142 + $0x54] sm:$0xff]
      %v163 = vld [vmem:[%s142 + $0x5c] sm:$0xff]
      %v164 = vld [vmem:[%s142 + $0x64] sm:$0xff]
      %v165 = vld [vmem:[%s142 + $0x6c] sm:$0xff]
      %v166 = vld [vmem:[%s142 + $0x74] sm:$0xff]
      %v167 = vld [vmem:[%s142 + $0x7c] sm:$0xff]
      %v168 = vld [vmem:[%s142 + $0x84] sm:$0xf]
      %v169 = vld [vmem:[%s142 + $0x88] sm:$0xff]
      %v170 = vld [vmem:[%s142 + $0x90] sm:$0xff]
      %v171 = vld [vmem:[%s142 + $0x98] sm:$0xff]
      %v172 = vld [vmem:[%s142 + $0xa0] sm:$0xff]
      %v173 = vld [vmem:[%s142 + $0xa8] sm:$0xff]
      %v174 = vld [vmem:[%s142 + $0xb0] sm:$0xff]
      %v175 = vld [vmem:[%s142 + $0xb8] sm:$0xff]
      %v176 = vld [vmem:[%s142 + $0xc0] sm:$0xff]
      %v177 = vld [vmem:[%s142 + $0xc8] sm:$0xf]
      %v178 = vld [vmem:[%s142 + $0xcc] sm:$0xff]
      %v179 = vld [vmem:[%s142 + $0xd4] sm:$0xff]
      %v180 = vld [vmem:[%s142 + $0xdc] sm:$0xff]
      %v181 = vld [vmem:[%s142 + $0xe4] sm:$0xff]
      %v182 = vld [vmem:[%s142 + $0xec] sm:$0xff]
      %v183 = vld [vmem:[%s142 + $0xf4] sm:$0xff]
      %v184 = vld [vmem:[%s142 + $0xfc] sm:$0xff]
      %v185 = vld [vmem:[%s142 + $0x104] sm:$0xff]
      %v186 = vld [vmem:[%s142 + $0x10c] sm:$0xf]
      %v187 = vld [vmem:[%s1] sm:$0xf]
      %v188 = vld [vmem:[%s1 + $0x4] sm:$0xf]
      %v189 = vld [vmem:[%s1 + $0x8] sm:$0xf]
      %v190 = vld [vmem:[%s1 + $0xc] sm:$0xf]
      %v191 = vld [vmem:[%s1 + $0x10] sm:$0xf]
      %v192 = vld [vmem:[%s1 + $0x14] sm:$0xf]
      %v193 = vld [vmem:[%s1 + $0x18] sm:$0xf]
      %v194 = vld [vmem:[%s1 + $0x1c] sm:$0xf]
      %v195 = vld [vmem:[%s1 + $0x20] sm:$0xf]
      %v196 = vld [vmem:[%s1 + $0x24] sm:$0xf]
      %v197 = vld [vmem:[%s1 + $0x28] sm:$0xf]
      %v198 = vld [vmem:[%s1 + $0x2c] sm:$0xf]
      %v199 = vld [vmem:[%s1 + $0x30] sm:$0xf]
      %v200 = vld [vmem:[%s1 + $0x34] sm:$0xf]
      %v201 = vld [vmem:[%s1 + $0x38] sm:$0xf]
      %v202 = vld [vmem:[%s1 + $0x3c] sm:$0xf]
      %v203 = vld [vmem:[%s1 + $0x40] sm:$0xf]
      %v204 = vld [vmem:[%s1 + $0x44] sm:$0xf]
      %v205 = vld [vmem:[%s1 + $0x48] sm:$0xf]
      %v206 = vld [vmem:[%s1 + $0x4c] sm:$0xf]
      %v207 = vld [vmem:[%s1 + $0x50] sm:$0xf]
      %v208 = vld [vmem:[%s1 + $0x54] sm:$0xf]
      %v209 = vld [vmem:[%s1 + $0x58] sm:$0xf]
      %v210 = vld [vmem:[%s1 + $0x5c] sm:$0xf]
      %v211 = vld [vmem:[%s1 + $0x60] sm:$0xf]
      %v212 = vld [vmem:[%s1 + $0x64] sm:$0xf]
      %v213 = vld [vmem:[%s1 + $0x68] sm:$0xf]
      %v214 = vld [vmem:[%s1 + $0x6c] sm:$0xf]
      %v215 = vld [vmem:[%s1 + $0x70] sm:$0xf]
      %v216 = vld [vmem:[%s1 + $0x74] sm:$0xf]
      %v217 = vld [vmem:[%s1 + $0x78] sm:$0xf]
      %v218 = vld [vmem:[%s1 + $0x7c] sm:$0xf]
      %v219 = vld [vmem:[%s1 + $0x80] sm:$0xf]
      %v220 = vld [vmem:[%s1 + $0x84] sm:$0xf]
      %v221 = vld [vmem:[%s1 + $0x88] sm:$0xf]
      %v222 = vld [vmem:[%s1 + $0x8c] sm:$0xf]
      %v223 = vld [vmem:[%s1 + $0x90] sm:$0xf]
      %v224 = vld [vmem:[%s1 + $0x94] sm:$0xf]
      %v225 = vld [vmem:[%s1 + $0x98] sm:$0xf]
      %v226 = vld [vmem:[%s1 + $0x9c] sm:$0xf]
      %v227 = vld [vmem:[%s1 + $0xa0] sm:$0xf]
      %v228 = vld [vmem:[%s1 + $0xa4] sm:$0xf]
      %v229 = vld [vmem:[%s1 + $0xa8] sm:$0xf]
      %v230 = vld [vmem:[%s1 + $0xac] sm:$0xf]
      %v231 = vld [vmem:[%s1 + $0xb0] sm:$0xf]
      %v232 = vld [vmem:[%s1 + $0xb4] sm:$0xf]
      %v233 = vld [vmem:[%s1 + $0xb8] sm:$0xf]
      %v234 = vld [vmem:[%s1 + $0xbc] sm:$0xf]
      %v235 = vld [vmem:[%s1 + $0xc0] sm:$0xf]
      %v236 = vld [vmem:[%s1 + $0xc4] sm:$0xf]
      %v237 = vld [vmem:[%s1 + $0xc8] sm:$0xf]
      %v238 = vld [vmem:[%s1 + $0xcc] sm:$0xf]
      %v239 = vld [vmem:[%s1 + $0xd0] sm:$0xf]
      %v240 = vld [vmem:[%s1 + $0xd4] sm:$0xf]
      %v241 = vld [vmem:[%s1 + $0xd8] sm:$0xf]
      %v242 = vld [vmem:[%s1 + $0xdc] sm:$0xf]
      %v243 = vld [vmem:[%s1 + $0xe0] sm:$0xf]
      %v244 = vld [vmem:[%s1 + $0xe4] sm:$0xf]
      %v245 = vld [vmem:[%s1 + $0xe8] sm:$0xf]
      %v246 = vld [vmem:[%s1 + $0xec] sm:$0xf]
      %v247 = vld [vmem:[%s1 + $0xf0] sm:$0xf]
      %v248 = vld [vmem:[%s1 + $0xf4] sm:$0xf]
      %v249 = vld [vmem:[%s1 + $0xf8] sm:$0xf]
      %v250 = vld [vmem:[%s1 + $0xfc] sm:$0xf]
      %v251 = vld [vmem:[%s1 + $0x100] sm:$0xf]
      %v252 = vld [vmem:[%s1 + $0x104] sm:$0xf]
      %v253 = vld [vmem:[%s1 + $0x108] sm:$0xf]
      %v254 = vld [vmem:[%s1 + $0x10c] sm:$0xf]
      %v255 = vld [vmem:[%s1 + $0x110] sm:$0xf]
      %v256 = vld [vmem:[%s1 + $0x114] sm:$0xf]
      %v257 = vld [vmem:[%s1 + $0x118] sm:$0xf]
      %v258 = vld [vmem:[%s1 + $0x11c] sm:$0xf]
      %v259 = vld [vmem:[%s1 + $0x120] sm:$0xf]
      %v260 = vld [vmem:[%s1 + $0x124] sm:$0xf]
      %v261 = vld [vmem:[%s1 + $0x128] sm:$0xf]
      %v262 = vld [vmem:[%s1 + $0x12c] sm:$0xf]
      %v263 = vld [vmem:[%s1 + $0x130] sm:$0xf]
      %v264 = vld [vmem:[%s1 + $0x134] sm:$0xf]
      %v265 = vld [vmem:[%s1 + $0x138] sm:$0xf]
      %v266 = vld [vmem:[%s1 + $0x13c] sm:$0xf]
      %v267 = vld [vmem:[%s1 + $0x140] sm:$0xf]
      %v268 = vld [vmem:[%s1 + $0x144] sm:$0xf]
      %v269 = vld [vmem:[%s1 + $0x148] sm:$0xf]
      %v270 = vld [vmem:[%s1 + $0x14c] sm:$0xf]
      %v271 = vld [vmem:[%s1 + $0x150] sm:$0xf]
      %v272 = vld [vmem:[%s1 + $0x154] sm:$0xf]
      %v273 = vld [vmem:[%s1 + $0x158] sm:$0xf]
      %v274 = vld [vmem:[%s1 + $0x15c] sm:$0xf]
      %v275 = vld [vmem:[%s1 + $0x160] sm:$0xf]
      %v276 = vld [vmem:[%s1 + $0x164] sm:$0xf]
      %v277 = vld [vmem:[%s1 + $0x168] sm:$0xf]
      %v278 = vld [vmem:[%s1 + $0x16c] sm:$0xf]
      %v279 = vld [vmem:[%s1 + $0x170] sm:$0xf]
      %v280 = vld [vmem:[%s1 + $0x174] sm:$0xf]
      %v281 = vld [vmem:[%s1 + $0x178] sm:$0xf]
      %v282 = vld [vmem:[%s1 + $0x17c] sm:$0xf]
      %v283 = vld [vmem:[%s1 + $0x180] sm:$0xf]
      %v284 = vld [vmem:[%s1 + $0x184] sm:$0xf]
      %v285 = vld [vmem:[%s1 + $0x188] sm:$0xf]
      %v286 = vld [vmem:[%s1 + $0x18c] sm:$0xf]
      %v287 = vld [vmem:[%s1 + $0x190] sm:$0xf]
      %v288 = vld [vmem:[%s1 + $0x194] sm:$0xf]
      %v289 = vld [vmem:[%s1 + $0x198] sm:$0xf]
      %v290 = vld [vmem:[%s1 + $0x19c] sm:$0xf]
      %v291 = vld [vmem:[%s1 + $0x1a0] sm:$0xf]
      %v292 = vld [vmem:[%s1 + $0x1a4] sm:$0xf]
      %v293 = vld [vmem:[%s1 + $0x1a8] sm:$0xf]
      %v294 = vld [vmem:[%s1 + $0x1ac] sm:$0xf]
      %v295 = vld [vmem:[%s1 + $0x1b0] sm:$0xf]
      %v296 = vld [vmem:[%s1 + $0x1b4] sm:$0xf]
      %v297 = vld [vmem:[%s1 + $0x1b8] sm:$0xf]
      %v298 = vld [vmem:[%s1 + $0x1bc] sm:$0xf]
      %v299 = vld [vmem:[%s1 + $0x1c0] sm:$0xf]
      %v300 = vld [vmem:[%s1 + $0x1c4] sm:$0xf]
      %v301 = vld [vmem:[%s1 + $0x1c8] sm:$0xf]
      %v302 = vld [vmem:[%s1 + $0x1cc] sm:$0xf]
      %v303 = vld [vmem:[%s1 + $0x1d0] sm:$0xf]
      %v304 = vld [vmem:[%s1 + $0x1d4] sm:$0xf]
      %v305 = vld [vmem:[%s1 + $0x1d8] sm:$0xf]
      %v306 = vld [vmem:[%s1 + $0x1dc] sm:$0xf]
      %v307 = vld [vmem:[%s1 + $0x1e0] sm:$0xf]
      %v308 = vld [vmem:[%s1 + $0x1e4] sm:$0xf]
      %v309 = vld [vmem:[%s1 + $0x1e8] sm:$0xf]
      %v310 = vld [vmem:[%s1 + $0x1ec] sm:$0xf]
      %v311 = vld [vmem:[%s1 + $0x1f0] sm:$0xf]
      %v312 = vld [vmem:[%s1 + $0x1f4] sm:$0xf]
      %v313 = vld [vmem:[%s1 + $0x1f8] sm:$0xf]
      %v314 = vld [vmem:[%s1 + $0x1fc] sm:$0xf]
      %v315 = vld [vmem:[%s1 + $0x200] sm:$0xf]
      %v316 = vld [vmem:[%s1 + $0x204] sm:$0xf]
      %v317 = vld [vmem:[%s1 + $0x208] sm:$0xf]
      %v318 = vld [vmem:[%s1 + $0x20c] sm:$0xf]
      %v319 = vld [vmem:[%s1 + $0x210] sm:$0xf]
      %v320 = vld [vmem:[%s1 + $0x214] sm:$0xf]
      %v321 = vld [vmem:[%s1 + $0x218] sm:$0xf]
      %v322 = vld [vmem:[%s1 + $0x21c] sm:$0xf]
      %v323 = vld [vmem:[%s1 + $0x220] sm:$0xf]
      %v324 = vld [vmem:[%s1 + $0x224] sm:$0xf]
      %v325 = vld [vmem:[%s1 + $0x228] sm:$0xf]
      %v326 = vld [vmem:[%s1 + $0x22c] sm:$0xf]
      %v327 = vld [vmem:[%s1 + $0x230] sm:$0xf]
      %v328 = vld [vmem:[%s1 + $0x234] sm:$0xf]
      %v329 = vld [vmem:[%s1 + $0x238] sm:$0xf]
      %v330 = vld [vmem:[%s1 + $0x23c] sm:$0xf]
      %v331 = vld [vmem:[%s1 + $0x240] sm:$0xf]
      %v332 = vld [vmem:[%s1 + $0x244] sm:$0xf]
      %v333 = vld [vmem:[%s1 + $0x248] sm:$0xf]
      %v334 = vld [vmem:[%s1 + $0x24c] sm:$0xf]
      %v335 = vld [vmem:[%s1 + $0x250] sm:$0xf]
      %v336 = vld [vmem:[%s1 + $0x254] sm:$0xf]
      %v337 = vld [vmem:[%s1 + $0x258] sm:$0xf]
      %v338 = vld [vmem:[%s1 + $0x25c] sm:$0xf]
      %v339 = vld [vmem:[%s1 + $0x260] sm:$0xf]
      %v340 = vld [vmem:[%s1 + $0x264] sm:$0xf]
      %v341 = vld [vmem:[%s1 + $0x268] sm:$0xf]
      %v342 = vld [vmem:[%s1 + $0x26c] sm:$0xf]
      %v343 = vld [vmem:[%s1 + $0x270] sm:$0xf]
      %v344 = vld [vmem:[%s1 + $0x274] sm:$0xf]
      %v345 = vld [vmem:[%s1 + $0x278] sm:$0xf]
      %v346 = vld [vmem:[%s1 + $0x27c] sm:$0xf]
      %v347 = vld [vmem:[%s1 + $0x280] sm:$0xf]
      %v348 = vld [vmem:[%s1 + $0x284] sm:$0xf]
      %v349 = vld [vmem:[%s1 + $0x288] sm:$0xf]
      %v350 = vld [vmem:[%s1 + $0x28c] sm:$0xf]
      %v351 = vld [vmem:[%s1 + $0x290] sm:$0xf]
      %v352 = vld [vmem:[%s1 + $0x294] sm:$0xf]
      %v353 = vld [vmem:[%s1 + $0x298] sm:$0xf]
      %v354 = vld [vmem:[%s1 + $0x29c] sm:$0xf]
      %v355 = vld [vmem:[%s1 + $0x2a0] sm:$0xf]
      %v356 = vld [vmem:[%s1 + $0x2a4] sm:$0xf]
      %v357 = vld [vmem:[%s1 + $0x2a8] sm:$0xf]
      %v358 = vld [vmem:[%s1 + $0x2ac] sm:$0xf]
      %v359 = vld [vmem:[%s1 + $0x2b0] sm:$0xf]
      %v360 = vld [vmem:[%s1 + $0x2b4] sm:$0xf]
      %v361 = vld [vmem:[%s1 + $0x2b8] sm:$0xf]
      %v362 = vld [vmem:[%s1 + $0x2bc] sm:$0xf]
      %v363 = vld [vmem:[%s1 + $0x2c0] sm:$0xf]
      %v364 = vld [vmem:[%s1 + $0x2c4] sm:$0xf]
      %v365 = vld [vmem:[%s1 + $0x2c8] sm:$0xf]
      %v366 = vld [vmem:[%s1 + $0x2cc] sm:$0xf]
      %v367 = vld [vmem:[%s1 + $0x2d0] sm:$0xf]
      %v368 = vld [vmem:[%s1 + $0x2d4] sm:$0xf]
      %v369 = vld [vmem:[%s1 + $0x2d8] sm:$0xf]
      %v370 = vld [vmem:[%s1 + $0x2dc] sm:$0xf]
      %v371 = vld [vmem:[%s1 + $0x2e0] sm:$0xf]
      %v372 = vld [vmem:[%s1 + $0x2e4] sm:$0xf]
      %v373 = vld [vmem:[%s1 + $0x2e8] sm:$0xf]
      %v374 = vld [vmem:[%s1 + $0x2ec] sm:$0xf]
      %v375 = vld [vmem:[%s1 + $0x2f0] sm:$0xf]
      %v376 = vld [vmem:[%s1 + $0x2f4] sm:$0xf]
      %v377 = vld [vmem:[%s1 + $0x2f8] sm:$0xf]
      %v378 = vld [vmem:[%s1 + $0x2fc] sm:$0xf]
      %v379 = vld [vmem:[%s1 + $0x300] sm:$0xf]
      %v380 = vld [vmem:[%s1 + $0x304] sm:$0xf]
      %v381 = vld [vmem:[%s1 + $0x308] sm:$0xf]
      %v382 = vld [vmem:[%s1 + $0x30c] sm:$0xf]
      %v383 = vld [vmem:[%s1 + $0x310] sm:$0xf]
      %v384 = vld [vmem:[%s1 + $0x314] sm:$0xf]
      %v385 = vld [vmem:[%s1 + $0x318] sm:$0xf]
      %v386 = vld [vmem:[%s1 + $0x31c] sm:$0xf]
      %v387 = vld [vmem:[%s1 + $0x320] sm:$0xf]
      %v388 = vld [vmem:[%s1 + $0x324] sm:$0xf]
      %v389 = vld [vmem:[%s1 + $0x328] sm:$0xf]
      %v390 = vld [vmem:[%s1 + $0x32c] sm:$0xf]
      %v391 = vld [vmem:[%s1 + $0x330] sm:$0xf]
      %v392 = vld [vmem:[%s1 + $0x334] sm:$0xf]
      %v393 = vld [vmem:[%s1 + $0x338] sm:$0xf]
      %v394 = vld [vmem:[%s1 + $0x33c] sm:$0xf]
      %v395 = vld [vmem:[%s1 + $0x340] sm:$0xf]
      %v396 = vld [vmem:[%s1 + $0x344] sm:$0xf]
      %v397 = vld [vmem:[%s1 + $0x348] sm:$0xf]
      %v398 = vld [vmem:[%s1 + $0x34c] sm:$0xf]
      %v399 = vld [vmem:[%s1 + $0x350] sm:$0xf]
      %v400 = vld [vmem:[%s1 + $0x354] sm:$0xf]
      %v401 = vld [vmem:[%s1 + $0x358] sm:$0xf]
      %v402 = vld [vmem:[%s1 + $0x35c] sm:$0xf]
      %v403 = vld [vmem:[%s1 + $0x360] sm:$0xf]
      %v404 = vld [vmem:[%s1 + $0x364] sm:$0xf]
      %v405 = vld [vmem:[%s1 + $0x368] sm:$0xf]
      %v406 = vld [vmem:[%s1 + $0x36c] sm:$0xf]
      %v407 = vld [vmem:[%s1 + $0x370] sm:$0xf]
      %v408 = vld [vmem:[%s1 + $0x374] sm:$0xf]
      %v409 = vld [vmem:[%s1 + $0x378] sm:$0xf]
      %v410 = vld [vmem:[%s1 + $0x37c] sm:$0xf]
      %v411 = vld [vmem:[%s1 + $0x380] sm:$0xf]
      %v412 = vld [vmem:[%s1 + $0x384] sm:$0xf]
      %v413 = vld [vmem:[%s1 + $0x388] sm:$0xf]
      %v414 = vld [vmem:[%s1 + $0x38c] sm:$0xf]
      %v415 = vld [vmem:[%s1 + $0x390] sm:$0xf]
      %v416 = vld [vmem:[%s1 + $0x394] sm:$0xf]
      %v417 = vld [vmem:[%s1 + $0x398] sm:$0xf]
      %v418 = vld [vmem:[%s1 + $0x39c] sm:$0xf]
      %v419 = vld [vmem:[%s1 + $0x3a0] sm:$0xf]
      %v420 = vld [vmem:[%s1 + $0x3a4] sm:$0xf]
      %v421 = vld [vmem:[%s1 + $0x3a8] sm:$0xf]
      %v422 = vld [vmem:[%s1 + $0x3ac] sm:$0xf]
      %v423 = vld [vmem:[%s1 + $0x3b0] sm:$0xf]
      %v424 = vld [vmem:[%s1 + $0x3b4] sm:$0xf]
      %v425 = vld [vmem:[%s1 + $0x3b8] sm:$0xf]
      %v426 = vld [vmem:[%s1 + $0x3bc] sm:$0xf]
      %v427 = vld [vmem:[%s1 + $0x3c0] sm:$0xf]
      %v428 = vld [vmem:[%s1 + $0x3c4] sm:$0xf]
      %v429 = vld [vmem:[%s1 + $0x3c8] sm:$0xf]
      %v430 = vld [vmem:[%s1 + $0x3cc] sm:$0xf]
      %v431 = vld [vmem:[%s1 + $0x3d0] sm:$0xf]
      %v432 = vld [vmem:[%s1 + $0x3d4] sm:$0xf]
      %v433 = vld [vmem:[%s1 + $0x3d8] sm:$0xf]
      %v434 = vld [vmem:[%s1 + $0x3dc] sm:$0xf]
      %v435 = vld [vmem:[%s1 + $0x3e0] sm:$0xf]
      %v436 = vld [vmem:[%s1 + $0x3e4] sm:$0xf]
      %v437 = vld [vmem:[%s1 + $0x3e8] sm:$0xf]
      %v438 = vld [vmem:[%s1 + $0x3ec] sm:$0xf]
      %v439 = vld [vmem:[%s1 + $0x3f0] sm:$0xf]
      %v440 = vld [vmem:[%s1 + $0x3f4] sm:$0xf]
      %v441 = vld [vmem:[%s1 + $0x3f8] sm:$0xf]
      %v442 = vld [vmem:[%s1 + $0x3fc] sm:$0xf]
      %v443 = vld [vmem:[%s1 + $0x400] sm:$0xf]
      %v444 = vld [vmem:[%s1 + $0x404] sm:$0xf]
      %v445 = vld [vmem:[%s1 + $0x408] sm:$0xf]
      %v446 = vld [vmem:[%s1 + $0x40c] sm:$0xf]
      %v447 = vld [vmem:[%s1 + $0x410] sm:$0xf]
      %v448 = vld [vmem:[%s1 + $0x414] sm:$0xf]
      %v449 = vld [vmem:[%s1 + $0x418] sm:$0xf]
      %v450 = vld [vmem:[%s1 + $0x41c] sm:$0xf]
      %v451 = vld [vmem:[%s1 + $0x420] sm:$0xf]
      %v452 = vld [vmem:[%s1 + $0x424] sm:$0xf]
      %v453 = vld [vmem:[%s1 + $0x428] sm:$0xf]
      %v454 = vld [vmem:[%s1 + $0x42c] sm:$0xf]
      %v455 = vld [vmem:[%s1 + $0x430] sm:$0xf]
      %v456 = vld [vmem:[%s1 + $0x434] sm:$0xf]
      %v457 = vld [vmem:[%s1 + $0x438] sm:$0xf]
      %v458 = vld [vmem:[%s1 + $0x43c] sm:$0xf]
      %v495 = vunpack.c.l.b16 %v151
      %v496 = vunpack.c.h.b16 %v151
      %v497 = vunpack.c.l.b16 %v152
      %v498 = vunpack.c.h.b16 %v152
      %v499 = vunpack.c.l.b16 %v153
      %v500 = vunpack.c.h.b16 %v153
      %v501 = vunpack.c.l.b16 %v154
      %v502 = vunpack.c.h.b16 %v154
      %v503 = vunpack.c.l.b16 %v155
      %v504 = vunpack.c.h.b16 %v155
      %v505 = vunpack.c.l.b16 %v156
      %v506 = vunpack.c.h.b16 %v156
      %v507 = vunpack.c.l.b16 %v157
      %v508 = vunpack.c.h.b16 %v157
      %v509 = vunpack.c.l.b16 %v158
      %v510 = vunpack.c.h.b16 %v158
      %v511 = vunpack.c.l.b16 %v159
      %v512 = vunpack.c.l.b16 %v160
      %v513 = vunpack.c.h.b16 %v160
      %v514 = vunpack.c.l.b16 %v161
      %v515 = vunpack.c.h.b16 %v161
      %v516 = vunpack.c.l.b16 %v162
      %v517 = vunpack.c.h.b16 %v162
      %v518 = vunpack.c.l.b16 %v163
      %v519 = vunpack.c.h.b16 %v163
      %v520 = vunpack.c.l.b16 %v164
      %v521 = vunpack.c.h.b16 %v164
      %v522 = vunpack.c.l.b16 %v165
      %v523 = vunpack.c.h.b16 %v165
      %v524 = vunpack.c.l.b16 %v166
      %v525 = vunpack.c.h.b16 %v166
      %v526 = vunpack.c.l.b16 %v167
      %v527 = vunpack.c.h.b16 %v167
      %v528 = vunpack.c.l.b16 %v168
      %v529 = vunpack.c.l.b16 %v169
      %v530 = vunpack.c.h.b16 %v169
      %v531 = vunpack.c.l.b16 %v170
      %v532 = vunpack.c.h.b16 %v170
      %v533 = vunpack.c.l.b16 %v171
      %v534 = vunpack.c.h.b16 %v171
      %v535 = vunpack.c.l.b16 %v172
      %v536 = vunpack.c.h.b16 %v172
      %v537 = vunpack.c.l.b16 %v173
      %v538 = vunpack.c.h.b16 %v173
      %v539 = vunpack.c.l.b16 %v174
      %v540 = vunpack.c.h.b16 %v174
      %v541 = vunpack.c.l.b16 %v175
      %v542 = vunpack.c.h.b16 %v175
      %v543 = vunpack.c.l.b16 %v176
      %v544 = vunpack.c.h.b16 %v176
      %v545 = vunpack.c.l.b16 %v177
      %v546 = vunpack.c.l.b16 %v178
      %v547 = vunpack.c.h.b16 %v178
      %v548 = vunpack.c.l.b16 %v179
      %v549 = vunpack.c.h.b16 %v179
      %v550 = vunpack.c.l.b16 %v180
      %v551 = vunpack.c.h.b16 %v180
      %v552 = vunpack.c.l.b16 %v181
      %v553 = vunpack.c.h.b16 %v181
      %v554 = vunpack.c.l.b16 %v182
      %v555 = vunpack.c.h.b16 %v182
      %v556 = vunpack.c.l.b16 %v183
      %v557 = vunpack.c.h.b16 %v183
      %v558 = vunpack.c.l.b16 %v184
      %v559 = vunpack.c.h.b16 %v184
      %v560 = vunpack.c.l.b16 %v185
      %v561 = vunpack.c.h.b16 %v185
      %v562 = vunpack.c.l.b16 %v186
      %v563 = vpack.c.b16 %v512, %v495
      %v564 = vpack.c.b16 %v513, %v496
      %v565 = vpack.c.b16 %v514, %v497
      %v566 = vpack.c.b16 %v515, %v498
      %v567 = vpack.c.b16 %v516, %v499
      %v568 = vpack.c.b16 %v517, %v500
      %v569 = vpack.c.b16 %v518, %v501
      %v570 = vpack.c.b16 %v519, %v502
      %v571 = vpack.c.b16 %v520, %v503
      %v572 = vpack.c.b16 %v521, %v504
      %v573 = vpack.c.b16 %v522, %v505
      %v574 = vpack.c.b16 %v523, %v506
      %v575 = vpack.c.b16 %v524, %v507
      %v576 = vpack.c.b16 %v525, %v508
      %v577 = vpack.c.b16 %v526, %v509
      %v578 = vpack.c.b16 %v527, %v510
      %v579 = vpack.c.b16 %v528, %v511
      %v580 = vpack.c.b16 %v546, %v529
      %v581 = vpack.c.b16 %v547, %v530
      %v582 = vpack.c.b16 %v548, %v531
      %v583 = vpack.c.b16 %v549, %v532
      %v584 = vpack.c.b16 %v550, %v533
      %v585 = vpack.c.b16 %v551, %v534
      %v586 = vpack.c.b16 %v552, %v535
      %v587 = vpack.c.b16 %v553, %v536
      %v588 = vpack.c.b16 %v554, %v537
      %v589 = vpack.c.b16 %v555, %v538
      %v590 = vpack.c.b16 %v556, %v539
      %v591 = vpack.c.b16 %v557, %v540
      %v592 = vpack.c.b16 %v558, %v541
      %v593 = vpack.c.b16 %v559, %v542
      %v594 = vpack.c.b16 %v560, %v543
      %v595 = vpack.c.b16 %v561, %v544
      %v596 = vpack.c.b16 %v562, %v545
      %v903 = vunpack.c.l.b16 %v187
      %v904 = vunpack.c.l.b16 %v188
      %v905 = vunpack.c.l.b16 %v189
      %v906 = vunpack.c.l.b16 %v190
      %v907 = vunpack.c.l.b16 %v191
      %v908 = vunpack.c.l.b16 %v192
      %v909 = vunpack.c.l.b16 %v193
      %v910 = vunpack.c.l.b16 %v194
      %v911 = vunpack.c.l.b16 %v195
      %v912 = vunpack.c.l.b16 %v196
      %v913 = vunpack.c.l.b16 %v197
      %v914 = vunpack.c.l.b16 %v198
      %v915 = vunpack.c.l.b16 %v199
      %v916 = vunpack.c.l.b16 %v200
      %v917 = vunpack.c.l.b16 %v201
      %v918 = vunpack.c.l.b16 %v202
      %v919 = vunpack.c.l.b16 %v203
      %v920 = vunpack.c.l.b16 %v204
      %v921 = vunpack.c.l.b16 %v205
      %v922 = vunpack.c.l.b16 %v206
      %v923 = vunpack.c.l.b16 %v207
      %v924 = vunpack.c.l.b16 %v208
      %v925 = vunpack.c.l.b16 %v209
      %v926 = vunpack.c.l.b16 %v210
      %v927 = vunpack.c.l.b16 %v211
      %v928 = vunpack.c.l.b16 %v212
      %v929 = vunpack.c.l.b16 %v213
      %v930 = vunpack.c.l.b16 %v214
      %v931 = vunpack.c.l.b16 %v215
      %v932 = vunpack.c.l.b16 %v216
      %v933 = vunpack.c.l.b16 %v217
      %v934 = vunpack.c.l.b16 %v218
      %v935 = vunpack.c.l.b16 %v219
      %v936 = vunpack.c.l.b16 %v220
      %v937 = vunpack.c.l.b16 %v221
      %v938 = vunpack.c.l.b16 %v222
      %v939 = vunpack.c.l.b16 %v223
      %v940 = vunpack.c.l.b16 %v224
      %v941 = vunpack.c.l.b16 %v225
      %v942 = vunpack.c.l.b16 %v226
      %v943 = vunpack.c.l.b16 %v227
      %v944 = vunpack.c.l.b16 %v228
      %v945 = vunpack.c.l.b16 %v229
      %v946 = vunpack.c.l.b16 %v230
      %v947 = vunpack.c.l.b16 %v231
      %v948 = vunpack.c.l.b16 %v232
      %v949 = vunpack.c.l.b16 %v233
      %v950 = vunpack.c.l.b16 %v234
      %v951 = vunpack.c.l.b16 %v235
      %v952 = vunpack.c.l.b16 %v236
      %v953 = vunpack.c.l.b16 %v237
      %v954 = vunpack.c.l.b16 %v238
      %v955 = vunpack.c.l.b16 %v239
      %v956 = vunpack.c.l.b16 %v240
      %v957 = vunpack.c.l.b16 %v241
      %v958 = vunpack.c.l.b16 %v242
      %v959 = vunpack.c.l.b16 %v243
      %v960 = vunpack.c.l.b16 %v244
      %v961 = vunpack.c.l.b16 %v245
      %v962 = vunpack.c.l.b16 %v246
      %v963 = vunpack.c.l.b16 %v247
      %v964 = vunpack.c.l.b16 %v248
      %v965 = vunpack.c.l.b16 %v249
      %v966 = vunpack.c.l.b16 %v250
      %v967 = vunpack.c.l.b16 %v251
      %v968 = vunpack.c.l.b16 %v252
      %v969 = vunpack.c.l.b16 %v253
      %v970 = vunpack.c.l.b16 %v254
      %v971 = vunpack.c.l.b16 %v255
      %v972 = vunpack.c.l.b16 %v256
      %v973 = vunpack.c.l.b16 %v257
      %v974 = vunpack.c.l.b16 %v258
      %v975 = vunpack.c.l.b16 %v259
      %v976 = vunpack.c.l.b16 %v260
      %v977 = vunpack.c.l.b16 %v261
      %v978 = vunpack.c.l.b16 %v262
      %v979 = vunpack.c.l.b16 %v263
      %v980 = vunpack.c.l.b16 %v264
      %v981 = vunpack.c.l.b16 %v265
      %v982 = vunpack.c.l.b16 %v266
      %v983 = vunpack.c.l.b16 %v267
      %v984 = vunpack.c.l.b16 %v268
      %v985 = vunpack.c.l.b16 %v269
      %v986 = vunpack.c.l.b16 %v270
      %v987 = vunpack.c.l.b16 %v271
      %v988 = vunpack.c.l.b16 %v272
      %v989 = vunpack.c.l.b16 %v273
      %v990 = vunpack.c.l.b16 %v274
      %v991 = vunpack.c.l.b16 %v275
      %v992 = vunpack.c.l.b16 %v276
      %v993 = vunpack.c.l.b16 %v277
      %v994 = vunpack.c.l.b16 %v278
      %v995 = vunpack.c.l.b16 %v279
      %v996 = vunpack.c.l.b16 %v280
      %v997 = vunpack.c.l.b16 %v281
      %v998 = vunpack.c.l.b16 %v282
      %v999 = vunpack.c.l.b16 %v283
      %v1000 = vunpack.c.l.b16 %v284
      %v1001 = vunpack.c.l.b16 %v285
      %v1002 = vunpack.c.l.b16 %v286
      %v1003 = vunpack.c.l.b16 %v287
      %v1004 = vunpack.c.l.b16 %v288
      %v1005 = vunpack.c.l.b16 %v289
      %v1006 = vunpack.c.l.b16 %v290
      %v1007 = vunpack.c.l.b16 %v291
      %v1008 = vunpack.c.l.b16 %v292
      %v1009 = vunpack.c.l.b16 %v293
      %v1010 = vunpack.c.l.b16 %v294
      %v1011 = vunpack.c.l.b16 %v295
      %v1012 = vunpack.c.l.b16 %v296
      %v1013 = vunpack.c.l.b16 %v297
      %v1014 = vunpack.c.l.b16 %v298
      %v1015 = vunpack.c.l.b16 %v299
      %v1016 = vunpack.c.l.b16 %v300
      %v1017 = vunpack.c.l.b16 %v301
      %v1018 = vunpack.c.l.b16 %v302
      %v1019 = vunpack.c.l.b16 %v303
      %v1020 = vunpack.c.l.b16 %v304
      %v1021 = vunpack.c.l.b16 %v305
      %v1022 = vunpack.c.l.b16 %v306
      %v1023 = vunpack.c.l.b16 %v307
      %v1024 = vunpack.c.l.b16 %v308
      %v1025 = vunpack.c.l.b16 %v309
      %v1026 = vunpack.c.l.b16 %v310
      %v1027 = vunpack.c.l.b16 %v311
      %v1028 = vunpack.c.l.b16 %v312
      %v1029 = vunpack.c.l.b16 %v313
      %v1030 = vunpack.c.l.b16 %v314
      %v1031 = vunpack.c.l.b16 %v315
      %v1032 = vunpack.c.l.b16 %v316
      %v1033 = vunpack.c.l.b16 %v317
      %v1034 = vunpack.c.l.b16 %v318
      %v1035 = vunpack.c.l.b16 %v319
      %v1036 = vunpack.c.l.b16 %v320
      %v1037 = vunpack.c.l.b16 %v321
      %v1038 = vunpack.c.l.b16 %v322
      %v1039 = vunpack.c.l.b16 %v323
      %v1040 = vunpack.c.l.b16 %v324
      %v1041 = vunpack.c.l.b16 %v325
      %v1042 = vunpack.c.l.b16 %v326
      %v1043 = vunpack.c.l.b16 %v327
      %v1044 = vunpack.c.l.b16 %v328
      %v1045 = vunpack.c.l.b16 %v329
      %v1046 = vunpack.c.l.b16 %v330
      %v1047 = vunpack.c.l.b16 %v331
      %v1048 = vunpack.c.l.b16 %v332
      %v1049 = vunpack.c.l.b16 %v333
      %v1050 = vunpack.c.l.b16 %v334
      %v1051 = vunpack.c.l.b16 %v335
      %v1052 = vunpack.c.l.b16 %v336
      %v1053 = vunpack.c.l.b16 %v337
      %v1054 = vunpack.c.l.b16 %v338
      %v1055 = vunpack.c.l.b16 %v339
      %v1056 = vunpack.c.l.b16 %v340
      %v1057 = vunpack.c.l.b16 %v341
      %v1058 = vunpack.c.l.b16 %v342
      %v1059 = vunpack.c.l.b16 %v343
      %v1060 = vunpack.c.l.b16 %v344
      %v1061 = vunpack.c.l.b16 %v345
      %v1062 = vunpack.c.l.b16 %v346
      %v1063 = vunpack.c.l.b16 %v347
      %v1064 = vunpack.c.l.b16 %v348
      %v1065 = vunpack.c.l.b16 %v349
      %v1066 = vunpack.c.l.b16 %v350
      %v1067 = vunpack.c.l.b16 %v351
      %v1068 = vunpack.c.l.b16 %v352
      %v1069 = vunpack.c.l.b16 %v353
      %v1070 = vunpack.c.l.b16 %v354
      %v1071 = vunpack.c.l.b16 %v355
      %v1072 = vunpack.c.l.b16 %v356
      %v1073 = vunpack.c.l.b16 %v357
      %v1074 = vunpack.c.l.b16 %v358
      %v1075 = vunpack.c.l.b16 %v359
      %v1076 = vunpack.c.l.b16 %v360
      %v1077 = vunpack.c.l.b16 %v361
      %v1078 = vunpack.c.l.b16 %v362
      %v1079 = vunpack.c.l.b16 %v363
      %v1080 = vunpack.c.l.b16 %v364
      %v1081 = vunpack.c.l.b16 %v365
      %v1082 = vunpack.c.l.b16 %v366
      %v1083 = vunpack.c.l.b16 %v367
      %v1084 = vunpack.c.l.b16 %v368
      %v1085 = vunpack.c.l.b16 %v369
      %v1086 = vunpack.c.l.b16 %v370
      %v1087 = vunpack.c.l.b16 %v371
      %v1088 = vunpack.c.l.b16 %v372
      %v1089 = vunpack.c.l.b16 %v373
      %v1090 = vunpack.c.l.b16 %v374
      %v1091 = vunpack.c.l.b16 %v375
      %v1092 = vunpack.c.l.b16 %v376
      %v1093 = vunpack.c.l.b16 %v377
      %v1094 = vunpack.c.l.b16 %v378
      %v1095 = vunpack.c.l.b16 %v379
      %v1096 = vunpack.c.l.b16 %v380
      %v1097 = vunpack.c.l.b16 %v381
      %v1098 = vunpack.c.l.b16 %v382
      %v1099 = vunpack.c.l.b16 %v383
      %v1100 = vunpack.c.l.b16 %v384
      %v1101 = vunpack.c.l.b16 %v385
      %v1102 = vunpack.c.l.b16 %v386
      %v1103 = vunpack.c.l.b16 %v387
      %v1104 = vunpack.c.l.b16 %v388
      %v1105 = vunpack.c.l.b16 %v389
      %v1106 = vunpack.c.l.b16 %v390
      %v1107 = vunpack.c.l.b16 %v391
      %v1108 = vunpack.c.l.b16 %v392
      %v1109 = vunpack.c.l.b16 %v393
      %v1110 = vunpack.c.l.b16 %v394
      %v1111 = vunpack.c.l.b16 %v395
      %v1112 = vunpack.c.l.b16 %v396
      %v1113 = vunpack.c.l.b16 %v397
      %v1114 = vunpack.c.l.b16 %v398
      %v1115 = vunpack.c.l.b16 %v399
      %v1116 = vunpack.c.l.b16 %v400
      %v1117 = vunpack.c.l.b16 %v401
      %v1118 = vunpack.c.l.b16 %v402
      %v1119 = vunpack.c.l.b16 %v403
      %v1120 = vunpack.c.l.b16 %v404
      %v1121 = vunpack.c.l.b16 %v405
      %v1122 = vunpack.c.l.b16 %v406
      %v1123 = vunpack.c.l.b16 %v407
      %v1124 = vunpack.c.l.b16 %v408
      %v1125 = vunpack.c.l.b16 %v409
      %v1126 = vunpack.c.l.b16 %v410
      %v1127 = vunpack.c.l.b16 %v411
      %v1128 = vunpack.c.l.b16 %v412
      %v1129 = vunpack.c.l.b16 %v413
      %v1130 = vunpack.c.l.b16 %v414
      %v1131 = vunpack.c.l.b16 %v415
      %v1132 = vunpack.c.l.b16 %v416
      %v1133 = vunpack.c.l.b16 %v417
      %v1134 = vunpack.c.l.b16 %v418
      %v1135 = vunpack.c.l.b16 %v419
      %v1136 = vunpack.c.l.b16 %v420
      %v1137 = vunpack.c.l.b16 %v421
      %v1138 = vunpack.c.l.b16 %v422
      %v1139 = vunpack.c.l.b16 %v423
      %v1140 = vunpack.c.l.b16 %v424
      %v1141 = vunpack.c.l.b16 %v425
      %v1142 = vunpack.c.l.b16 %v426
      %v1143 = vunpack.c.l.b16 %v427
      %v1144 = vunpack.c.l.b16 %v428
      %v1145 = vunpack.c.l.b16 %v429
      %v1146 = vunpack.c.l.b16 %v430
      %v1147 = vunpack.c.l.b16 %v431
      %v1148 = vunpack.c.l.b16 %v432
      %v1149 = vunpack.c.l.b16 %v433
      %v1150 = vunpack.c.l.b16 %v434
      %v1151 = vunpack.c.l.b16 %v435
      %v1152 = vunpack.c.l.b16 %v436
      %v1153 = vunpack.c.l.b16 %v437
      %v1154 = vunpack.c.l.b16 %v438
      %v1155 = vunpack.c.l.b16 %v439
      %v1156 = vunpack.c.l.b16 %v440
      %v1157 = vunpack.c.l.b16 %v441
      %v1158 = vunpack.c.l.b16 %v442
      %v1159 = vunpack.c.l.b16 %v443
      %v1160 = vunpack.c.l.b16 %v444
      %v1161 = vunpack.c.l.b16 %v445
      %v1162 = vunpack.c.l.b16 %v446
      %v1163 = vunpack.c.l.b16 %v447
      %v1164 = vunpack.c.l.b16 %v448
      %v1165 = vunpack.c.l.b16 %v449
      %v1166 = vunpack.c.l.b16 %v450
      %v1167 = vunpack.c.l.b16 %v451
      %v1168 = vunpack.c.l.b16 %v452
      %v1169 = vunpack.c.l.b16 %v453
      %v1170 = vunpack.c.l.b16 %v454
      %v1171 = vunpack.c.l.b16 %v455
      %v1172 = vunpack.c.l.b16 %v456
      %v1173 = vunpack.c.l.b16 %v457
      %v1174 = vunpack.c.l.b16 %v458
      %v1175 = vpack.c.b16 %v904, %v903
      %v1176 = vpack.c.b16 %v906, %v905
      %v1177 = vpack.c.b16 %v908, %v907
      %v1178 = vpack.c.b16 %v910, %v909
      %v1179 = vpack.c.b16 %v912, %v911
      %v1180 = vpack.c.b16 %v914, %v913
      %v1181 = vpack.c.b16 %v916, %v915
      %v1182 = vpack.c.b16 %v918, %v917
      %v1183 = vpack.c.b16 %v920, %v919
      %v1184 = vpack.c.b16 %v922, %v921
      %v1185 = vpack.c.b16 %v924, %v923
      %v1186 = vpack.c.b16 %v926, %v925
      %v1187 = vpack.c.b16 %v928, %v927
      %v1188 = vpack.c.b16 %v930, %v929
      %v1189 = vpack.c.b16 %v932, %v931
      %v1190 = vpack.c.b16 %v934, %v933
      %v1191 = vpack.c.b16 %v936, %v935
      %v1192 = vpack.c.b16 %v938, %v937
      %v1193 = vpack.c.b16 %v940, %v939
      %v1194 = vpack.c.b16 %v942, %v941
      %v1195 = vpack.c.b16 %v944, %v943
      %v1196 = vpack.c.b16 %v946, %v945
      %v1197 = vpack.c.b16 %v948, %v947
      %v1198 = vpack.c.b16 %v950, %v949
      %v1199 = vpack.c.b16 %v952, %v951
      %v1200 = vpack.c.b16 %v954, %v953
      %v1201 = vpack.c.b16 %v956, %v955
      %v1202 = vpack.c.b16 %v958, %v957
      %v1203 = vpack.c.b16 %v960, %v959
      %v1204 = vpack.c.b16 %v962, %v961
      %v1205 = vpack.c.b16 %v964, %v963
      %v1206 = vpack.c.b16 %v966, %v965
      %v1207 = vpack.c.b16 %v968, %v967
      %v1208 = vpack.c.b16 %v970, %v969
      %v1209 = vpack.c.b16 %v972, %v971
      %v1210 = vpack.c.b16 %v974, %v973
      %v1211 = vpack.c.b16 %v976, %v975
      %v1212 = vpack.c.b16 %v978, %v977
      %v1213 = vpack.c.b16 %v980, %v979
      %v1214 = vpack.c.b16 %v982, %v981
      %v1215 = vpack.c.b16 %v984, %v983
      %v1216 = vpack.c.b16 %v986, %v985
      %v1217 = vpack.c.b16 %v988, %v987
      %v1218 = vpack.c.b16 %v990, %v989
      %v1219 = vpack.c.b16 %v992, %v991
      %v1220 = vpack.c.b16 %v994, %v993
      %v1221 = vpack.c.b16 %v996, %v995
      %v1222 = vpack.c.b16 %v998, %v997
      %v1223 = vpack.c.b16 %v1000, %v999
      %v1224 = vpack.c.b16 %v1002, %v1001
      %v1225 = vpack.c.b16 %v1004, %v1003
      %v1226 = vpack.c.b16 %v1006, %v1005
      %v1227 = vpack.c.b16 %v1008, %v1007
      %v1228 = vpack.c.b16 %v1010, %v1009
      %v1229 = vpack.c.b16 %v1012, %v1011
      %v1230 = vpack.c.b16 %v1014, %v1013
      %v1231 = vpack.c.b16 %v1016, %v1015
      %v1232 = vpack.c.b16 %v1018, %v1017
      %v1233 = vpack.c.b16 %v1020, %v1019
      %v1234 = vpack.c.b16 %v1022, %v1021
      %v1235 = vpack.c.b16 %v1024, %v1023
      %v1236 = vpack.c.b16 %v1026, %v1025
      %v1237 = vpack.c.b16 %v1028, %v1027
      %v1238 = vpack.c.b16 %v1030, %v1029
      %v1239 = vpack.c.b16 %v1032, %v1031
      %v1240 = vpack.c.b16 %v1034, %v1033
      %v1241 = vpack.c.b16 %v1036, %v1035
      %v1242 = vpack.c.b16 %v1038, %v1037
      %v1243 = vpack.c.b16 %v1040, %v1039
      %v1244 = vpack.c.b16 %v1042, %v1041
      %v1245 = vpack.c.b16 %v1044, %v1043
      %v1246 = vpack.c.b16 %v1046, %v1045
      %v1247 = vpack.c.b16 %v1048, %v1047
      %v1248 = vpack.c.b16 %v1050, %v1049
      %v1249 = vpack.c.b16 %v1052, %v1051
      %v1250 = vpack.c.b16 %v1054, %v1053
      %v1251 = vpack.c.b16 %v1056, %v1055
      %v1252 = vpack.c.b16 %v1058, %v1057
      %v1253 = vpack.c.b16 %v1060, %v1059
      %v1254 = vpack.c.b16 %v1062, %v1061
      %v1255 = vpack.c.b16 %v1064, %v1063
      %v1256 = vpack.c.b16 %v1066, %v1065
      %v1257 = vpack.c.b16 %v1068, %v1067
      %v1258 = vpack.c.b16 %v1070, %v1069
      %v1259 = vpack.c.b16 %v1072, %v1071
      %v1260 = vpack.c.b16 %v1074, %v1073
      %v1261 = vpack.c.b16 %v1076, %v1075
      %v1262 = vpack.c.b16 %v1078, %v1077
      %v1263 = vpack.c.b16 %v1080, %v1079
      %v1264 = vpack.c.b16 %v1082, %v1081
      %v1265 = vpack.c.b16 %v1084, %v1083
      %v1266 = vpack.c.b16 %v1086, %v1085
      %v1267 = vpack.c.b16 %v1088, %v1087
      %v1268 = vpack.c.b16 %v1090, %v1089
      %v1269 = vpack.c.b16 %v1092, %v1091
      %v1270 = vpack.c.b16 %v1094, %v1093
      %v1271 = vpack.c.b16 %v1096, %v1095
      %v1272 = vpack.c.b16 %v1098, %v1097
      %v1273 = vpack.c.b16 %v1100, %v1099
      %v1274 = vpack.c.b16 %v1102, %v1101
      %v1275 = vpack.c.b16 %v1104, %v1103
      %v1276 = vpack.c.b16 %v1106, %v1105
      %v1277 = vpack.c.b16 %v1108, %v1107
      %v1278 = vpack.c.b16 %v1110, %v1109
      %v1279 = vpack.c.b16 %v1112, %v1111
      %v1280 = vpack.c.b16 %v1114, %v1113
      %v1281 = vpack.c.b16 %v1116, %v1115
      %v1282 = vpack.c.b16 %v1118, %v1117
      %v1283 = vpack.c.b16 %v1120, %v1119
      %v1284 = vpack.c.b16 %v1122, %v1121
      %v1285 = vpack.c.b16 %v1124, %v1123
      %v1286 = vpack.c.b16 %v1126, %v1125
      %v1287 = vpack.c.b16 %v1128, %v1127
      %v1288 = vpack.c.b16 %v1130, %v1129
      %v1289 = vpack.c.b16 %v1132, %v1131
      %v1290 = vpack.c.b16 %v1134, %v1133
      %v1291 = vpack.c.b16 %v1136, %v1135
      %v1292 = vpack.c.b16 %v1138, %v1137
      %v1293 = vpack.c.b16 %v1140, %v1139
      %v1294 = vpack.c.b16 %v1142, %v1141
      %v1295 = vpack.c.b16 %v1144, %v1143
      %v1296 = vpack.c.b16 %v1146, %v1145
      %v1297 = vpack.c.b16 %v1148, %v1147
      %v1298 = vpack.c.b16 %v1150, %v1149
      %v1299 = vpack.c.b16 %v1152, %v1151
      %v1300 = vpack.c.b16 %v1154, %v1153
      %v1301 = vpack.c.b16 %v1156, %v1155
      %v1302 = vpack.c.b16 %v1158, %v1157
      %v1303 = vpack.c.b16 %v1160, %v1159
      %v1304 = vpack.c.b16 %v1162, %v1161
      %v1305 = vpack.c.b16 %v1164, %v1163
      %v1306 = vpack.c.b16 %v1166, %v1165
      %v1307 = vpack.c.b16 %v1168, %v1167
      %v1308 = vpack.c.b16 %v1170, %v1169
      %v1309 = vpack.c.b16 %v1172, %v1171
      %v1310 = vpack.c.b16 %v1174, %v1173
      %1447 = vmatprep.subr.bf16.mxu0 0
      %1448 = vmatpush1.bf16.msra.mxu0 %v1175
      %1449 = vmatprep.subr.bf16.mxu0 0
      %1450 = vmatpush1.bf16.msra.mxu0 %v1176
      %1451 = vmatprep.subr.bf16.mxu0 0
      %1452 = vmatpush1.bf16.msra.mxu0 %v1177
      %1453 = vmatprep.subr.bf16.mxu0 0
      %1454 = vmatpush1.bf16.msra.mxu0 %v1178
      %1455 = vmatprep.subr.bf16.mxu0 0
      %1456 = vmatpush1.bf16.msra.mxu0 %v1179
      %1457 = vmatprep.subr.bf16.mxu0 0
      %1458 = vmatpush1.bf16.msra.mxu0 %v1180
      %1459 = vmatprep.subr.bf16.mxu0 0
      %1460 = vmatpush1.bf16.msra.mxu0 %v1181
      %1461 = vmatprep.subr.bf16.mxu0 0
      %1462 = vmatpush1.bf16.msra.mxu0 %v1182
      %1463 = vmatprep.subr.bf16.mxu0 0
      %1464 = vmatpush1.bf16.msra.mxu0 %v1183
      %1465 = vmatprep.subr.bf16.mxu0 0
      %1466 = vmatpush1.bf16.msra.mxu0 %v1184
      %1467 = vmatprep.subr.bf16.mxu0 0
      %1468 = vmatpush1.bf16.msra.mxu0 %v1185
      %1469 = vmatprep.subr.bf16.mxu0 0
      %1470 = vmatpush1.bf16.msra.mxu0 %v1186
      %1471 = vmatprep.subr.bf16.mxu0 0
      %1472 = vmatpush1.bf16.msra.mxu0 %v1187
      %1473 = vmatprep.subr.bf16.mxu0 0
      %1474 = vmatpush1.bf16.msra.mxu0 %v1188
      %1475 = vmatprep.subr.bf16.mxu0 0
      %1476 = vmatpush1.bf16.msra.mxu0 %v1189
      %1477 = vmatprep.subr.bf16.mxu0 0
      %1478 = vmatpush1.bf16.msra.mxu0 %v1190
      %1479 = vmatprep.mubr.bf16.mxu0 %v564
      %1480 = vmatmul.mubr.bf16.gmra.mrb[0].mxu0 %v563
      %v1481 = vpop.f32.mrb[0].mxu0
      %v1482 = vadd.f32 0.0, %v1481
      %v1483 = vpop.f32.mrb[0].mxu0
      %v1484 = vpop.f32.mrb[0].mxu0
      %v1485 = vadd.f32 0.0, %v1484
      %v1486 = vpop.f32.mrb[0].mxu0
      %1487 = vmatprep.mubr.bf16.mxu0 %v581
      %1488 = vmatmul.mubr.bf16.gmra.mrb[0].mxu0 %v580
      %v1489 = vpop.f32.mrb[0].mxu0
      %v1490 = vadd.f32 0.0, %v1489
      %v1491 = vpop.f32.mrb[0].mxu0
      %v1492 = vpop.f32.mrb[0].mxu0
      %v1493 = vadd.f32 0.0, %v1492
      %v1494 = vpop.f32.mrb[0].mxu0
      %1495 = vdwg.mxu0
      %1496 = vmatprep.subr.bf16.mxu0 0
      %1497 = vmatpush1.bf16.msra.mxu0 %v1191
      %1498 = vmatprep.subr.bf16.mxu0 0
      %1499 = vmatpush1.bf16.msra.mxu0 %v1192
      %1500 = vmatprep.subr.bf16.mxu0 0
      %1501 = vmatpush1.bf16.msra.mxu0 %v1193
      %1502 = vmatprep.subr.bf16.mxu0 0
      %1503 = vmatpush1.bf16.msra.mxu0 %v1194
      %1504 = vmatprep.subr.bf16.mxu0 0
      %1505 = vmatpush1.bf16.msra.mxu0 %v1195
      %1506 = vmatprep.subr.bf16.mxu0 0
      %1507 = vmatpush1.bf16.msra.mxu0 %v1196
      %1508 = vmatprep.subr.bf16.mxu0 0
      %1509 = vmatpush1.bf16.msra.mxu0 %v1197
      %1510 = vmatprep.subr.bf16.mxu0 0
      %1511 = vmatpush1.bf16.msra.mxu0 %v1198
      %1512 = vmatprep.subr.bf16.mxu0 0
      %1513 = vmatpush1.bf16.msra.mxu0 %v1199
      %1514 = vmatprep.subr.bf16.mxu0 0
      %1515 = vmatpush1.bf16.msra.mxu0 %v1200
      %1516 = vmatprep.subr.bf16.mxu0 0
      %1517 = vmatpush1.bf16.msra.mxu0 %v1201
      %1518 = vmatprep.subr.bf16.mxu0 0
      %1519 = vmatpush1.bf16.msra.mxu0 %v1202
      %1520 = vmatprep.subr.bf16.mxu0 0
      %1521 = vmatpush1.bf16.msra.mxu0 %v1203
      %1522 = vmatprep.subr.bf16.mxu0 0
      %1523 = vmatpush1.bf16.msra.mxu0 %v1204
      %1524 = vmatprep.subr.bf16.mxu0 0
      %1525 = vmatpush1.bf16.msra.mxu0 %v1205
      %1526 = vmatprep.subr.bf16.mxu0 0
      %1527 = vmatpush1.bf16.msra.mxu0 %v1206
      %1528 = vmatprep.mubr.bf16.mxu0 %v566
      %1529 = vmatmul.mubr.bf16.gmra.mrb[0].mxu0 %v565
      %v1530 = vpop.f32.mrb[0].mxu0
      %v1531 = vadd.f32 %v1482, %v1530
      %v1532 = vpop.f32.mrb[0].mxu0
      %v1533 = vpop.f32.mrb[0].mxu0
      %v1534 = vadd.f32 %v1485, %v1533
      %v1535 = vpop.f32.mrb[0].mxu0
      %1536 = vmatprep.mubr.bf16.mxu0 %v583
      %1537 = vmatmul.mubr.bf16.gmra.mrb[0].mxu0 %v582
      %v1538 = vpop.f32.mrb[0].mxu0
      %v1539 = vadd.f32 %v1490, %v1538
      %v1540 = vpop.f32.mrb[0].mxu0
      %v1541 = vpop.f32.mrb[0].mxu0
      %v1542 = vadd.f32 %v1493, %v1541
      %v1543 = vpop.f32.mrb[0].mxu0
      %1544 = vdwg.mxu0
      %1545 = vmatprep.subr.bf16.mxu0 0
      %1546 = vmatpush1.bf16.msra.mxu0 %v1207
      %1547 = vmatprep.subr.bf16.mxu0 0
      %1548 = vmatpush1.bf16.msra.mxu0 %v1208
      %1549 = vmatprep.subr.bf16.mxu0 0
      %1550 = vmatpush1.bf16.msra.mxu0 %v1209
      %1551 = vmatprep.subr.bf16.mxu0 0
      %1552 = vmatpush1.bf16.msra.mxu0 %v1210
      %1553 = vmatprep.subr.bf16.mxu0 0
      %1554 = vmatpush1.bf16.msra.mxu0 %v1211
      %1555 = vmatprep.subr.bf16.mxu0 0
      %1556 = vmatpush1.bf16.msra.mxu0 %v1212
      %1557 = vmatprep.subr.bf16.mxu0 0
      %1558 = vmatpush1.bf16.msra.mxu0 %v1213
      %1559 = vmatprep.subr.bf16.mxu0 0
      %1560 = vmatpush1.bf16.msra.mxu0 %v1214
      %1561 = vmatprep.subr.bf16.mxu0 0
      %1562 = vmatpush1.bf16.msra.mxu0 %v1215
      %1563 = vmatprep.subr.bf16.mxu0 0
      %1564 = vmatpush1.bf16.msra.mxu0 %v1216
      %1565 = vmatprep.subr.bf16.mxu0 0
      %1566 = vmatpush1.bf16.msra.mxu0 %v1217
      %1567 = vmatprep.subr.bf16.mxu0 0
      %1568 = vmatpush1.bf16.msra.mxu0 %v1218
      %1569 = vmatprep.subr.bf16.mxu0 0
      %1570 = vmatpush1.bf16.msra.mxu0 %v1219
      %1571 = vmatprep.subr.bf16.mxu0 0
      %1572 = vmatpush1.bf16.msra.mxu0 %v1220
      %1573 = vmatprep.subr.bf16.mxu0 0
      %1574 = vmatpush1.bf16.msra.mxu0 %v1221
      %1575 = vmatprep.subr.bf16.mxu0 0
      %1576 = vmatpush1.bf16.msra.mxu0 %v1222
      %1577 = vmatprep.mubr.bf16.mxu0 %v568
      %1578 = vmatmul.mubr.bf16.gmra.mrb[0].mxu0 %v567
      %v1579 = vpop.f32.mrb[0].mxu0
      %v1580 = vadd.f32 %v1531, %v1579
      %v1581 = vpop.f32.mrb[0].mxu0
      %v1582 = vpop.f32.mrb[0].mxu0
      %v1583 = vadd.f32 %v1534, %v1582
      %v1584 = vpop.f32.mrb[0].mxu0
      %1585 = vmatprep.mubr.bf16.mxu0 %v585
      %1586 = vmatmul.mubr.bf16.gmra.mrb[0].mxu0 %v584
      %v1587 = vpop.f32.mrb[0].mxu0
      %v1588 = vadd.f32 %v1539, %v1587
      %v1589 = vpop.f32.mrb[0].mxu0
      %v1590 = vpop.f32.mrb[0].mxu0
      %v1591 = vadd.f32 %v1542, %v1590
      %v1592 = vpop.f32.mrb[0].mxu0
      %1593 = vdwg.mxu0
      %1594 = vmatprep.subr.bf16.mxu0 0
      %1595 = vmatpush1.bf16.msra.mxu0 %v1223
      %1596 = vmatprep.subr.bf16.mxu0 0
      %1597 = vmatpush1.bf16.msra.mxu0 %v1224
      %1598 = vmatprep.subr.bf16.mxu0 0
      %1599 = vmatpush1.bf16.msra.mxu0 %v1225
      %1600 = vmatprep.subr.bf16.mxu0 0
      %1601 = vmatpush1.bf16.msra.mxu0 %v1226
      %1602 = vmatprep.subr.bf16.mxu0 0
      %1603 = vmatpush1.bf16.msra.mxu0 %v1227
      %1604 = vmatprep.subr.bf16.mxu0 0
      %1605 = vmatpush1.bf16.msra.mxu0 %v1228
      %1606 = vmatprep.subr.bf16.mxu0 0
      %1607 = vmatpush1.bf16.msra.mxu0 %v1229
      %1608 = vmatprep.subr.bf16.mxu0 0
      %1609 = vmatpush1.bf16.msra.mxu0 %v1230
      %1610 = vmatprep.subr.bf16.mxu0 0
      %1611 = vmatpush1.bf16.msra.mxu0 %v1231
      %1612 = vmatprep.subr.bf16.mxu0 0
      %1613 = vmatpush1.bf16.msra.mxu0 %v1232
      %1614 = vmatprep.subr.bf16.mxu0 0
      %1615 = vmatpush1.bf16.msra.mxu0 %v1233
      %1616 = vmatprep.subr.bf16.mxu0 0
      %1617 = vmatpush1.bf16.msra.mxu0 %v1234
      %1618 = vmatprep.subr.bf16.mxu0 0
      %1619 = vmatpush1.bf16.msra.mxu0 %v1235
      %1620 = vmatprep.subr.bf16.mxu0 0
      %1621 = vmatpush1.bf16.msra.mxu0 %v1236
      %1622 = vmatprep.subr.bf16.mxu0 0
      %1623 = vmatpush1.bf16.msra.mxu0 %v1237
      %1624 = vmatprep.subr.bf16.mxu0 0
      %1625 = vmatpush1.bf16.msra.mxu0 %v1238
      %1626 = vmatprep.mubr.bf16.mxu0 %v570
      %1627 = vmatmul.mubr.bf16.gmra.mrb[0].mxu0 %v569
      %v1628 = vpop.f32.mrb[0].mxu0
      %v1629 = vadd.f32 %v1580, %v1628
      %v1630 = vpop.f32.mrb[0].mxu0
      %v1631 = vpop.f32.mrb[0].mxu0
      %v1632 = vadd.f32 %v1583, %v1631
      %v1633 = vpop.f32.mrb[0].mxu0
      %1634 = vmatprep.mubr.bf16.mxu0 %v587
      %1635 = vmatmul.mubr.bf16.gmra.mrb[0].mxu0 %v586
      %v1636 = vpop.f32.mrb[0].mxu0
      %v1637 = vadd.f32 %v1588, %v1636
      %v1638 = vpop.f32.mrb[0].mxu0
      %v1639 = vpop.f32.mrb[0].mxu0
      %v1640 = vadd.f32 %v1591, %v1639
      %v1641 = vpop.f32.mrb[0].mxu0
      %1642 = vdwg.mxu0
      %1643 = vmatprep.subr.bf16.mxu0 0
      %1644 = vmatpush1.bf16.msra.mxu0 %v1239
      %1645 = vmatprep.subr.bf16.mxu0 0
      %1646 = vmatpush1.bf16.msra.mxu0 %v1240
      %1647 = vmatprep.subr.bf16.mxu0 0
      %1648 = vmatpush1.bf16.msra.mxu0 %v1241
      %1649 = vmatprep.subr.bf16.mxu0 0
      %1650 = vmatpush1.bf16.msra.mxu0 %v1242
      %1651 = vmatprep.subr.bf16.mxu0 0
      %1652 = vmatpush1.bf16.msra.mxu0 %v1243
      %1653 = vmatprep.subr.bf16.mxu0 0
      %1654 = vmatpush1.bf16.msra.mxu0 %v1244
      %1655 = vmatprep.subr.bf16.mxu0 0
      %1656 = vmatpush1.bf16.msra.mxu0 %v1245
      %1657 = vmatprep.subr.bf16.mxu0 0
      %1658 = vmatpush1.bf16.msra.mxu0 %v1246
      %1659 = vmatprep.subr.bf16.mxu0 0
      %1660 = vmatpush1.bf16.msra.mxu0 %v1247
      %1661 = vmatprep.subr.bf16.mxu0 0
      %1662 = vmatpush1.bf16.msra.mxu0 %v1248
      %1663 = vmatprep.subr.bf16.mxu0 0
      %1664 = vmatpush1.bf16.msra.mxu0 %v1249
      %1665 = vmatprep.subr.bf16.mxu0 0
      %1666 = vmatpush1.bf16.msra.mxu0 %v1250
      %1667 = vmatprep.subr.bf16.mxu0 0
      %1668 = vmatpush1.bf16.msra.mxu0 %v1251
      %1669 = vmatprep.subr.bf16.mxu0 0
      %1670 = vmatpush1.bf16.msra.mxu0 %v1252
      %1671 = vmatprep.subr.bf16.mxu0 0
      %1672 = vmatpush1.bf16.msra.mxu0 %v1253
      %1673 = vmatprep.subr.bf16.mxu0 0
      %1674 = vmatpush1.bf16.msra.mxu0 %v1254
      %1675 = vmatprep.mubr.bf16.mxu0 %v572
      %1676 = vmatmul.mubr.bf16.gmra.mrb[0].mxu0 %v571
      %v1677 = vpop.f32.mrb[0].mxu0
      %v1678 = vadd.f32 %v1629, %v1677
      %v1679 = vpop.f32.mrb[0].mxu0
      %v1680 = vpop.f32.mrb[0].mxu0
      %v1681 = vadd.f32 %v1632, %v1680
      %v1682 = vpop.f32.mrb[0].mxu0
      %1683 = vmatprep.mubr.bf16.mxu0 %v589
      %1684 = vmatmul.mubr.bf16.gmra.mrb[0].mxu0 %v588
      %v1685 = vpop.f32.mrb[0].mxu0
      %v1686 = vadd.f32 %v1637, %v1685
      %v1687 = vpop.f32.mrb[0].mxu0
      %v1688 = vpop.f32.mrb[0].mxu0
      %v1689 = vadd.f32 %v1640, %v1688
      %v1690 = vpop.f32.mrb[0].mxu0
      %1691 = vdwg.mxu0
      %1692 = vmatprep.subr.bf16.mxu0 0
      %1693 = vmatpush1.bf16.msra.mxu0 %v1255
      %1694 = vmatprep.subr.bf16.mxu0 0
      %1695 = vmatpush1.bf16.msra.mxu0 %v1256
      %1696 = vmatprep.subr.bf16.mxu0 0
      %1697 = vmatpush1.bf16.msra.mxu0 %v1257
      %1698 = vmatprep.subr.bf16.mxu0 0
      %1699 = vmatpush1.bf16.msra.mxu0 %v1258
      %1700 = vmatprep.subr.bf16.mxu0 0
      %1701 = vmatpush1.bf16.msra.mxu0 %v1259
      %1702 = vmatprep.subr.bf16.mxu0 0
      %1703 = vmatpush1.bf16.msra.mxu0 %v1260
      %1704 = vmatprep.subr.bf16.mxu0 0
      %1705 = vmatpush1.bf16.msra.mxu0 %v1261
      %1706 = vmatprep.subr.bf16.mxu0 0
      %1707 = vmatpush1.bf16.msra.mxu0 %v1262
      %1708 = vmatprep.subr.bf16.mxu0 0
      %1709 = vmatpush1.bf16.msra.mxu0 %v1263
      %1710 = vmatprep.subr.bf16.mxu0 0
      %1711 = vmatpush1.bf16.msra.mxu0 %v1264
      %1712 = vmatprep.subr.bf16.mxu0 0
      %1713 = vmatpush1.bf16.msra.mxu0 %v1265
      %1714 = vmatprep.subr.bf16.mxu0 0
      %1715 = vmatpush1.bf16.msra.mxu0 %v1266
      %1716 = vmatprep.subr.bf16.mxu0 0
      %1717 = vmatpush1.bf16.msra.mxu0 %v1267
      %1718 = vmatprep.subr.bf16.mxu0 0
      %1719 = vmatpush1.bf16.msra.mxu0 %v1268
      %1720 = vmatprep.subr.bf16.mxu0 0
      %1721 = vmatpush1.bf16.msra.mxu0 %v1269
      %1722 = vmatprep.subr.bf16.mxu0 0
      %1723 = vmatpush1.bf16.msra.mxu0 %v1270
      %1724 = vmatprep.mubr.bf16.mxu0 %v574
      %1725 = vmatmul.mubr.bf16.gmra.mrb[0].mxu0 %v573
      %v1726 = vpop.f32.mrb[0].mxu0
      %v1727 = vadd.f32 %v1678, %v1726
      %v1728 = vpop.f32.mrb[0].mxu0
      %v1729 = vpop.f32.mrb[0].mxu0
      %v1730 = vadd.f32 %v1681, %v1729
      %v1731 = vpop.f32.mrb[0].mxu0
      %1732 = vmatprep.mubr.bf16.mxu0 %v591
      %1733 = vmatmul.mubr.bf16.gmra.mrb[0].mxu0 %v590
      %v1734 = vpop.f32.mrb[0].mxu0
      %v1735 = vadd.f32 %v1686, %v1734
      %v1736 = vpop.f32.mrb[0].mxu0
      %v1737 = vpop.f32.mrb[0].mxu0
      %v1738 = vadd.f32 %v1689, %v1737
      %v1739 = vpop.f32.mrb[0].mxu0
      %1740 = vdwg.mxu0
      %1741 = vmatprep.subr.bf16.mxu0 0
      %1742 = vmatpush1.bf16.msra.mxu0 %v1271
      %1743 = vmatprep.subr.bf16.mxu0 0
      %1744 = vmatpush1.bf16.msra.mxu0 %v1272
      %1745 = vmatprep.subr.bf16.mxu0 0
      %1746 = vmatpush1.bf16.msra.mxu0 %v1273
      %1747 = vmatprep.subr.bf16.mxu0 0
      %1748 = vmatpush1.bf16.msra.mxu0 %v1274
      %1749 = vmatprep.subr.bf16.mxu0 0
      %1750 = vmatpush1.bf16.msra.mxu0 %v1275
      %1751 = vmatprep.subr.bf16.mxu0 0
      %1752 = vmatpush1.bf16.msra.mxu0 %v1276
      %1753 = vmatprep.subr.bf16.mxu0 0
      %1754 = vmatpush1.bf16.msra.mxu0 %v1277
      %1755 = vmatprep.subr.bf16.mxu0 0
      %1756 = vmatpush1.bf16.msra.mxu0 %v1278
      %1757 = vmatprep.subr.bf16.mxu0 0
      %1758 = vmatpush1.bf16.msra.mxu0 %v1279
      %1759 = vmatprep.subr.bf16.mxu0 0
      %1760 = vmatpush1.bf16.msra.mxu0 %v1280
      %1761 = vmatprep.subr.bf16.mxu0 0
      %1762 = vmatpush1.bf16.msra.mxu0 %v1281
      %1763 = vmatprep.subr.bf16.mxu0 0
      %1764 = vmatpush1.bf16.msra.mxu0 %v1282
      %1765 = vmatprep.subr.bf16.mxu0 0
      %1766 = vmatpush1.bf16.msra.mxu0 %v1283
      %1767 = vmatprep.subr.bf16.mxu0 0
      %1768 = vmatpush1.bf16.msra.mxu0 %v1284
      %1769 = vmatprep.subr.bf16.mxu0 0
      %1770 = vmatpush1.bf16.msra.mxu0 %v1285
      %1771 = vmatprep.subr.bf16.mxu0 0
      %1772 = vmatpush1.bf16.msra.mxu0 %v1286
      %1773 = vmatprep.mubr.bf16.mxu0 %v576
      %1774 = vmatmul.mubr.bf16.gmra.mrb[0].mxu0 %v575
      %v1775 = vpop.f32.mrb[0].mxu0
      %v1776 = vadd.f32 %v1727, %v1775
      %v1777 = vpop.f32.mrb[0].mxu0
      %v1778 = vpop.f32.mrb[0].mxu0
      %v1779 = vadd.f32 %v1730, %v1778
      %v1780 = vpop.f32.mrb[0].mxu0
      %1781 = vmatprep.mubr.bf16.mxu0 %v593
      %1782 = vmatmul.mubr.bf16.gmra.mrb[0].mxu0 %v592
      %v1783 = vpop.f32.mrb[0].mxu0
      %v1784 = vadd.f32 %v1735, %v1783
      %v1785 = vpop.f32.mrb[0].mxu0
      %v1786 = vpop.f32.mrb[0].mxu0
      %v1787 = vadd.f32 %v1738, %v1786
      %v1788 = vpop.f32.mrb[0].mxu0
      %1789 = vdwg.mxu0
      %1790 = vmatprep.subr.bf16.mxu0 0
      %1791 = vmatpush1.bf16.msra.mxu0 %v1287
      %1792 = vmatprep.subr.bf16.mxu0 0
      %1793 = vmatpush1.bf16.msra.mxu0 %v1288
      %1794 = vmatprep.subr.bf16.mxu0 0
      %1795 = vmatpush1.bf16.msra.mxu0 %v1289
      %1796 = vmatprep.subr.bf16.mxu0 0
      %1797 = vmatpush1.bf16.msra.mxu0 %v1290
      %1798 = vmatprep.subr.bf16.mxu0 0
      %1799 = vmatpush1.bf16.msra.mxu0 %v1291
      %1800 = vmatprep.subr.bf16.mxu0 0
      %1801 = vmatpush1.bf16.msra.mxu0 %v1292
      %1802 = vmatprep.subr.bf16.mxu0 0
      %1803 = vmatpush1.bf16.msra.mxu0 %v1293
      %1804 = vmatprep.subr.bf16.mxu0 0
      %1805 = vmatpush1.bf16.msra.mxu0 %v1294
      %1806 = vmatprep.subr.bf16.mxu0 0
      %1807 = vmatpush1.bf16.msra.mxu0 %v1295
      %1808 = vmatprep.subr.bf16.mxu0 0
      %1809 = vmatpush1.bf16.msra.mxu0 %v1296
      %1810 = vmatprep.subr.bf16.mxu0 0
      %1811 = vmatpush1.bf16.msra.mxu0 %v1297
      %1812 = vmatprep.subr.bf16.mxu0 0
      %1813 = vmatpush1.bf16.msra.mxu0 %v1298
      %1814 = vmatprep.subr.bf16.mxu0 0
      %1815 = vmatpush1.bf16.msra.mxu0 %v1299
      %1816 = vmatprep.subr.bf16.mxu0 0
      %1817 = vmatpush1.bf16.msra.mxu0 %v1300
      %1818 = vmatprep.subr.bf16.mxu0 0
      %1819 = vmatpush1.bf16.msra.mxu0 %v1301
      %1820 = vmatprep.subr.bf16.mxu0 0
      %1821 = vmatpush1.bf16.msra.mxu0 %v1302
      %1822 = vmatprep.mubr.bf16.mxu0 %v578
      %1823 = vmatmul.mubr.bf16.gmra.mrb[0].mxu0 %v577
      %v1824 = vpop.f32.mrb[0].mxu0
      %v1825 = vadd.f32 %v1776, %v1824
      %v1826 = vpop.f32.mrb[0].mxu0
      %v1827 = vpop.f32.mrb[0].mxu0
      %v1828 = vadd.f32 %v1779, %v1827
      %v1829 = vpop.f32.mrb[0].mxu0
      %1830 = vmatprep.mubr.bf16.mxu0 %v595
      %1831 = vmatmul.mubr.bf16.gmra.mrb[0].mxu0 %v594
      %v1832 = vpop.f32.mrb[0].mxu0
      %v1833 = vadd.f32 %v1784, %v1832
      %v1834 = vpop.f32.mrb[0].mxu0
      %v1835 = vpop.f32.mrb[0].mxu0
      %v1836 = vadd.f32 %v1787, %v1835
      %v1837 = vpop.f32.mrb[0].mxu0
      %1838 = vdwg.mxu0
      %1839 = vmatprep.subr.bf16.mxu0 0
      %1840 = vmatpush1.bf16.msra.mxu0 %v1303
      %1841 = vmatprep.subr.bf16.mxu0 0
      %1842 = vmatpush1.bf16.msra.mxu0 %v1304
      %1843 = vmatprep.subr.bf16.mxu0 0
      %1844 = vmatpush1.bf16.msra.mxu0 %v1305
      %1845 = vmatprep.subr.bf16.mxu0 0
      %1846 = vmatpush1.bf16.msra.mxu0 %v1306
      %1847 = vmatprep.subr.bf16.mxu0 0
      %1848 = vmatpush1.bf16.msra.mxu0 %v1307
      %1849 = vmatprep.subr.bf16.mxu0 0
      %1850 = vmatpush1.bf16.msra.mxu0 %v1308
      %1851 = vmatprep.subr.bf16.mxu0 0
      %1852 = vmatpush1.bf16.msra.mxu0 %v1309
      %1853 = vmatprep.subr.bf16.mxu0 0
      %1854 = vmatpush1.bf16.msra.mxu0 %v1310
      %1855 = vmatprep.subr.bf16.mxu0 0
      %1856 = vmatpush1.bf16.msra.mxu0 0
      %1857 = vmatprep.subr.bf16.mxu0 0
      %1858 = vmatpush1.bf16.msra.mxu0 0
      %1859 = vmatprep.subr.bf16.mxu0 0
      %1860 = vmatpush1.bf16.msra.mxu0 0
      %1861 = vmatprep.subr.bf16.mxu0 0
      %1862 = vmatpush1.bf16.msra.mxu0 0
      %1863 = vmatprep.subr.bf16.mxu0 0
      %1864 = vmatpush1.bf16.msra.mxu0 0
      %1865 = vmatprep.subr.bf16.mxu0 0
      %1866 = vmatpush1.bf16.msra.mxu0 0
      %1867 = vmatprep.subr.bf16.mxu0 0
      %1868 = vmatpush1.bf16.msra.mxu0 0
      %1869 = vmatprep.subr.bf16.mxu0 0
      %1870 = vmatpush1.bf16.msra.mxu0 0
      %1871 = vmatprep.mubr.bf16.mxu0 0
      %1872 = vmatmul.mubr.bf16.gmra.mrb[0].mxu0 %v579
      %v1873 = vpop.f32.mrb[0].mxu0
      %v1874 = vadd.f32 %v1825, %v1873
      %v1875 = vpop.f32.mrb[0].mxu0
      %v1876 = vpop.f32.mrb[0].mxu0
      %v1877 = vadd.f32 %v1828, %v1876
      %v1878 = vpop.f32.mrb[0].mxu0
      %1879 = vmatprep.mubr.bf16.mxu0 0
      %1880 = vmatmul.mubr.bf16.gmra.mrb[0].mxu0 %v596
      %v1881 = vpop.f32.mrb[0].mxu0
      %v1882 = vadd.f32 %v1833, %v1881
      %v1883 = vpop.f32.mrb[0].mxu0
      %v1884 = vpop.f32.mrb[0].mxu0
      %v1885 = vadd.f32 %v1836, %v1884
      %v1886 = vpop.f32.mrb[0].mxu0
      %1887 = vdwg.mxu0
      %1888 = vst [vmem:[%s148] sm:$0xff] %v1874
      %1889 = vst [vmem:[%s148 + $0x8] sm:$0xff] %v1877
      %1890 = vst [vmem:[%s148 + $0x10] sm:$0xff] %v1882
      %1891 = vst [vmem:[%s148 + $0x18] sm:$0xff] %v1885
      %s1892 = smul.u32 4, %s13
      %p1893 = scmp.lt.s32.totalorder %s1892, 7
      %s1894 = scalar_select %p1893, %s1892, 7
      %s1895 = smul.addr %s1894, 8
      %s1896 = scalar_lea.vmem %s2, %s1895
      // Predicated region
      $region29: #{_lambda_.8} parent=27 // pred_check
        %p1897 = pneg %p78
      $region30: #{_lambda_.8} parent=27 // pred_check_branch
        %1899 = sbr.rel (%p1897) target = $region32
      $region31: #{_lambda_.8} parent=27 // pred_region
        %s1900 = smul.u32 4, %s13
      $region32: #{_lambda_.8} parent=27 // pred_fallthru
        _
    $region28: #{_lambda_.8} parent=5 // pred_fallthru
      _
    %p1901 = scmp.le.s32.totalorder 2, %s8
    // Predicated region
    $region33: #{_lambda_.8} parent=5 // pred_check
      %p1902 = pneg %p1901
    $region34: #{_lambda_.8} parent=5 // pred_check_branch
      %1904 = sbr.rel (%p1902) target = $region36
    $region35: #{_lambda_.8} parent=5 // pred_region
      %s1905 = ssub.s32 %s8, 2
      // Predicated region
      $region37: #{_lambda_.8} parent=35 // pred_check
        %p1906 = pneg %p84
      $region38: #{_lambda_.8} parent=35 // pred_check_branch
        %1908 = sbr.rel (%p1906) target = $region40
      $region39: #{_lambda_.8} parent=35 // pred_region
        %s1909 = smul.u32 4, %s14
        %p1910 = scmp.lt.s32.totalorder %s1909, 7
        %s1911 = scalar_select %p1910, %s1909, 7
        %s1912 = smul.addr %s1911, 8
        %s1913 = scalar_lea.vmem %s2, %s1912
      $region40: #{_lambda_.8} parent=35 // pred_fallthru
        _
    $region36: #{_lambda_.8} parent=5 // pred_fallthru
      _
  $region6: #{_lambda_.8} parent=0 // loop_footer
    %s12 = sadd.s32 1, %s8
  $region7: #{_lambda_.8} parent=0 // loop_footer_branch
    %7 = sbr.rel target = $region3
  $region8: #{_lambda_.8} parent=0 // loop_exit
    _

</llo_original>
